<compile_context>
chip_gen: v7x
topology: tpu7x:2x2x1
jax: 0.10.0
libtpu: 0.0.40
codegen_flags: <defaults>
</compile_context>

<pallas_src>
import numpy as np
import jax
import jax.numpy as jnp
from jax.experimental import pallas as pl
from jax.experimental.pallas import tpu as pltpu


def _round_up(x, m):
    return ((x + m - 1) // m) * m


def _build_kernel(*, TB, nb, N, NT, ET, VB, W, base, num_pad):
    """TB molecules / block, nb blocks, N = max_n nodes, NT node types, ET edge types,
    VB valency bins, W padded lane width, base = packing base of the edge/pair code."""
    N_BINS = N + 1

    def kernel(atoms_ref, code_ref, sel_ref, tgt_ref, out_ref, acc_ref):
        b = pl.program_id(0)

        @pl.when(b == 0)
        def _init():
            acc_ref[...] = jnp.zeros_like(acc_ref)
            out_ref[...] = jnp.zeros_like(out_ref)

        lane = jax.lax.broadcasted_iota(jnp.int32, (1, W), 1)

        atoms = atoms_ref[...]                        # (TB, N) int32, -1 = not a real atom
        # one widening of the packed slab; all arithmetic / compares then run in int32
        code = code_ref[...].astype(jnp.int32)        # (TB, NNp): pair*base + edge_type

        # ---- GeneratedNDistribution: bins-on-lanes over the TB molecules ----
        n_per = jnp.sum(jnp.where(atoms >= 0, 1, 0), axis=1, keepdims=True)      # (TB, 1)
        n_row = jnp.sum(jnp.where(n_per == lane, 1, 0), axis=0, keepdims=True)   # (1, W)
        # padded (all-masked) molecules land in bin 0 and are removed at finalize (num_pad)

        # ---- GeneratedEdgesDistribution: code == 2*base + e  <=>  valid pair, i<j, type e ----
        edge_row = jnp.zeros((1, W), jnp.int32)
        for e in range(ET):
            c = jnp.sum(jnp.where(code == 2 * base + e, 1, 0), keepdims=True)    # (1, 1)
            edge_row = jnp.where(lane == e, c, edge_row)

        # ---- ValencyDistribution: weighted degree via one bf16 MXU matmul ----
        valid_pair = code >= base
        etype = code & (base - 1)
        wgt = jnp.where(etype == 4, 1, etype)         # aromatic (4) -> 1 (torch int truncation)
        wv = jnp.where(valid_pair, wgt, 0).astype(jnp.bfloat16)                  # (TB, NNp)
        val_f = jnp.dot(wv, sel_ref[...], preferred_element_type=jnp.float32)    # (TB, N)
        val = (val_f + 0.5).astype(jnp.int32)

        # ---- node / valency histograms: bins-on-lanes, one sublane reduce per node column ----
        node_row = jnp.zeros((1, W), jnp.int32)
        val_row = jnp.zeros((1, W), jnp.int32)
        for j in range(N):
            acol = atoms[:, j:j + 1]                  # (TB, 1)
            vcol = val[:, j:j + 1]                    # (TB, 1)
            node_row += jnp.sum(jnp.where(acol == lane, 1, 0),
                                axis=0, keepdims=True)             # -1 sentinel matches nothing
            val_row += jnp.sum(jnp.where((vcol == lane) & (acol >= 0), 1, 0),
                               axis=0, keepdims=True)

        # ---- single full-tile accumulator update (rows 0-3 = counts, rows 4-7 = 0) ----
        srow = jax.lax.broadcasted_iota(jnp.int32, (8, W), 0)
        update = (jnp.where(srow == 0, n_row, 0) + jnp.where(srow == 1, node_row, 0)
                  + jnp.where(srow == 2, edge_row, 0) + jnp.where(srow == 3, val_row, 0))
        acc_ref[...] += update

        @pl.when(b == nb - 1)
        def _finalize():
            accf = acc_ref[...].astype(jnp.float32)                               # (8, W)
            # remove wrapper-side padded (all-masked) molecules from n-histogram bin 0
            n_hist = accf[0:1, :] - jnp.where(lane == 0, jnp.float32(num_pad), 0.0)
            node_hist = accf[1:2, :]
            edge_hist = accf[2:3, :]
            val_hist = accf[3:4, :]

            def normalize(h):
                s = jnp.sum(h, keepdims=True)
                return h / jnp.where(s > 0.0, s, 1.0)                             # div-by-0 guard

            n_d = normalize(n_hist)
            node_d = normalize(node_hist)
            edge_d = normalize(edge_hist)
            val_d = normalize(val_hist)

            tgt = tgt_ref[...]                                                    # (4, W)

            def mae(d, t, length):
                # padded lanes are 0 in both pred and target -> contribute 0 to the sum
                return jnp.sum(jnp.abs(d - t), keepdims=True) * jnp.float32(1.0 / length)

            maes = (mae(n_d, tgt[0:1, :], N_BINS),
                    mae(node_d, tgt[1:2, :], NT),
                    mae(edge_d, tgt[2:3, :], ET),
                    mae(val_d, tgt[3:4, :], VB))
            mae_row = jnp.zeros((1, W), jnp.float32)
            for k, m in enumerate(maes):
                mae_row = jnp.where(lane == k, m, mae_row)

            srowf = jax.lax.broadcasted_iota(jnp.int32, (8, W), 0)
            out_ref[...] = (jnp.where(srowf == 0, n_d, 0.0)
                            + jnp.where(srowf == 1, node_d, 0.0)
                            + jnp.where(srowf == 2, edge_d, 0.0)
                            + jnp.where(srowf == 3, val_d, 0.0)
                            + jnp.where(srowf == 4, mae_row, 0.0))

    return kernel


def _metrics_pallas_call(atoms, code, sel, targets, *,
                         TB, nb, N, NT, ET, VB, W, base, num_pad, NNp):
    kernel = _build_kernel(TB=TB, nb=nb, N=N, NT=NT, ET=ET, VB=VB, W=W,
                           base=base, num_pad=num_pad)
    grid_spec = pltpu.PrefetchScalarGridSpec(
        num_scalar_prefetch=0,
        grid=(nb,),
        in_specs=[
            pl.BlockSpec((TB, N), lambda b: (b, 0)),      # atom types, -1 sentinel  (int32)
            pl.BlockSpec((TB, NNp), lambda b: (b, 0)),    # packed edge/pair code    (int8)
            pl.BlockSpec((NNp, N), lambda b: (0, 0)),     # valency selector         (const bf16)
            pl.BlockSpec((4, W), lambda b: (0, 0)),       # normalized targets       (const f32)
        ],
        out_specs=pl.BlockSpec((8, W), lambda b: (0, 0)),
        scratch_shapes=[pltpu.VMEM((8, W), jnp.int32)],   # int32 histogram accumulator
    )
    return pl.pallas_call(
        kernel,
        out_shape=jax.ShapeDtypeStruct((8, W), jnp.float32),
        grid_spec=grid_spec,
        compiler_params=pltpu.CompilerParams(
            dimension_semantics=("arbitrary",),            # reduction over the batch grid
            vmem_limit_bytes=32 * 1024 * 1024,             # explicit: safe on v7x's smaller VMEM
        ),
    )(atoms, code, sel, targets)


def _preprocess(atom_types, node_mask, edge_types, B_pad, NNp, base):
    """Wrapper-side layout plumbing: -1 atom sentinel, packed int8 edge/pair slab, padding."""
    B, N = atom_types.shape
    mask = node_mask.astype(jnp.int32)
    atoms = jnp.where(mask > 0, atom_types.astype(jnp.int32), -1)
    triu = jnp.triu(jnp.ones((N, N), jnp.int32), k=1)
    pair = mask[:, :, None] * mask[:, None, :] * (1 + triu)[None, :, :]    # 0 / 1 / 2
    code = (pair * base + edge_types.astype(jnp.int32)).reshape(B, N * N)
    code = jnp.pad(code, ((0, 0), (0, NNp - N * N))).astype(jnp.int8)      # pad lanes -> invalid
    pad = B_pad - B
    if pad:
        atoms = jnp.pad(atoms, ((0, pad), (0, 0)), constant_values=-1)
        code = jnp.pad(code, ((0, pad), (0, 0)))
    return atoms, code


class SamplingMolecularMetricsPallas:
    """JAX/Pallas re-implementation of SamplingMolecularMetrics.forward (custom-metrics part)."""

    BOND_NAMES = ['No bond', 'Single', 'Double', 'Triple', 'Aromatic']

    def __init__(self, n_nodes, node_types, edge_types, valency_distribution,
                 atom_decoder, max_tile_b=512):
        n_nodes = jnp.asarray(n_nodes, jnp.float32).reshape(-1)
        node_types = jnp.asarray(node_types, jnp.float32).reshape(-1)
        edge_types = jnp.asarray(edge_types, jnp.float32).reshape(-1)
        valency_distribution = jnp.asarray(valency_distribution, jnp.float32).reshape(-1)

        self._n_len = int(n_nodes.shape[0])          # = max_n + 1
        self._nt = int(node_types.shape[0])
        self._et = int(edge_types.shape[0])
        self._vb = int(valency_distribution.shape[0])
        self._max_tile_b = int(max_tile_b)
        self._W = _round_up(max(self._n_len, self._nt, self._et, self._vb, 4), 128)

        # packing base for (pair, edge) -> single int8 code
        self._base = max(8, 1 << max(self._et - 1, 0).bit_length())
        assert 2 * self._base + self._et - 1 <= 127, "edge/pair code must fit in int8"

        def norm(x):
            s = jnp.sum(x)
            return x / jnp.where(s > 0, s, 1.0)

        # register_buffer equivalents (pre-normalized target histograms)
        self.n_target_dist = norm(n_nodes)
        self.node_target_dist = norm(node_types)
        self.edge_target_dist = norm(edge_types)
        self.valency_target_dist = norm(valency_distribution)

        tgt = jnp.zeros((4, self._W), jnp.float32)
        tgt = tgt.at[0, :self._n_len].set(self.n_target_dist)
        tgt = tgt.at[1, :self._nt].set(self.node_target_dist)
        tgt = tgt.at[2, :self._et].set(self.edge_target_dist)
        tgt = tgt.at[3, :self._vb].set(self.valency_target_dist)
        self._targets = tgt

        N = self._n_len - 1
        self._N = N
        self._NNp = _round_up(max(N * N, 1), 128)
        # (NNp, N) selector, column j picks flat entries i*N + j  ->  valency = weighted degree
        p = np.arange(self._NNp)
        sel = ((p[:, None] % N) == np.arange(N)[None, :]) & (p[:, None] < N * N)
        self._sel = jnp.asarray(sel, jnp.bfloat16)
        self.atom_decoder = atom_decoder

    def __call__(self, atom_types, node_mask, edge_types):
        B, N = atom_types.shape
        assert N == self._N, "n_nodes target length must equal max_n + 1"

        nb = max(1, -(-B // self._max_tile_b))
        TB = _round_up(-(-B // nb), 32)
        B_pad = TB * nb
        num_pad = B_pad - B

        atoms, code = _preprocess(atom_types, node_mask, edge_types,
                                  B_pad, self._NNp, self._base)
        out = _metrics_pallas_call(
            atoms, code, self._sel, self._targets,
            TB=TB, nb=nb, N=N, NT=self._nt, ET=self._et, VB=self._vb,
            W=self._W, base=self._base, num_pad=num_pad, NNp=self._NNp)

        n_dist = out[0:1, :self._n_len]
        node_dist = out[1:2, :self._nt]
        edge_dist = out[2:3, :self._et]
        val_dist = out[3:4, :self._vb]
        maes = out[4, :4]

        to_log = {}
        # TODO(synk): compute_molecular_metrics (RDKit), CSV export and wandb logging omitted.
        for i, atom in enumerate(self.atom_decoder):
            to_log[f'molecular_metrics/{atom}_dist'] = float(
                node_dist[0, i] - self.node_target_dist[i])
        for j, bond in enumerate(self.BOND_NAMES[:self._et]):
            to_log[f'molecular_metrics/bond_{bond}_dist'] = float(
                edge_dist[0, j] - self.edge_target_dist[j])
        for v in range(min(6, self._vb)):
            to_log[f'molecular_metrics/valency_{v}_dist'] = float(
                val_dist[0, v] - self.valency_target_dist[v])
        to_log['basic_metrics/n_mae'] = float(maes[0])
        to_log['basic_metrics/node_mae'] = float(maes[1])
        to_log['basic_metrics/edge_mae'] = float(maes[2])
        to_log['basic_metrics/valency_mae'] = float(maes[3])
        return to_log, (n_dist, node_dist, edge_dist, val_dist)


if __name__ == "__main__":
    B, MAX_N, NT, ET = 72, 9, 4, 5
    VB = 3 * MAX_N - 2

    key = jax.random.PRNGKey(0)
    ks = jax.random.split(key, 8)

    # synthetic "generated molecules" (dense padded batch)
    n_per = jax.random.randint(ks[0], (B,), 2, MAX_N + 1)
    node_mask = (jnp.arange(MAX_N)[None, :] < n_per[:, None]).astype(jnp.int32)
    atom_types = jax.random.randint(ks[1], (B, MAX_N), 0, NT).astype(jnp.int32)
    atom_types = jnp.where(node_mask == 1, atom_types, -1)
    E = jax.random.randint(ks[2], (B, MAX_N, MAX_N), 0, ET)
    E = jnp.triu(E, k=1)
    E = E + jnp.swapaxes(E, 1, 2)                                   # symmetric, zero diagonal
    E = (E * node_mask[:, :, None] * node_mask[:, None, :]).astype(jnp.int32)

    # deterministic synthetic dataset_infos marginals (buffers in __init__)
    n_nodes_marg = jax.random.uniform(ks[3], (MAX_N + 1,)) + 0.1
    node_types_marg = jax.random.uniform(ks[4], (NT,)) + 0.1
    edge_types_marg = jax.random.uniform(ks[5], (ET,)) + 0.1
    valency_marg = jax.random.uniform(ks[6], (VB,)) + 0.1

    # ---- host reference (mirrors the torch metric definitions exactly) ----
    atoms_np = np.asarray(atom_types)
    mask_np = np.asarray(node_mask)
    e_np = np.asarray(E)
    n_hist = np.zeros(MAX_N + 1)
    node_hist = np.zeros(NT)
    edge_hist = np.zeros(ET)
    val_hist = np.zeros(VB)
    for b in range(B):
        n = int(mask_np[b].sum())
        n_hist[n] += 1
        for t in atoms_np[b, :n]:
            node_hist[int(t)] += 1
        sub = e_np[b, :n, :n]
        iu = np.triu_indices(n, k=1)
        for et in sub[iu]:
            edge_hist[int(et)] += 1
        w = sub.copy()
        w[w == 4] = 1                       # int-tensor assignment of 1.5 truncates to 1
        for v in w.sum(axis=0):
            val_hist[int(v)] += 1

    def norm_np(h):
        return h / h.sum()

    ref = (norm_np(n_hist), norm_np(node_hist), norm_np(edge_hist), norm_np(val_hist))

    # run twice: fast single-grid-step path (default tile) and the multi-step accumulator path
    for tile_b in (512, 32):
        metrics = SamplingMolecularMetricsPallas(
            n_nodes=n_nodes_marg,
            node_types=node_types_marg,
            edge_types=edge_types_marg,
            valency_distribution=valency_marg,
            atom_decoder=['C', 'N', 'O', 'F'],
            max_tile_b=tile_b,
        )
        to_log, dists = metrics(atom_types, node_mask, E)
        dists = jax.block_until_ready(dists)

        n_dist, node_dist, edge_dist, val_dist = dists
        np.testing.assert_allclose(np.asarray(n_dist)[0], ref[0], rtol=1e-5, atol=1e-6)
        np.testing.assert_allclose(np.asarray(node_dist)[0], ref[1], rtol=1e-5, atol=1e-6)
        np.testing.assert_allclose(np.asarray(edge_dist)[0], ref[2], rtol=1e-5, atol=1e-6)
        np.testing.assert_allclose(np.asarray(val_dist)[0], ref[3], rtol=1e-5, atol=1e-6)

        tgts = [np.asarray(metrics.n_target_dist), np.asarray(metrics.node_target_dist),
                np.asarray(metrics.edge_target_dist), np.asarray(metrics.valency_target_dist)]
        ref_maes = [float(np.mean(np.abs(r - t))) for r, t in zip(ref, tgts)]
        got_maes = [to_log['basic_metrics/n_mae'], to_log['basic_metrics/node_mae'],
                    to_log['basic_metrics/edge_mae'], to_log['basic_metrics/valency_mae']]
        np.testing.assert_allclose(got_maes, ref_maes, rtol=1e-5, atol=1e-6)

    print("KERNEL_OK")
</pallas_src>

<mosaic_0001>
module attributes {stable_mosaic.version = 11 : i64} {
  func.func @kernel(%arg0: i32, %arg1: memref<96x9xi32, #tpu.memory_space<vmem>>, %arg2: memref<96x128xi8, #tpu.memory_space<vmem>>, %arg3: memref<128x9xbf16, #tpu.memory_space<vmem>>, %arg4: memref<4x128xf32, #tpu.memory_space<vmem>>, %arg5: memref<8x128xf32, #tpu.memory_space<vmem>>, %arg6: memref<8x128xi32, #tpu.memory_space<vmem>>) attributes {dimension_semantics = [#tpu.dimension_semantics<arbitrary>], iteration_bounds = array<i64: 1>, scalar_prefetch = 0 : i64, scratch_operands = 1 : i64, tpu.core_type = #tpu.core_type<tc>, window_params = [{transform_indices = @transform_0, window_bounds = array<i64: 96, 9>}, {transform_indices = @transform_1, window_bounds = array<i64: 96, 128>}, {pipeline_mode = #tpu.pipeline_mode<synchronous>, transform_indices = @transform_2, window_bounds = array<i64: 128, 9>}, {pipeline_mode = #tpu.pipeline_mode<synchronous>, transform_indices = @transform_3, window_bounds = array<i64: 4, 128>}, {pipeline_mode = #tpu.pipeline_mode<synchronous>, transform_indices = @transform_4, window_bounds = array<i64: 8, 128>}]} {
    %c0_i32 = arith.constant 0 : i32
    %0 = arith.cmpi eq, %arg0, %c0_i32 : i32
    %1 = arith.extui %0 : i1 to i32
    %c0_i32_0 = arith.constant 0 : i32
    %2 = arith.cmpi ne, %1, %c0_i32_0 : i32
    scf.if %2 {
      %c0_i32_113 = arith.constant 0 : i32
      %366 = vector.broadcast %c0_i32_113 : i32 to vector<8x128xi32>
      %c0_114 = arith.constant 0 : index
      %c0_115 = arith.constant 0 : index
      %367 = vector.load %arg6[%c0_114, %c0_115] : memref<8x128xi32, #tpu.memory_space<vmem>>, vector<8x128xi32>
      tpu.vector_store %arg6[%c0_114, %c0_115], %366 {strides = array<i32>} : memref<8x128xi32, #tpu.memory_space<vmem>>, vector<8x128xi32>,
      %cst_116 = arith.constant 0.000000e+00 : f32
      %368 = vector.broadcast %cst_116 : f32 to vector<8x128xf32>
      %c0_117 = arith.constant 0 : index
      %c0_118 = arith.constant 0 : index
      %369 = vector.load %arg5[%c0_117, %c0_118] : memref<8x128xf32, #tpu.memory_space<vmem>>, vector<8x128xf32>
      tpu.vector_store %arg5[%c0_117, %c0_118], %368 {strides = array<i32>} : memref<8x128xf32, #tpu.memory_space<vmem>>, vector<8x128xf32>,
    } else {
    }
    %3 = tpu.iota {dimensions = array<i32: 1>} : vector<1x128xi32>
    %c0 = arith.constant 0 : index
    %c0_1 = arith.constant 0 : index
    %4 = vector.load %arg1[%c0, %c0_1] : memref<96x9xi32, #tpu.memory_space<vmem>>, vector<96x9xi32>
    %c0_2 = arith.constant 0 : index
    %c0_3 = arith.constant 0 : index
    %5 = vector.load %arg2[%c0_2, %c0_3] : memref<96x128xi8, #tpu.memory_space<vmem>>, vector<96x128xi8>
    %6 = arith.extsi %5 : vector<96x128xi8> to vector<96x128xi32>
    %c0_i32_4 = arith.constant 0 : i32
    %7 = vector.broadcast %c0_i32_4 : i32 to vector<96x9xi32>
    %8 = arith.cmpi sge, %4, %7 : vector<96x9xi32>
    %c1_i32 = arith.constant 1 : i32
    %c0_i32_5 = arith.constant 0 : i32
    %9 = vector.broadcast %c1_i32 : i32 to vector<96x9xi32>
    %10 = vector.broadcast %c0_i32_5 : i32 to vector<96x9xi32>
    %11 = arith.select %8, %9, %10 : vector<96x9xi1>, vector<96x9xi32>
    %cst = arith.constant dense<0> : vector<96xi32>
    %12 = vector.multi_reduction <add>, %11, %cst [1] : vector<96x9xi32> to vector<96xi32>
    %13 = vector.shape_cast %12 : vector<96xi32> to vector<96x1xi32>
    %14 = vector.broadcast %13 : vector<96x1xi32> to vector<96x128xi32>
    %15 = vector.broadcast %3 : vector<1x128xi32> to vector<96x128xi32>
    %16 = arith.cmpi eq, %14, %15 : vector<96x128xi32>
    %c1_i32_6 = arith.constant 1 : i32
    %c0_i32_7 = arith.constant 0 : i32
    %17 = vector.broadcast %c1_i32_6 : i32 to vector<96x128xi32>
    %18 = vector.broadcast %c0_i32_7 : i32 to vector<96x128xi32>
    %19 = arith.select %16, %17, %18 : vector<96x128xi1>, vector<96x128xi32>
    %cst_8 = arith.constant dense<0> : vector<128xi32>
    %20 = vector.multi_reduction <add>, %19, %cst_8 [0] : vector<96x128xi32> to vector<128xi32>
    %21 = vector.shape_cast %20 : vector<128xi32> to vector<1x128xi32>
    %c0_i32_9 = arith.constant 0 : i32
    %22 = vector.broadcast %c0_i32_9 : i32 to vector<1x128xi32>
    %c16_i32 = arith.constant 16 : i32
    %23 = vector.broadcast %c16_i32 : i32 to vector<96x128xi32>
    %24 = arith.cmpi eq, %6, %23 : vector<96x128xi32>
    %c1_i32_10 = arith.constant 1 : i32
    %c0_i32_11 = arith.constant 0 : i32
    %25 = vector.broadcast %c1_i32_10 : i32 to vector<96x128xi32>
    %26 = vector.broadcast %c0_i32_11 : i32 to vector<96x128xi32>
    %27 = arith.select %24, %25, %26 : vector<96x128xi1>, vector<96x128xi32>
    %28 = vector.shape_cast %27 : vector<96x128xi32> to vector<1x96x128xi32>
    %cst_12 = arith.constant dense<0> : vector<1xi32>
    %29 = vector.multi_reduction <add>, %28, %cst_12 [1, 2] : vector<1x96x128xi32> to vector<1xi32>
    %30 = vector.shape_cast %29 : vector<1xi32> to vector<1x1x1xi32>
    %31 = vector.extract %30[0, 0, 0] : i32 from vector<1x1x1xi32>
    %32 = vector.broadcast %31 : i32 to vector<1x1xi32>
    %c0_i32_13 = arith.constant 0 : i32
    %33 = vector.broadcast %c0_i32_13 : i32 to vector<1x128xi32>
    %34 = arith.cmpi eq, %3, %33 : vector<1x128xi32>
    %35 = vector.shape_cast %32 : vector<1x1xi32> to vector<1x1xi32>
    %36 = vector.broadcast %35 : vector<1x1xi32> to vector<1x128xi32>
    %37 = arith.select %34, %36, %22 : vector<1x128xi1>, vector<1x128xi32>
    %c17_i32 = arith.constant 17 : i32
    %38 = vector.broadcast %c17_i32 : i32 to vector<96x128xi32>
    %39 = arith.cmpi eq, %6, %38 : vector<96x128xi32>
    %c1_i32_14 = arith.constant 1 : i32
    %c0_i32_15 = arith.constant 0 : i32
    %40 = vector.broadcast %c1_i32_14 : i32 to vector<96x128xi32>
    %41 = vector.broadcast %c0_i32_15 : i32 to vector<96x128xi32>
    %42 = arith.select %39, %40, %41 : vector<96x128xi1>, vector<96x128xi32>
    %43 = vector.shape_cast %42 : vector<96x128xi32> to vector<1x96x128xi32>
    %cst_16 = arith.constant dense<0> : vector<1xi32>
    %44 = vector.multi_reduction <add>, %43, %cst_16 [1, 2] : vector<1x96x128xi32> to vector<1xi32>
    %45 = vector.shape_cast %44 : vector<1xi32> to vector<1x1x1xi32>
    %46 = vector.extract %45[0, 0, 0] : i32 from vector<1x1x1xi32>
    %47 = vector.broadcast %46 : i32 to vector<1x1xi32>
    %c1_i32_17 = arith.constant 1 : i32
    %48 = vector.broadcast %c1_i32_17 : i32 to vector<1x128xi32>
    %49 = arith.cmpi eq, %3, %48 : vector<1x128xi32>
    %50 = vector.shape_cast %47 : vector<1x1xi32> to vector<1x1xi32>
    %51 = vector.broadcast %50 : vector<1x1xi32> to vector<1x128xi32>
    %52 = arith.select %49, %51, %37 : vector<1x128xi1>, vector<1x128xi32>
    %c18_i32 = arith.constant 18 : i32
    %53 = vector.broadcast %c18_i32 : i32 to vector<96x128xi32>
    %54 = arith.cmpi eq, %6, %53 : vector<96x128xi32>
    %c1_i32_18 = arith.constant 1 : i32
    %c0_i32_19 = arith.constant 0 : i32
    %55 = vector.broadcast %c1_i32_18 : i32 to vector<96x128xi32>
    %56 = vector.broadcast %c0_i32_19 : i32 to vector<96x128xi32>
    %57 = arith.select %54, %55, %56 : vector<96x128xi1>, vector<96x128xi32>
    %58 = vector.shape_cast %57 : vector<96x128xi32> to vector<1x96x128xi32>
    %cst_20 = arith.constant dense<0> : vector<1xi32>
    %59 = vector.multi_reduction <add>, %58, %cst_20 [1, 2] : vector<1x96x128xi32> to vector<1xi32>
    %60 = vector.shape_cast %59 : vector<1xi32> to vector<1x1x1xi32>
    %61 = vector.extract %60[0, 0, 0] : i32 from vector<1x1x1xi32>
    %62 = vector.broadcast %61 : i32 to vector<1x1xi32>
    %c2_i32 = arith.constant 2 : i32
    %63 = vector.broadcast %c2_i32 : i32 to vector<1x128xi32>
    %64 = arith.cmpi eq, %3, %63 : vector<1x128xi32>
    %65 = vector.shape_cast %62 : vector<1x1xi32> to vector<1x1xi32>
    %66 = vector.broadcast %65 : vector<1x1xi32> to vector<1x128xi32>
    %67 = arith.select %64, %66, %52 : vector<1x128xi1>, vector<1x128xi32>
    %c19_i32 = arith.constant 19 : i32
    %68 = vector.broadcast %c19_i32 : i32 to vector<96x128xi32>
    %69 = arith.cmpi eq, %6, %68 : vector<96x128xi32>
    %c1_i32_21 = arith.constant 1 : i32
    %c0_i32_22 = arith.constant 0 : i32
    %70 = vector.broadcast %c1_i32_21 : i32 to vector<96x128xi32>
    %71 = vector.broadcast %c0_i32_22 : i32 to vector<96x128xi32>
    %72 = arith.select %69, %70, %71 : vector<96x128xi1>, vector<96x128xi32>
    %73 = vector.shape_cast %72 : vector<96x128xi32> to vector<1x96x128xi32>
    %cst_23 = arith.constant dense<0> : vector<1xi32>
    %74 = vector.multi_reduction <add>, %73, %cst_23 [1, 2] : vector<1x96x128xi32> to vector<1xi32>
    %75 = vector.shape_cast %74 : vector<1xi32> to vector<1x1x1xi32>
    %76 = vector.extract %75[0, 0, 0] : i32 from vector<1x1x1xi32>
    %77 = vector.broadcast %76 : i32 to vector<1x1xi32>
    %c3_i32 = arith.constant 3 : i32
    %78 = vector.broadcast %c3_i32 : i32 to vector<1x128xi32>
    %79 = arith.cmpi eq, %3, %78 : vector<1x128xi32>
    %80 = vector.shape_cast %77 : vector<1x1xi32> to vector<1x1xi32>
    %81 = vector.broadcast %80 : vector<1x1xi32> to vector<1x128xi32>
    %82 = arith.select %79, %81, %67 : vector<1x128xi1>, vector<1x128xi32>
    %c20_i32 = arith.constant 20 : i32
    %83 = vector.broadcast %c20_i32 : i32 to vector<96x128xi32>
    %84 = arith.cmpi eq, %6, %83 : vector<96x128xi32>
    %c1_i32_24 = arith.constant 1 : i32
    %c0_i32_25 = arith.constant 0 : i32
    %85 = vector.broadcast %c1_i32_24 : i32 to vector<96x128xi32>
    %86 = vector.broadcast %c0_i32_25 : i32 to vector<96x128xi32>
    %87 = arith.select %84, %85, %86 : vector<96x128xi1>, vector<96x128xi32>
    %88 = vector.shape_cast %87 : vector<96x128xi32> to vector<1x96x128xi32>
    %cst_26 = arith.constant dense<0> : vector<1xi32>
    %89 = vector.multi_reduction <add>, %88, %cst_26 [1, 2] : vector<1x96x128xi32> to vector<1xi32>
    %90 = vector.shape_cast %89 : vector<1xi32> to vector<1x1x1xi32>
    %91 = vector.extract %90[0, 0, 0] : i32 from vector<1x1x1xi32>
    %92 = vector.broadcast %91 : i32 to vector<1x1xi32>
    %c4_i32 = arith.constant 4 : i32
    %93 = vector.broadcast %c4_i32 : i32 to vector<1x128xi32>
    %94 = arith.cmpi eq, %3, %93 : vector<1x128xi32>
    %95 = vector.shape_cast %92 : vector<1x1xi32> to vector<1x1xi32>
    %96 = vector.broadcast %95 : vector<1x1xi32> to vector<1x128xi32>
    %97 = arith.select %94, %96, %82 : vector<1x128xi1>, vector<1x128xi32>
    %c8_i32 = arith.constant 8 : i32
    %98 = vector.broadcast %c8_i32 : i32 to vector<96x128xi32>
    %99 = arith.cmpi sge, %6, %98 : vector<96x128xi32>
    %c7_i32 = arith.constant 7 : i32
    %100 = vector.broadcast %c7_i32 : i32 to vector<96x128xi32>
    %101 = arith.andi %6, %100 : vector<96x128xi32>
    %c4_i32_27 = arith.constant 4 : i32
    %102 = vector.broadcast %c4_i32_27 : i32 to vector<96x128xi32>
    %103 = arith.cmpi eq, %101, %102 : vector<96x128xi32>
    %c1_i32_28 = arith.constant 1 : i32
    %104 = vector.broadcast %c1_i32_28 : i32 to vector<96x128xi32>
    %105 = arith.select %103, %104, %101 : vector<96x128xi1>, vector<96x128xi32>
    %c0_i32_29 = arith.constant 0 : i32
    %106 = vector.broadcast %c0_i32_29 : i32 to vector<96x128xi32>
    %107 = arith.select %99, %105, %106 : vector<96x128xi1>, vector<96x128xi32>
    %108 = arith.sitofp %107 : vector<96x128xi32> to vector<96x128xbf16>
    %c0_30 = arith.constant 0 : index
    %c0_31 = arith.constant 0 : index
    %109 = vector.load %arg3[%c0_30, %c0_31] : memref<128x9xbf16, #tpu.memory_space<vmem>>, vector<128x9xbf16>
    %cst_32 = arith.constant dense<0.000000e+00> : vector<96x9xf32>
    %110 = tpu.matmul %108, %109, %cst_32 {dimension_numbers = #tpu.dot_dimension_numbers<[1], [0], [0], [1], [0, 0, 1, 1], [], []>} : vector<96x128xbf16>, vector<128x9xbf16>, vector<96x9xf32> -> vector<96x9xf32>
    %cst_33 = arith.constant 5.000000e-01 : f32
    %111 = vector.broadcast %cst_33 : f32 to vector<96x9xf32>
    %112 = arith.addf %110, %111 : vector<96x9xf32>
    %113 = arith.fptosi %112 : vector<96x9xf32> to vector<96x9xi32>
    %c0_i32_34 = arith.constant 0 : i32
    %114 = vector.broadcast %c0_i32_34 : i32 to vector<1x128xi32>
    %c0_i32_35 = arith.constant 0 : i32
    %115 = vector.broadcast %c0_i32_35 : i32 to vector<1x128xi32>
    %116 = vector.extract_strided_slice %4 {offsets = [0, 0], sizes = [96, 1], strides = [1, 1]} : vector<96x9xi32> to vector<96x1xi32>
    %117 = vector.extract_strided_slice %113 {offsets = [0, 0], sizes = [96, 1], strides = [1, 1]} : vector<96x9xi32> to vector<96x1xi32>
    %118 = vector.broadcast %116 : vector<96x1xi32> to vector<96x128xi32>
    %119 = vector.broadcast %3 : vector<1x128xi32> to vector<96x128xi32>
    %120 = arith.cmpi eq, %118, %119 : vector<96x128xi32>
    %c1_i32_36 = arith.constant 1 : i32
    %c0_i32_37 = arith.constant 0 : i32
    %121 = vector.broadcast %c1_i32_36 : i32 to vector<96x128xi32>
    %122 = vector.broadcast %c0_i32_37 : i32 to vector<96x128xi32>
    %123 = arith.select %120, %121, %122 : vector<96x128xi1>, vector<96x128xi32>
    %cst_38 = arith.constant dense<0> : vector<128xi32>
    %124 = vector.multi_reduction <add>, %123, %cst_38 [0] : vector<96x128xi32> to vector<128xi32>
    %125 = vector.shape_cast %124 : vector<128xi32> to vector<1x128xi32>
    %126 = arith.addi %114, %125 : vector<1x128xi32>
    %127 = vector.broadcast %117 : vector<96x1xi32> to vector<96x128xi32>
    %128 = vector.broadcast %3 : vector<1x128xi32> to vector<96x128xi32>
    %129 = arith.cmpi eq, %127, %128 : vector<96x128xi32>
    %c0_i32_39 = arith.constant 0 : i32
    %130 = vector.broadcast %c0_i32_39 : i32 to vector<96x1xi32>
    %131 = arith.cmpi sge, %116, %130 : vector<96x1xi32>
    %132 = vector.broadcast %131 : vector<96x1xi1> to vector<96x128xi1>
    %133 = arith.andi %129, %132 : vector<96x128xi1>
    %c1_i32_40 = arith.constant 1 : i32
    %c0_i32_41 = arith.constant 0 : i32
    %134 = vector.broadcast %c1_i32_40 : i32 to vector<96x128xi32>
    %135 = vector.broadcast %c0_i32_41 : i32 to vector<96x128xi32>
    %136 = arith.select %133, %134, %135 : vector<96x128xi1>, vector<96x128xi32>
    %cst_42 = arith.constant dense<0> : vector<128xi32>
    %137 = vector.multi_reduction <add>, %136, %cst_42 [0] : vector<96x128xi32> to vector<128xi32>
    %138 = vector.shape_cast %137 : vector<128xi32> to vector<1x128xi32>
    %139 = arith.addi %115, %138 : vector<1x128xi32>
    %140 = vector.extract_strided_slice %4 {offsets = [0, 1], sizes = [96, 1], strides = [1, 1]} : vector<96x9xi32> to vector<96x1xi32>
    %141 = vector.extract_strided_slice %113 {offsets = [0, 1], sizes = [96, 1], strides = [1, 1]} : vector<96x9xi32> to vector<96x1xi32>
    %142 = vector.broadcast %140 : vector<96x1xi32> to vector<96x128xi32>
    %143 = vector.broadcast %3 : vector<1x128xi32> to vector<96x128xi32>
    %144 = arith.cmpi eq, %142, %143 : vector<96x128xi32>
    %c1_i32_43 = arith.constant 1 : i32
    %c0_i32_44 = arith.constant 0 : i32
    %145 = vector.broadcast %c1_i32_43 : i32 to vector<96x128xi32>
    %146 = vector.broadcast %c0_i32_44 : i32 to vector<96x128xi32>
    %147 = arith.select %144, %145, %146 : vector<96x128xi1>, vector<96x128xi32>
    %cst_45 = arith.constant dense<0> : vector<128xi32>
    %148 = vector.multi_reduction <add>, %147, %cst_45 [0] : vector<96x128xi32> to vector<128xi32>
    %149 = vector.shape_cast %148 : vector<128xi32> to vector<1x128xi32>
    %150 = arith.addi %126, %149 : vector<1x128xi32>
    %151 = vector.broadcast %141 : vector<96x1xi32> to vector<96x128xi32>
    %152 = vector.broadcast %3 : vector<1x128xi32> to vector<96x128xi32>
    %153 = arith.cmpi eq, %151, %152 : vector<96x128xi32>
    %c0_i32_46 = arith.constant 0 : i32
    %154 = vector.broadcast %c0_i32_46 : i32 to vector<96x1xi32>
    %155 = arith.cmpi sge, %140, %154 : vector<96x1xi32>
    %156 = vector.broadcast %155 : vector<96x1xi1> to vector<96x128xi1>
    %157 = arith.andi %153, %156 : vector<96x128xi1>
    %c1_i32_47 = arith.constant 1 : i32
    %c0_i32_48 = arith.constant 0 : i32
    %158 = vector.broadcast %c1_i32_47 : i32 to vector<96x128xi32>
    %159 = vector.broadcast %c0_i32_48 : i32 to vector<96x128xi32>
    %160 = arith.select %157, %158, %159 : vector<96x128xi1>, vector<96x128xi32>
    %cst_49 = arith.constant dense<0> : vector<128xi32>
    %161 = vector.multi_reduction <add>, %160, %cst_49 [0] : vector<96x128xi32> to vector<128xi32>
    %162 = vector.shape_cast %161 : vector<128xi32> to vector<1x128xi32>
    %163 = arith.addi %139, %162 : vector<1x128xi32>
    %164 = vector.extract_strided_slice %4 {offsets = [0, 2], sizes = [96, 1], strides = [1, 1]} : vector<96x9xi32> to vector<96x1xi32>
    %165 = vector.extract_strided_slice %113 {offsets = [0, 2], sizes = [96, 1], strides = [1, 1]} : vector<96x9xi32> to vector<96x1xi32>
    %166 = vector.broadcast %164 : vector<96x1xi32> to vector<96x128xi32>
    %167 = vector.broadcast %3 : vector<1x128xi32> to vector<96x128xi32>
    %168 = arith.cmpi eq, %166, %167 : vector<96x128xi32>
    %c1_i32_50 = arith.constant 1 : i32
    %c0_i32_51 = arith.constant 0 : i32
    %169 = vector.broadcast %c1_i32_50 : i32 to vector<96x128xi32>
    %170 = vector.broadcast %c0_i32_51 : i32 to vector<96x128xi32>
    %171 = arith.select %168, %169, %170 : vector<96x128xi1>, vector<96x128xi32>
    %cst_52 = arith.constant dense<0> : vector<128xi32>
    %172 = vector.multi_reduction <add>, %171, %cst_52 [0] : vector<96x128xi32> to vector<128xi32>
    %173 = vector.shape_cast %172 : vector<128xi32> to vector<1x128xi32>
    %174 = arith.addi %150, %173 : vector<1x128xi32>
    %175 = vector.broadcast %165 : vector<96x1xi32> to vector<96x128xi32>
    %176 = vector.broadcast %3 : vector<1x128xi32> to vector<96x128xi32>
    %177 = arith.cmpi eq, %175, %176 : vector<96x128xi32>
    %c0_i32_53 = arith.constant 0 : i32
    %178 = vector.broadcast %c0_i32_53 : i32 to vector<96x1xi32>
    %179 = arith.cmpi sge, %164, %178 : vector<96x1xi32>
    %180 = vector.broadcast %179 : vector<96x1xi1> to vector<96x128xi1>
    %181 = arith.andi %177, %180 : vector<96x128xi1>
    %c1_i32_54 = arith.constant 1 : i32
    %c0_i32_55 = arith.constant 0 : i32
    %182 = vector.broadcast %c1_i32_54 : i32 to vector<96x128xi32>
    %183 = vector.broadcast %c0_i32_55 : i32 to vector<96x128xi32>
    %184 = arith.select %181, %182, %183 : vector<96x128xi1>, vector<96x128xi32>
    %cst_56 = arith.constant dense<0> : vector<128xi32>
    %185 = vector.multi_reduction <add>, %184, %cst_56 [0] : vector<96x128xi32> to vector<128xi32>
    %186 = vector.shape_cast %185 : vector<128xi32> to vector<1x128xi32>
    %187 = arith.addi %163, %186 : vector<1x128xi32>
    %188 = vector.extract_strided_slice %4 {offsets = [0, 3], sizes = [96, 1], strides = [1, 1]} : vector<96x9xi32> to vector<96x1xi32>
    %189 = vector.extract_strided_slice %113 {offsets = [0, 3], sizes = [96, 1], strides = [1, 1]} : vector<96x9xi32> to vector<96x1xi32>
    %190 = vector.broadcast %188 : vector<96x1xi32> to vector<96x128xi32>
    %191 = vector.broadcast %3 : vector<1x128xi32> to vector<96x128xi32>
    %192 = arith.cmpi eq, %190, %191 : vector<96x128xi32>
    %c1_i32_57 = arith.constant 1 : i32
    %c0_i32_58 = arith.constant 0 : i32
    %193 = vector.broadcast %c1_i32_57 : i32 to vector<96x128xi32>
    %194 = vector.broadcast %c0_i32_58 : i32 to vector<96x128xi32>
    %195 = arith.select %192, %193, %194 : vector<96x128xi1>, vector<96x128xi32>
    %cst_59 = arith.constant dense<0> : vector<128xi32>
    %196 = vector.multi_reduction <add>, %195, %cst_59 [0] : vector<96x128xi32> to vector<128xi32>
    %197 = vector.shape_cast %196 : vector<128xi32> to vector<1x128xi32>
    %198 = arith.addi %174, %197 : vector<1x128xi32>
    %199 = vector.broadcast %189 : vector<96x1xi32> to vector<96x128xi32>
    %200 = vector.broadcast %3 : vector<1x128xi32> to vector<96x128xi32>
    %201 = arith.cmpi eq, %199, %200 : vector<96x128xi32>
    %c0_i32_60 = arith.constant 0 : i32
    %202 = vector.broadcast %c0_i32_60 : i32 to vector<96x1xi32>
    %203 = arith.cmpi sge, %188, %202 : vector<96x1xi32>
    %204 = vector.broadcast %203 : vector<96x1xi1> to vector<96x128xi1>
    %205 = arith.andi %201, %204 : vector<96x128xi1>
    %c1_i32_61 = arith.constant 1 : i32
    %c0_i32_62 = arith.constant 0 : i32
    %206 = vector.broadcast %c1_i32_61 : i32 to vector<96x128xi32>
    %207 = vector.broadcast %c0_i32_62 : i32 to vector<96x128xi32>
    %208 = arith.select %205, %206, %207 : vector<96x128xi1>, vector<96x128xi32>
    %cst_63 = arith.constant dense<0> : vector<128xi32>
    %209 = vector.multi_reduction <add>, %208, %cst_63 [0] : vector<96x128xi32> to vector<128xi32>
    %210 = vector.shape_cast %209 : vector<128xi32> to vector<1x128xi32>
    %211 = arith.addi %187, %210 : vector<1x128xi32>
    %212 = vector.extract_strided_slice %4 {offsets = [0, 4], sizes = [96, 1], strides = [1, 1]} : vector<96x9xi32> to vector<96x1xi32>
    %213 = vector.extract_strided_slice %113 {offsets = [0, 4], sizes = [96, 1], strides = [1, 1]} : vector<96x9xi32> to vector<96x1xi32>
    %214 = vector.broadcast %212 : vector<96x1xi32> to vector<96x128xi32>
    %215 = vector.broadcast %3 : vector<1x128xi32> to vector<96x128xi32>
    %216 = arith.cmpi eq, %214, %215 : vector<96x128xi32>
    %c1_i32_64 = arith.constant 1 : i32
    %c0_i32_65 = arith.constant 0 : i32
    %217 = vector.broadcast %c1_i32_64 : i32 to vector<96x128xi32>
    %218 = vector.broadcast %c0_i32_65 : i32 to vector<96x128xi32>
    %219 = arith.select %216, %217, %218 : vector<96x128xi1>, vector<96x128xi32>
    %cst_66 = arith.constant dense<0> : vector<128xi32>
    %220 = vector.multi_reduction <add>, %219, %cst_66 [0] : vector<96x128xi32> to vector<128xi32>
    %221 = vector.shape_cast %220 : vector<128xi32> to vector<1x128xi32>
    %222 = arith.addi %198, %221 : vector<1x128xi32>
    %223 = vector.broadcast %213 : vector<96x1xi32> to vector<96x128xi32>
    %224 = vector.broadcast %3 : vector<1x128xi32> to vector<96x128xi32>
    %225 = arith.cmpi eq, %223, %224 : vector<96x128xi32>
    %c0_i32_67 = arith.constant 0 : i32
    %226 = vector.broadcast %c0_i32_67 : i32 to vector<96x1xi32>
    %227 = arith.cmpi sge, %212, %226 : vector<96x1xi32>
    %228 = vector.broadcast %227 : vector<96x1xi1> to vector<96x128xi1>
    %229 = arith.andi %225, %228 : vector<96x128xi1>
    %c1_i32_68 = arith.constant 1 : i32
    %c0_i32_69 = arith.constant 0 : i32
    %230 = vector.broadcast %c1_i32_68 : i32 to vector<96x128xi32>
    %231 = vector.broadcast %c0_i32_69 : i32 to vector<96x128xi32>
    %232 = arith.select %229, %230, %231 : vector<96x128xi1>, vector<96x128xi32>
    %cst_70 = arith.constant dense<0> : vector<128xi32>
    %233 = vector.multi_reduction <add>, %232, %cst_70 [0] : vector<96x128xi32> to vector<128xi32>
    %234 = vector.shape_cast %233 : vector<128xi32> to vector<1x128xi32>
    %235 = arith.addi %211, %234 : vector<1x128xi32>
    %236 = vector.extract_strided_slice %4 {offsets = [0, 5], sizes = [96, 1], strides = [1, 1]} : vector<96x9xi32> to vector<96x1xi32>
    %237 = vector.extract_strided_slice %113 {offsets = [0, 5], sizes = [96, 1], strides = [1, 1]} : vector<96x9xi32> to vector<96x1xi32>
    %238 = vector.broadcast %236 : vector<96x1xi32> to vector<96x128xi32>
    %239 = vector.broadcast %3 : vector<1x128xi32> to vector<96x128xi32>
    %240 = arith.cmpi eq, %238, %239 : vector<96x128xi32>
    %c1_i32_71 = arith.constant 1 : i32
    %c0_i32_72 = arith.constant 0 : i32
    %241 = vector.broadcast %c1_i32_71 : i32 to vector<96x128xi32>
    %242 = vector.broadcast %c0_i32_72 : i32 to vector<96x128xi32>
    %243 = arith.select %240, %241, %242 : vector<96x128xi1>, vector<96x128xi32>
    %cst_73 = arith.constant dense<0> : vector<128xi32>
    %244 = vector.multi_reduction <add>, %243, %cst_73 [0] : vector<96x128xi32> to vector<128xi32>
    %245 = vector.shape_cast %244 : vector<128xi32> to vector<1x128xi32>
    %246 = arith.addi %222, %245 : vector<1x128xi32>
    %247 = vector.broadcast %237 : vector<96x1xi32> to vector<96x128xi32>
    %248 = vector.broadcast %3 : vector<1x128xi32> to vector<96x128xi32>
    %249 = arith.cmpi eq, %247, %248 : vector<96x128xi32>
    %c0_i32_74 = arith.constant 0 : i32
    %250 = vector.broadcast %c0_i32_74 : i32 to vector<96x1xi32>
    %251 = arith.cmpi sge, %236, %250 : vector<96x1xi32>
    %252 = vector.broadcast %251 : vector<96x1xi1> to vector<96x128xi1>
    %253 = arith.andi %249, %252 : vector<96x128xi1>
    %c1_i32_75 = arith.constant 1 : i32
    %c0_i32_76 = arith.constant 0 : i32
    %254 = vector.broadcast %c1_i32_75 : i32 to vector<96x128xi32>
    %255 = vector.broadcast %c0_i32_76 : i32 to vector<96x128xi32>
    %256 = arith.select %253, %254, %255 : vector<96x128xi1>, vector<96x128xi32>
    %cst_77 = arith.constant dense<0> : vector<128xi32>
    %257 = vector.multi_reduction <add>, %256, %cst_77 [0] : vector<96x128xi32> to vector<128xi32>
    %258 = vector.shape_cast %257 : vector<128xi32> to vector<1x128xi32>
    %259 = arith.addi %235, %258 : vector<1x128xi32>
    %260 = vector.extract_strided_slice %4 {offsets = [0, 6], sizes = [96, 1], strides = [1, 1]} : vector<96x9xi32> to vector<96x1xi32>
    %261 = vector.extract_strided_slice %113 {offsets = [0, 6], sizes = [96, 1], strides = [1, 1]} : vector<96x9xi32> to vector<96x1xi32>
    %262 = vector.broadcast %260 : vector<96x1xi32> to vector<96x128xi32>
    %263 = vector.broadcast %3 : vector<1x128xi32> to vector<96x128xi32>
    %264 = arith.cmpi eq, %262, %263 : vector<96x128xi32>
    %c1_i32_78 = arith.constant 1 : i32
    %c0_i32_79 = arith.constant 0 : i32
    %265 = vector.broadcast %c1_i32_78 : i32 to vector<96x128xi32>
    %266 = vector.broadcast %c0_i32_79 : i32 to vector<96x128xi32>
    %267 = arith.select %264, %265, %266 : vector<96x128xi1>, vector<96x128xi32>
    %cst_80 = arith.constant dense<0> : vector<128xi32>
    %268 = vector.multi_reduction <add>, %267, %cst_80 [0] : vector<96x128xi32> to vector<128xi32>
    %269 = vector.shape_cast %268 : vector<128xi32> to vector<1x128xi32>
    %270 = arith.addi %246, %269 : vector<1x128xi32>
    %271 = vector.broadcast %261 : vector<96x1xi32> to vector<96x128xi32>
    %272 = vector.broadcast %3 : vector<1x128xi32> to vector<96x128xi32>
    %273 = arith.cmpi eq, %271, %272 : vector<96x128xi32>
    %c0_i32_81 = arith.constant 0 : i32
    %274 = vector.broadcast %c0_i32_81 : i32 to vector<96x1xi32>
    %275 = arith.cmpi sge, %260, %274 : vector<96x1xi32>
    %276 = vector.broadcast %275 : vector<96x1xi1> to vector<96x128xi1>
    %277 = arith.andi %273, %276 : vector<96x128xi1>
    %c1_i32_82 = arith.constant 1 : i32
    %c0_i32_83 = arith.constant 0 : i32
    %278 = vector.broadcast %c1_i32_82 : i32 to vector<96x128xi32>
    %279 = vector.broadcast %c0_i32_83 : i32 to vector<96x128xi32>
    %280 = arith.select %277, %278, %279 : vector<96x128xi1>, vector<96x128xi32>
    %cst_84 = arith.constant dense<0> : vector<128xi32>
    %281 = vector.multi_reduction <add>, %280, %cst_84 [0] : vector<96x128xi32> to vector<128xi32>
    %282 = vector.shape_cast %281 : vector<128xi32> to vector<1x128xi32>
    %283 = arith.addi %259, %282 : vector<1x128xi32>
    %284 = vector.extract_strided_slice %4 {offsets = [0, 7], sizes = [96, 1], strides = [1, 1]} : vector<96x9xi32> to vector<96x1xi32>
    %285 = vector.extract_strided_slice %113 {offsets = [0, 7], sizes = [96, 1], strides = [1, 1]} : vector<96x9xi32> to vector<96x1xi32>
    %286 = vector.broadcast %284 : vector<96x1xi32> to vector<96x128xi32>
    %287 = vector.broadcast %3 : vector<1x128xi32> to vector<96x128xi32>
    %288 = arith.cmpi eq, %286, %287 : vector<96x128xi32>
    %c1_i32_85 = arith.constant 1 : i32
    %c0_i32_86 = arith.constant 0 : i32
    %289 = vector.broadcast %c1_i32_85 : i32 to vector<96x128xi32>
    %290 = vector.broadcast %c0_i32_86 : i32 to vector<96x128xi32>
    %291 = arith.select %288, %289, %290 : vector<96x128xi1>, vector<96x128xi32>
    %cst_87 = arith.constant dense<0> : vector<128xi32>
    %292 = vector.multi_reduction <add>, %291, %cst_87 [0] : vector<96x128xi32> to vector<128xi32>
    %293 = vector.shape_cast %292 : vector<128xi32> to vector<1x128xi32>
    %294 = arith.addi %270, %293 : vector<1x128xi32>
    %295 = vector.broadcast %285 : vector<96x1xi32> to vector<96x128xi32>
    %296 = vector.broadcast %3 : vector<1x128xi32> to vector<96x128xi32>
    %297 = arith.cmpi eq, %295, %296 : vector<96x128xi32>
    %c0_i32_88 = arith.constant 0 : i32
    %298 = vector.broadcast %c0_i32_88 : i32 to vector<96x1xi32>
    %299 = arith.cmpi sge, %284, %298 : vector<96x1xi32>
    %300 = vector.broadcast %299 : vector<96x1xi1> to vector<96x128xi1>
    %301 = arith.andi %297, %300 : vector<96x128xi1>
    %c1_i32_89 = arith.constant 1 : i32
    %c0_i32_90 = arith.constant 0 : i32
    %302 = vector.broadcast %c1_i32_89 : i32 to vector<96x128xi32>
    %303 = vector.broadcast %c0_i32_90 : i32 to vector<96x128xi32>
    %304 = arith.select %301, %302, %303 : vector<96x128xi1>, vector<96x128xi32>
    %cst_91 = arith.constant dense<0> : vector<128xi32>
    %305 = vector.multi_reduction <add>, %304, %cst_91 [0] : vector<96x128xi32> to vector<128xi32>
    %306 = vector.shape_cast %305 : vector<128xi32> to vector<1x128xi32>
    %307 = arith.addi %283, %306 : vector<1x128xi32>
    %308 = vector.extract_strided_slice %4 {offsets = [0, 8], sizes = [96, 1], strides = [1, 1]} : vector<96x9xi32> to vector<96x1xi32>
    %309 = vector.extract_strided_slice %113 {offsets = [0, 8], sizes = [96, 1], strides = [1, 1]} : vector<96x9xi32> to vector<96x1xi32>
    %310 = vector.broadcast %308 : vector<96x1xi32> to vector<96x128xi32>
    %311 = vector.broadcast %3 : vector<1x128xi32> to vector<96x128xi32>
    %312 = arith.cmpi eq, %310, %311 : vector<96x128xi32>
    %c1_i32_92 = arith.constant 1 : i32
    %c0_i32_93 = arith.constant 0 : i32
    %313 = vector.broadcast %c1_i32_92 : i32 to vector<96x128xi32>
    %314 = vector.broadcast %c0_i32_93 : i32 to vector<96x128xi32>
    %315 = arith.select %312, %313, %314 : vector<96x128xi1>, vector<96x128xi32>
    %cst_94 = arith.constant dense<0> : vector<128xi32>
    %316 = vector.multi_reduction <add>, %315, %cst_94 [0] : vector<96x128xi32> to vector<128xi32>
    %317 = vector.shape_cast %316 : vector<128xi32> to vector<1x128xi32>
    %318 = arith.addi %294, %317 : vector<1x128xi32>
    %319 = vector.broadcast %309 : vector<96x1xi32> to vector<96x128xi32>
    %320 = vector.broadcast %3 : vector<1x128xi32> to vector<96x128xi32>
    %321 = arith.cmpi eq, %319, %320 : vector<96x128xi32>
    %c0_i32_95 = arith.constant 0 : i32
    %322 = vector.broadcast %c0_i32_95 : i32 to vector<96x1xi32>
    %323 = arith.cmpi sge, %308, %322 : vector<96x1xi32>
    %324 = vector.broadcast %323 : vector<96x1xi1> to vector<96x128xi1>
    %325 = arith.andi %321, %324 : vector<96x128xi1>
    %c1_i32_96 = arith.constant 1 : i32
    %c0_i32_97 = arith.constant 0 : i32
    %326 = vector.broadcast %c1_i32_96 : i32 to vector<96x128xi32>
    %327 = vector.broadcast %c0_i32_97 : i32 to vector<96x128xi32>
    %328 = arith.select %325, %326, %327 : vector<96x128xi1>, vector<96x128xi32>
    %cst_98 = arith.constant dense<0> : vector<128xi32>
    %329 = vector.multi_reduction <add>, %328, %cst_98 [0] : vector<96x128xi32> to vector<128xi32>
    %330 = vector.shape_cast %329 : vector<128xi32> to vector<1x128xi32>
    %331 = arith.addi %307, %330 : vector<1x128xi32>
    %332 = tpu.iota {dimensions = array<i32: 0>} : vector<8x128xi32>
    %c0_i32_99 = arith.constant 0 : i32
    %333 = vector.broadcast %c0_i32_99 : i32 to vector<8x128xi32>
    %334 = arith.cmpi eq, %332, %333 : vector<8x128xi32>
    %c0_i32_100 = arith.constant 0 : i32
    %335 = vector.shape_cast %21 : vector<1x128xi32> to vector<1x128xi32>
    %336 = vector.broadcast %335 : vector<1x128xi32> to vector<8x128xi32>
    %337 = vector.broadcast %c0_i32_100 : i32 to vector<8x128xi32>
    %338 = arith.select %334, %336, %337 : vector<8x128xi1>, vector<8x128xi32>
    %c1_i32_101 = arith.constant 1 : i32
    %339 = vector.broadcast %c1_i32_101 : i32 to vector<8x128xi32>
    %340 = arith.cmpi eq, %332, %339 : vector<8x128xi32>
    %c0_i32_102 = arith.constant 0 : i32
    %341 = vector.shape_cast %318 : vector<1x128xi32> to vector<1x128xi32>
    %342 = vector.broadcast %341 : vector<1x128xi32> to vector<8x128xi32>
    %343 = vector.broadcast %c0_i32_102 : i32 to vector<8x128xi32>
    %344 = arith.select %340, %342, %343 : vector<8x128xi1>, vector<8x128xi32>
    %345 = arith.addi %338, %344 : vector<8x128xi32>
    %c2_i32_103 = arith.constant 2 : i32
    %346 = vector.broadcast %c2_i32_103 : i32 to vector<8x128xi32>
    %347 = arith.cmpi eq, %332, %346 : vector<8x128xi32>
    %c0_i32_104 = arith.constant 0 : i32
    %348 = vector.shape_cast %97 : vector<1x128xi32> to vector<1x128xi32>
    %349 = vector.broadcast %348 : vector<1x128xi32> to vector<8x128xi32>
    %350 = vector.broadcast %c0_i32_104 : i32 to vector<8x128xi32>
    %351 = arith.select %347, %349, %350 : vector<8x128xi1>, vector<8x128xi32>
    %352 = arith.addi %345, %351 : vector<8x128xi32>
    %c3_i32_105 = arith.constant 3 : i32
    %353 = vector.broadcast %c3_i32_105 : i32 to vector<8x128xi32>
    %354 = arith.cmpi eq, %332, %353 : vector<8x128xi32>
    %c0_i32_106 = arith.constant 0 : i32
    %355 = vector.shape_cast %331 : vector<1x128xi32> to vector<1x128xi32>
    %356 = vector.broadcast %355 : vector<1x128xi32> to vector<8x128xi32>
    %357 = vector.broadcast %c0_i32_106 : i32 to vector<8x128xi32>
    %358 = arith.select %354, %356, %357 : vector<8x128xi1>, vector<8x128xi32>
    %359 = arith.addi %352, %358 : vector<8x128xi32>
    %c0_107 = arith.constant 0 : index
    %c0_108 = arith.constant 0 : index
    %360 = vector.load %arg6[%c0_107, %c0_108] : memref<8x128xi32, #tpu.memory_space<vmem>>, vector<8x128xi32>
    %361 = arith.addi %360, %359 : vector<8x128xi32>
    %c0_109 = arith.constant 0 : index
    %c0_110 = arith.constant 0 : index
    %362 = vector.load %arg6[%c0_109, %c0_110] : memref<8x128xi32, #tpu.memory_space<vmem>>, vector<8x128xi32>
    tpu.vector_store %arg6[%c0_109, %c0_110], %361 {strides = array<i32>} : memref<8x128xi32, #tpu.memory_space<vmem>>, vector<8x128xi32>,
    %c0_i32_111 = arith.constant 0 : i32
    %363 = arith.cmpi eq, %arg0, %c0_i32_111 : i32
    %364 = arith.extui %363 : i1 to i32
    %c0_i32_112 = arith.constant 0 : i32
    %365 = arith.cmpi ne, %364, %c0_i32_112 : i32
    scf.if %365 {
      %c0_113 = arith.constant 0 : index
      %c0_114 = arith.constant 0 : index
      %366 = vector.load %arg6[%c0_113, %c0_114] : memref<8x128xi32, #tpu.memory_space<vmem>>, vector<8x128xi32>
      %367 = arith.sitofp %366 : vector<8x128xi32> to vector<8x128xf32>
      %368 = vector.extract_strided_slice %367 {offsets = [0, 0], sizes = [1, 128], strides = [1, 1]} : vector<8x128xf32> to vector<1x128xf32>
      %c0_i32_115 = arith.constant 0 : i32
      %369 = vector.broadcast %c0_i32_115 : i32 to vector<1x128xi32>
      %370 = arith.cmpi eq, %3, %369 : vector<1x128xi32>
      %cst_116 = arith.constant 2.400000e+01 : f32
      %cst_117 = arith.constant 0.000000e+00 : f32
      %371 = vector.broadcast %cst_116 : f32 to vector<1x128xf32>
      %372 = vector.broadcast %cst_117 : f32 to vector<1x128xf32>
      %373 = arith.select %370, %371, %372 : vector<1x128xi1>, vector<1x128xf32>
      %374 = arith.subf %368, %373 : vector<1x128xf32>
      %375 = vector.extract_strided_slice %367 {offsets = [1, 0], sizes = [1, 128], strides = [1, 1]} : vector<8x128xf32> to vector<1x128xf32>
      %376 = vector.extract_strided_slice %367 {offsets = [2, 0], sizes = [1, 128], strides = [1, 1]} : vector<8x128xf32> to vector<1x128xf32>
      %377 = vector.extract_strided_slice %367 {offsets = [3, 0], sizes = [1, 128], strides = [1, 1]} : vector<8x128xf32> to vector<1x128xf32>
      %378 = vector.shape_cast %374 : vector<1x128xf32> to vector<1x1x128xf32>
      %cst_118 = arith.constant dense<0.000000e+00> : vector<1xf32>
      %379 = vector.multi_reduction <add>, %378, %cst_118 [1, 2] : vector<1x1x128xf32> to vector<1xf32>
      %380 = vector.shape_cast %379 : vector<1xf32> to vector<1x1x1xf32>
      %381 = vector.extract %380[0, 0, 0] : f32 from vector<1x1x1xf32>
      %382 = vector.broadcast %381 : f32 to vector<1x1xf32>
      %cst_119 = arith.constant 0.000000e+00 : f32
      %383 = vector.broadcast %cst_119 : f32 to vector<1x1xf32>
      %384 = arith.cmpf ogt, %382, %383 : vector<1x1xf32>
      %cst_120 = arith.constant 1.000000e+00 : f32
      %385 = vector.broadcast %cst_120 : f32 to vector<1x1xf32>
      %386 = arith.select %384, %382, %385 : vector<1x1xi1>, vector<1x1xf32>
      %387 = vector.broadcast %386 : vector<1x1xf32> to vector<1x128xf32>
      %388 = arith.divf %374, %387 : vector<1x128xf32>
      %389 = vector.shape_cast %375 : vector<1x128xf32> to vector<1x1x128xf32>
      %cst_121 = arith.constant dense<0.000000e+00> : vector<1xf32>
      %390 = vector.multi_reduction <add>, %389, %cst_121 [1, 2] : vector<1x1x128xf32> to vector<1xf32>
      %391 = vector.shape_cast %390 : vector<1xf32> to vector<1x1x1xf32>
      %392 = vector.extract %391[0, 0, 0] : f32 from vector<1x1x1xf32>
      %393 = vector.broadcast %392 : f32 to vector<1x1xf32>
      %cst_122 = arith.constant 0.000000e+00 : f32
      %394 = vector.broadcast %cst_122 : f32 to vector<1x1xf32>
      %395 = arith.cmpf ogt, %393, %394 : vector<1x1xf32>
      %cst_123 = arith.constant 1.000000e+00 : f32
      %396 = vector.broadcast %cst_123 : f32 to vector<1x1xf32>
      %397 = arith.select %395, %393, %396 : vector<1x1xi1>, vector<1x1xf32>
      %398 = vector.broadcast %397 : vector<1x1xf32> to vector<1x128xf32>
      %399 = arith.divf %375, %398 : vector<1x128xf32>
      %400 = vector.shape_cast %376 : vector<1x128xf32> to vector<1x1x128xf32>
      %cst_124 = arith.constant dense<0.000000e+00> : vector<1xf32>
      %401 = vector.multi_reduction <add>, %400, %cst_124 [1, 2] : vector<1x1x128xf32> to vector<1xf32>
      %402 = vector.shape_cast %401 : vector<1xf32> to vector<1x1x1xf32>
      %403 = vector.extract %402[0, 0, 0] : f32 from vector<1x1x1xf32>
      %404 = vector.broadcast %403 : f32 to vector<1x1xf32>
      %cst_125 = arith.constant 0.000000e+00 : f32
      %405 = vector.broadcast %cst_125 : f32 to vector<1x1xf32>
      %406 = arith.cmpf ogt, %404, %405 : vector<1x1xf32>
      %cst_126 = arith.constant 1.000000e+00 : f32
      %407 = vector.broadcast %cst_126 : f32 to vector<1x1xf32>
      %408 = arith.select %406, %404, %407 : vector<1x1xi1>, vector<1x1xf32>
      %409 = vector.broadcast %408 : vector<1x1xf32> to vector<1x128xf32>
      %410 = arith.divf %376, %409 : vector<1x128xf32>
      %411 = vector.shape_cast %377 : vector<1x128xf32> to vector<1x1x128xf32>
      %cst_127 = arith.constant dense<0.000000e+00> : vector<1xf32>
      %412 = vector.multi_reduction <add>, %411, %cst_127 [1, 2] : vector<1x1x128xf32> to vector<1xf32>
      %413 = vector.shape_cast %412 : vector<1xf32> to vector<1x1x1xf32>
      %414 = vector.extract %413[0, 0, 0] : f32 from vector<1x1x1xf32>
      %415 = vector.broadcast %414 : f32 to vector<1x1xf32>
      %cst_128 = arith.constant 0.000000e+00 : f32
      %416 = vector.broadcast %cst_128 : f32 to vector<1x1xf32>
      %417 = arith.cmpf ogt, %415, %416 : vector<1x1xf32>
      %cst_129 = arith.constant 1.000000e+00 : f32
      %418 = vector.broadcast %cst_129 : f32 to vector<1x1xf32>
      %419 = arith.select %417, %415, %418 : vector<1x1xi1>, vector<1x1xf32>
      %420 = vector.broadcast %419 : vector<1x1xf32> to vector<1x128xf32>
      %421 = arith.divf %377, %420 : vector<1x128xf32>
      %c0_130 = arith.constant 0 : index
      %c0_131 = arith.constant 0 : index
      %422 = vector.load %arg4[%c0_130, %c0_131] : memref<4x128xf32, #tpu.memory_space<vmem>>, vector<4x128xf32>
      %423 = vector.extract_strided_slice %422 {offsets = [0, 0], sizes = [1, 128], strides = [1, 1]} : vector<4x128xf32> to vector<1x128xf32>
      %424 = arith.subf %388, %423 : vector<1x128xf32>
      %425 = math.absf %424 : vector<1x128xf32>
      %426 = vector.shape_cast %425 : vector<1x128xf32> to vector<1x1x128xf32>
      %cst_132 = arith.constant dense<0.000000e+00> : vector<1xf32>
      %427 = vector.multi_reduction <add>, %426, %cst_132 [1, 2] : vector<1x1x128xf32> to vector<1xf32>
      %428 = vector.shape_cast %427 : vector<1xf32> to vector<1x1x1xf32>
      %429 = vector.extract %428[0, 0, 0] : f32 from vector<1x1x1xf32>
      %430 = vector.broadcast %429 : f32 to vector<1x1xf32>
      %cst_133 = arith.constant 1.000000e-01 : f32
      %431 = vector.broadcast %cst_133 : f32 to vector<1x1xf32>
      %432 = arith.mulf %430, %431 : vector<1x1xf32>
      %433 = vector.extract_strided_slice %422 {offsets = [1, 0], sizes = [1, 128], strides = [1, 1]} : vector<4x128xf32> to vector<1x128xf32>
      %434 = arith.subf %399, %433 : vector<1x128xf32>
      %435 = math.absf %434 : vector<1x128xf32>
      %436 = vector.shape_cast %435 : vector<1x128xf32> to vector<1x1x128xf32>
      %cst_134 = arith.constant dense<0.000000e+00> : vector<1xf32>
      %437 = vector.multi_reduction <add>, %436, %cst_134 [1, 2] : vector<1x1x128xf32> to vector<1xf32>
      %438 = vector.shape_cast %437 : vector<1xf32> to vector<1x1x1xf32>
      %439 = vector.extract %438[0, 0, 0] : f32 from vector<1x1x1xf32>
      %440 = vector.broadcast %439 : f32 to vector<1x1xf32>
      %cst_135 = arith.constant 2.500000e-01 : f32
      %441 = vector.broadcast %cst_135 : f32 to vector<1x1xf32>
      %442 = arith.mulf %440, %441 : vector<1x1xf32>
      %443 = vector.extract_strided_slice %422 {offsets = [2, 0], sizes = [1, 128], strides = [1, 1]} : vector<4x128xf32> to vector<1x128xf32>
      %444 = arith.subf %410, %443 : vector<1x128xf32>
      %445 = math.absf %444 : vector<1x128xf32>
      %446 = vector.shape_cast %445 : vector<1x128xf32> to vector<1x1x128xf32>
      %cst_136 = arith.constant dense<0.000000e+00> : vector<1xf32>
      %447 = vector.multi_reduction <add>, %446, %cst_136 [1, 2] : vector<1x1x128xf32> to vector<1xf32>
      %448 = vector.shape_cast %447 : vector<1xf32> to vector<1x1x1xf32>
      %449 = vector.extract %448[0, 0, 0] : f32 from vector<1x1x1xf32>
      %450 = vector.broadcast %449 : f32 to vector<1x1xf32>
      %cst_137 = arith.constant 2.000000e-01 : f32
      %451 = vector.broadcast %cst_137 : f32 to vector<1x1xf32>
      %452 = arith.mulf %450, %451 : vector<1x1xf32>
      %453 = vector.extract_strided_slice %422 {offsets = [3, 0], sizes = [1, 128], strides = [1, 1]} : vector<4x128xf32> to vector<1x128xf32>
      %454 = arith.subf %421, %453 : vector<1x128xf32>
      %455 = math.absf %454 : vector<1x128xf32>
      %456 = vector.shape_cast %455 : vector<1x128xf32> to vector<1x1x128xf32>
      %cst_138 = arith.constant dense<0.000000e+00> : vector<1xf32>
      %457 = vector.multi_reduction <add>, %456, %cst_138 [1, 2] : vector<1x1x128xf32> to vector<1xf32>
      %458 = vector.shape_cast %457 : vector<1xf32> to vector<1x1x1xf32>
      %459 = vector.extract %458[0, 0, 0] : f32 from vector<1x1x1xf32>
      %460 = vector.broadcast %459 : f32 to vector<1x1xf32>
      %cst_139 = arith.constant 4.000000e-02 : f32
      %461 = vector.broadcast %cst_139 : f32 to vector<1x1xf32>
      %462 = arith.mulf %460, %461 : vector<1x1xf32>
      %cst_140 = arith.constant 0.000000e+00 : f32
      %463 = vector.broadcast %cst_140 : f32 to vector<1x128xf32>
      %c0_i32_141 = arith.constant 0 : i32
      %464 = vector.broadcast %c0_i32_141 : i32 to vector<1x128xi32>
      %465 = arith.cmpi eq, %3, %464 : vector<1x128xi32>
      %466 = vector.shape_cast %432 : vector<1x1xf32> to vector<1x1xf32>
      %467 = vector.broadcast %466 : vector<1x1xf32> to vector<1x128xf32>
      %468 = arith.select %465, %467, %463 : vector<1x128xi1>, vector<1x128xf32>
      %c1_i32_142 = arith.constant 1 : i32
      %469 = vector.broadcast %c1_i32_142 : i32 to vector<1x128xi32>
      %470 = arith.cmpi eq, %3, %469 : vector<1x128xi32>
      %471 = vector.shape_cast %442 : vector<1x1xf32> to vector<1x1xf32>
      %472 = vector.broadcast %471 : vector<1x1xf32> to vector<1x128xf32>
      %473 = arith.select %470, %472, %468 : vector<1x128xi1>, vector<1x128xf32>
      %c2_i32_143 = arith.constant 2 : i32
      %474 = vector.broadcast %c2_i32_143 : i32 to vector<1x128xi32>
      %475 = arith.cmpi eq, %3, %474 : vector<1x128xi32>
      %476 = vector.shape_cast %452 : vector<1x1xf32> to vector<1x1xf32>
      %477 = vector.broadcast %476 : vector<1x1xf32> to vector<1x128xf32>
      %478 = arith.select %475, %477, %473 : vector<1x128xi1>, vector<1x128xf32>
      %c3_i32_144 = arith.constant 3 : i32
      %479 = vector.broadcast %c3_i32_144 : i32 to vector<1x128xi32>
      %480 = arith.cmpi eq, %3, %479 : vector<1x128xi32>
      %481 = vector.shape_cast %462 : vector<1x1xf32> to vector<1x1xf32>
      %482 = vector.broadcast %481 : vector<1x1xf32> to vector<1x128xf32>
      %483 = arith.select %480, %482, %478 : vector<1x128xi1>, vector<1x128xf32>
      %484 = tpu.iota {dimensions = array<i32: 0>} : vector<8x128xi32>
      %c0_i32_145 = arith.constant 0 : i32
      %485 = vector.broadcast %c0_i32_145 : i32 to vector<8x128xi32>
      %486 = arith.cmpi eq, %484, %485 : vector<8x128xi32>
      %cst_146 = arith.constant 0.000000e+00 : f32
      %487 = vector.shape_cast %388 : vector<1x128xf32> to vector<1x128xf32>
      %488 = vector.broadcast %487 : vector<1x128xf32> to vector<8x128xf32>
      %489 = vector.broadcast %cst_146 : f32 to vector<8x128xf32>
      %490 = arith.select %486, %488, %489 : vector<8x128xi1>, vector<8x128xf32>
      %c1_i32_147 = arith.constant 1 : i32
      %491 = vector.broadcast %c1_i32_147 : i32 to vector<8x128xi32>
      %492 = arith.cmpi eq, %484, %491 : vector<8x128xi32>
      %cst_148 = arith.constant 0.000000e+00 : f32
      %493 = vector.shape_cast %399 : vector<1x128xf32> to vector<1x128xf32>
      %494 = vector.broadcast %493 : vector<1x128xf32> to vector<8x128xf32>
      %495 = vector.broadcast %cst_148 : f32 to vector<8x128xf32>
      %496 = arith.select %492, %494, %495 : vector<8x128xi1>, vector<8x128xf32>
      %497 = arith.addf %490, %496 : vector<8x128xf32>
      %c2_i32_149 = arith.constant 2 : i32
      %498 = vector.broadcast %c2_i32_149 : i32 to vector<8x128xi32>
      %499 = arith.cmpi eq, %484, %498 : vector<8x128xi32>
      %cst_150 = arith.constant 0.000000e+00 : f32
      %500 = vector.shape_cast %410 : vector<1x128xf32> to vector<1x128xf32>
      %501 = vector.broadcast %500 : vector<1x128xf32> to vector<8x128xf32>
      %502 = vector.broadcast %cst_150 : f32 to vector<8x128xf32>
      %503 = arith.select %499, %501, %502 : vector<8x128xi1>, vector<8x128xf32>
      %504 = arith.addf %497, %503 : vector<8x128xf32>
      %c3_i32_151 = arith.constant 3 : i32
      %505 = vector.broadcast %c3_i32_151 : i32 to vector<8x128xi32>
      %506 = arith.cmpi eq, %484, %505 : vector<8x128xi32>
      %cst_152 = arith.constant 0.000000e+00 : f32
      %507 = vector.shape_cast %421 : vector<1x128xf32> to vector<1x128xf32>
      %508 = vector.broadcast %507 : vector<1x128xf32> to vector<8x128xf32>
      %509 = vector.broadcast %cst_152 : f32 to vector<8x128xf32>
      %510 = arith.select %506, %508, %509 : vector<8x128xi1>, vector<8x128xf32>
      %511 = arith.addf %504, %510 : vector<8x128xf32>
      %c4_i32_153 = arith.constant 4 : i32
      %512 = vector.broadcast %c4_i32_153 : i32 to vector<8x128xi32>
      %513 = arith.cmpi eq, %484, %512 : vector<8x128xi32>
      %cst_154 = arith.constant 0.000000e+00 : f32
      %514 = vector.shape_cast %483 : vector<1x128xf32> to vector<1x128xf32>
      %515 = vector.broadcast %514 : vector<1x128xf32> to vector<8x128xf32>
      %516 = vector.broadcast %cst_154 : f32 to vector<8x128xf32>
      %517 = arith.select %513, %515, %516 : vector<8x128xi1>, vector<8x128xf32>
      %518 = arith.addf %511, %517 : vector<8x128xf32>
      %c0_155 = arith.constant 0 : index
      %c0_156 = arith.constant 0 : index
      %519 = vector.load %arg5[%c0_155, %c0_156] : memref<8x128xf32, #tpu.memory_space<vmem>>, vector<8x128xf32>
      tpu.vector_store %arg5[%c0_155, %c0_156], %518 {strides = array<i32>} : memref<8x128xf32, #tpu.memory_space<vmem>>, vector<8x128xf32>,
    } else {
    }
    return
  }
  func.func @transform_0(%arg0: i32) -> (i32, i32) {
    %c0_i32 = arith.constant 0 : i32
    %c0_i32_0 = arith.constant 0 : i32
    return %arg0, %c0_i32 : i32, i32
  }
  func.func @transform_1(%arg0: i32) -> (i32, i32) {
    %c0_i32 = arith.constant 0 : i32
    %c0_i32_0 = arith.constant 0 : i32
    return %arg0, %c0_i32 : i32, i32
  }
  func.func @transform_2(%arg0: i32) -> (i32, i32) {
    %c0_i32 = arith.constant 0 : i32
    %c0_i32_0 = arith.constant 0 : i32
    %c0_i32_1 = arith.constant 0 : i32
    return %c0_i32, %c0_i32_0 : i32, i32
  }
  func.func @transform_3(%arg0: i32) -> (i32, i32) {
    %c0_i32 = arith.constant 0 : i32
    %c0_i32_0 = arith.constant 0 : i32
    %c0_i32_1 = arith.constant 0 : i32
    return %c0_i32, %c0_i32_0 : i32, i32
  }
  func.func @transform_4(%arg0: i32) -> (i32, i32) {
    %c0_i32 = arith.constant 0 : i32
    %c0_i32_0 = arith.constant 0 : i32
    %c0_i32_1 = arith.constant 0 : i32
    return %c0_i32, %c0_i32_0 : i32, i32
  }
}

</mosaic_0001>

<llo_original>
// kernel: tpu_custom_call.1
$region0: #{tpu_custom_call.1}
  #allocation0 [shape = 'u32[]', space=smem, size = 0x4, offset = 0x4, fixed_abs, tag = 'smem constant byte address 0x4 - core index']
  #allocation1 [shape = 'u32[144,128]{1,0:T(1,128)}', space=vmem, size = 0x12000, scoped, tag = 'internal scratch']
  #allocation2 [shape = 's32[8,128]{1,0:T(8,128)}', space=vmem, size = 0x1000, scoped, tag = 'scratch operand']
  %s0 = inlined_call_operand.vmem [shape: s32[96,9], index: 0, kind: input, shape index: {}]
  %s1 = inlined_call_operand.vmem [shape: s8[96,128], index: 1, kind: input, shape index: {}]
  %s2 = inlined_call_operand.vmem [shape: bf16[128,9], index: 2, kind: input, shape index: {}]
  %s3 = inlined_call_operand.vmem [shape: f32[4,128], index: 3, kind: input, shape index: {}]
  %s4 = inlined_call_operand.hbm [shape: f32[8,128], index: 4, kind: output, shape index: {}]
  %s5 = sld [smem:[#allocation0]]
  $region34: #{tpu_custom_call.1} parent=0
    _
  %s7 = ssub.s32 1, %s5
  %s8 = scalar_select 0, %s7, %s5
  $region1: #{tpu_custom_call.1} parent=0
    #allocation3 [shape = 'u8[4096]{0}', space=vmem, size = 0x1000, scoped, tag = 'output window, operand 0, single buffered']
    #allocation4 [shape = 's32[1]{0}', space=sflag, size = 0x4, scoped, tag = 'scoped memory for tpu_custom_call.1']
    %9 = vsyncpa [#allocation4], 0
    // Predicated region
    $region2: #{tpu_custom_call.1} parent=1 // pred_check
      _
    $region3: #{tpu_custom_call.1} parent=1 // pred_check_branch
      %11 = sbr.rel (0) target = $region5
    $region4: #{tpu_custom_call.1} parent=1 // pred_region
      _
    $region5: #{tpu_custom_call.1} parent=1 // pred_fallthru
      _
    // Predicated region
    $region6: #{tpu_custom_call.1} parent=1 // pred_check
      _
    $region7: #{tpu_custom_call.1} parent=1 // pred_check_branch
      %13 = sbr.rel (0) target = $region9
    $region8: #{tpu_custom_call.1} parent=1 // pred_region
      _
    $region9: #{tpu_custom_call.1} parent=1 // pred_fallthru
      _
    // Predicated region
    $region10: #{tpu_custom_call.1} parent=1 // pred_check
      _
    $region11: #{tpu_custom_call.1} parent=1 // pred_check_branch
      %15 = sbr.rel (0) target = $region13
    $region12: #{tpu_custom_call.1} parent=1 // pred_region
      _
    $region13: #{tpu_custom_call.1} parent=1 // pred_fallthru
      _
    // Predicated region
    $region14: #{tpu_custom_call.1} parent=1 // pred_check
      _
    $region15: #{tpu_custom_call.1} parent=1 // pred_check_branch
      %17 = sbr.rel (0) target = $region17
    $region16: #{tpu_custom_call.1} parent=1 // pred_region
      _
    $region17: #{tpu_custom_call.1} parent=1 // pred_fallthru
      _
    %p19 = scmp.eq.s32.totalorder 0, 0
    // Predicated region
    $region18: #{tpu_custom_call.1} parent=1 // pred_check
      %p20 = pneg %p19
    $region19: #{tpu_custom_call.1} parent=1 // pred_check_branch
      %22 = sbr.rel (%p20) target = $region21
    $region20: #{tpu_custom_call.1} parent=1 // pred_region
      %23 = vst [vmem:[#allocation2] sm:$0xff] 0
      %24 = vst [vmem:[#allocation3] sm:$0xff] 0.0
    $region21: #{tpu_custom_call.1} parent=1 // pred_fallthru
      _
    %v25 = vlaneseq
    %v26 = vand.u32 %v25, 127
    %v27 = vld [vmem:[%s0] sm:$0xff]
    %v28 = vld [vmem:[%s0 + $0x8] sm:$0xff]
    %v29 = vld [vmem:[%s0 + $0x10] sm:$0xff]
    %v30 = vld [vmem:[%s0 + $0x18] sm:$0xff]
    %v31 = vld [vmem:[%s0 + $0x20] sm:$0xff]
    %v32 = vld [vmem:[%s0 + $0x28] sm:$0xff]
    %v33 = vld [vmem:[%s0 + $0x30] sm:$0xff]
    %v34 = vld [vmem:[%s0 + $0x38] sm:$0xff]
    %v35 = vld [vmem:[%s0 + $0x40] sm:$0xff]
    %v36 = vld [vmem:[%s0 + $0x48] sm:$0xff]
    %v37 = vld [vmem:[%s0 + $0x50] sm:$0xff]
    %v38 = vld [vmem:[%s0 + $0x58] sm:$0xff]
    %v39 = vld [vmem:[%s1] sm:$0xff]
    %v40 = vld [vmem:[%s1 + $0x8] sm:$0xff]
    %v41 = vld [vmem:[%s1 + $0x10] sm:$0xff]
    %v42 = vunpack.c.0.s8 %v39
    %v43 = vunpack.c.1.s8 %v39
    %v44 = vunpack.c.2.s8 %v39
    %v45 = vunpack.c.3.s8 %v39
    %v46 = vunpack.c.0.s8 %v40
    %v47 = vunpack.c.1.s8 %v40
    %v48 = vunpack.c.2.s8 %v40
    %v49 = vunpack.c.3.s8 %v40
    %v50 = vunpack.c.0.s8 %v41
    %v51 = vunpack.c.1.s8 %v41
    %v52 = vunpack.c.2.s8 %v41
    %v53 = vunpack.c.3.s8 %v41
    %vm54 = vcmp.ge.s32.totalorder %v27, 0
    %vm55 = vcmp.ge.s32.totalorder %v28, 0
    %vm56 = vcmp.ge.s32.totalorder %v29, 0
    %vm57 = vcmp.ge.s32.totalorder %v30, 0
    %vm58 = vcmp.ge.s32.totalorder %v31, 0
    %vm59 = vcmp.ge.s32.totalorder %v32, 0
    %vm60 = vcmp.ge.s32.totalorder %v33, 0
    %vm61 = vcmp.ge.s32.totalorder %v34, 0
    %vm62 = vcmp.ge.s32.totalorder %v35, 0
    %vm63 = vcmp.ge.s32.totalorder %v36, 0
    %vm64 = vcmp.ge.s32.totalorder %v37, 0
    %vm65 = vcmp.ge.s32.totalorder %v38, 0
    %v66 = vsel %vm54, 1, 0
    %v67 = vsel %vm55, 1, 0
    %v68 = vsel %vm56, 1, 0
    %v69 = vsel %vm57, 1, 0
    %v70 = vsel %vm58, 1, 0
    %v71 = vsel %vm59, 1, 0
    %v72 = vsel %vm60, 1, 0
    %v73 = vsel %vm61, 1, 0
    %v74 = vsel %vm62, 1, 0
    %v75 = vsel %vm63, 1, 0
    %v76 = vsel %vm64, 1, 0
    %v77 = vsel %vm65, 1, 0
    %vm78 = vcmask 72704
    %v79 = vsel %vm78, %v66, 0
    %v80 = vand.u32 %v79, 65535
    %v81 = vshrl.u32 %v79, 16
    %v82 = vcvt.s32.f32 %v80
    %v83 = vcvt.s32.f32 %v81
    %84 = vadd.xlane.f32.xlu0 %v82
    %v85 = vpop.xlane.xlu0 %84
    %86 = vadd.xlane.f32.xlu0 %v83
    %v87 = vpop.xlane.xlu0 %86
    %v88 = vcvt.f32.s32 %v85
    %v89 = vcvt.f32.s32 %v87
    %v90 = vshll.u32 %v89, 16
    %v91 = vadd.s32 %v90, %v88
    %v92 = vsel %vm78, %v67, 0
    %v93 = vand.u32 %v92, 65535
    %v94 = vshrl.u32 %v92, 16
    %v95 = vcvt.s32.f32 %v93
    %v96 = vcvt.s32.f32 %v94
    %97 = vadd.xlane.f32.xlu0 %v95
    %v98 = vpop.xlane.xlu0 %97
    %99 = vadd.xlane.f32.xlu0 %v96
    %v100 = vpop.xlane.xlu0 %99
    %v101 = vcvt.f32.s32 %v98
    %v102 = vcvt.f32.s32 %v100
    %v103 = vshll.u32 %v102, 16
    %v104 = vadd.s32 %v103, %v101
    %v105 = vsel %vm78, %v68, 0
    %v106 = vand.u32 %v105, 65535
    %v107 = vshrl.u32 %v105, 16
    %v108 = vcvt.s32.f32 %v106
    %v109 = vcvt.s32.f32 %v107
    %110 = vadd.xlane.f32.xlu0 %v108
    %v111 = vpop.xlane.xlu0 %110
    %112 = vadd.xlane.f32.xlu0 %v109
    %v113 = vpop.xlane.xlu0 %112
    %v114 = vcvt.f32.s32 %v111
    %v115 = vcvt.f32.s32 %v113
    %v116 = vshll.u32 %v115, 16
    %v117 = vadd.s32 %v116, %v114
    %v118 = vsel %vm78, %v69, 0
    %v119 = vand.u32 %v118, 65535
    %v120 = vshrl.u32 %v118, 16
    %v121 = vcvt.s32.f32 %v119
    %v122 = vcvt.s32.f32 %v120
    %123 = vadd.xlane.f32.xlu0 %v121
    %v124 = vpop.xlane.xlu0 %123
    %125 = vadd.xlane.f32.xlu0 %v122
    %v126 = vpop.xlane.xlu0 %125
    %v127 = vcvt.f32.s32 %v124
    %v128 = vcvt.f32.s32 %v126
    %v129 = vshll.u32 %v128, 16
    %v130 = vadd.s32 %v129, %v127
    %v131 = vsel %vm78, %v70, 0
    %v132 = vand.u32 %v131, 65535
    %v133 = vshrl.u32 %v131, 16
    %v134 = vcvt.s32.f32 %v132
    %v135 = vcvt.s32.f32 %v133
    %136 = vadd.xlane.f32.xlu0 %v134
    %v137 = vpop.xlane.xlu0 %136
    %138 = vadd.xlane.f32.xlu0 %v135
    %v139 = vpop.xlane.xlu0 %138
    %v140 = vcvt.f32.s32 %v137
    %v141 = vcvt.f32.s32 %v139
    %v142 = vshll.u32 %v141, 16
    %v143 = vadd.s32 %v142, %v140
    %v144 = vsel %vm78, %v71, 0
    %v145 = vand.u32 %v144, 65535
    %v146 = vshrl.u32 %v144, 16
    %v147 = vcvt.s32.f32 %v145
    %v148 = vcvt.s32.f32 %v146
    %149 = vadd.xlane.f32.xlu0 %v147
    %v150 = vpop.xlane.xlu0 %149
    %151 = vadd.xlane.f32.xlu0 %v148
    %v152 = vpop.xlane.xlu0 %151
    %v153 = vcvt.f32.s32 %v150
    %v154 = vcvt.f32.s32 %v152
    %v155 = vshll.u32 %v154, 16
    %v156 = vadd.s32 %v155, %v153
    %v157 = vsel %vm78, %v72, 0
    %v158 = vand.u32 %v157, 65535
    %v159 = vshrl.u32 %v157, 16
    %v160 = vcvt.s32.f32 %v158
    %v161 = vcvt.s32.f32 %v159
    %162 = vadd.xlane.f32.xlu0 %v160
    %v163 = vpop.xlane.xlu0 %162
    %164 = vadd.xlane.f32.xlu0 %v161
    %v165 = vpop.xlane.xlu0 %164
    %v166 = vcvt.f32.s32 %v163
    %v167 = vcvt.f32.s32 %v165
    %v168 = vshll.u32 %v167, 16
    %v169 = vadd.s32 %v168, %v166
    %v170 = vsel %vm78, %v73, 0
    %v171 = vand.u32 %v170, 65535
    %v172 = vshrl.u32 %v170, 16
    %v173 = vcvt.s32.f32 %v171
    %v174 = vcvt.s32.f32 %v172
    %175 = vadd.xlane.f32.xlu0 %v173
    %v176 = vpop.xlane.xlu0 %175
    %177 = vadd.xlane.f32.xlu0 %v174
    %v178 = vpop.xlane.xlu0 %177
    %v179 = vcvt.f32.s32 %v176
    %v180 = vcvt.f32.s32 %v178
    %v181 = vshll.u32 %v180, 16
    %v182 = vadd.s32 %v181, %v179
    %v183 = vsel %vm78, %v74, 0
    %v184 = vand.u32 %v183, 65535
    %v185 = vshrl.u32 %v183, 16
    %v186 = vcvt.s32.f32 %v184
    %v187 = vcvt.s32.f32 %v185
    %188 = vadd.xlane.f32.xlu0 %v186
    %v189 = vpop.xlane.xlu0 %188
    %190 = vadd.xlane.f32.xlu0 %v187
    %v191 = vpop.xlane.xlu0 %190
    %v192 = vcvt.f32.s32 %v189
    %v193 = vcvt.f32.s32 %v191
    %v194 = vshll.u32 %v193, 16
    %v195 = vadd.s32 %v194, %v192
    %v196 = vsel %vm78, %v75, 0
    %v197 = vand.u32 %v196, 65535
    %v198 = vshrl.u32 %v196, 16
    %v199 = vcvt.s32.f32 %v197
    %v200 = vcvt.s32.f32 %v198
    %201 = vadd.xlane.f32.xlu0 %v199
    %v202 = vpop.xlane.xlu0 %201
    %203 = vadd.xlane.f32.xlu0 %v200
    %v204 = vpop.xlane.xlu0 %203
    %v205 = vcvt.f32.s32 %v202
    %v206 = vcvt.f32.s32 %v204
    %v207 = vshll.u32 %v206, 16
    %v208 = vadd.s32 %v207, %v205
    %v209 = vsel %vm78, %v76, 0
    %v210 = vand.u32 %v209, 65535
    %v211 = vshrl.u32 %v209, 16
    %v212 = vcvt.s32.f32 %v210
    %v213 = vcvt.s32.f32 %v211
    %214 = vadd.xlane.f32.xlu0 %v212
    %v215 = vpop.xlane.xlu0 %214
    %216 = vadd.xlane.f32.xlu0 %v213
    %v217 = vpop.xlane.xlu0 %216
    %v218 = vcvt.f32.s32 %v215
    %v219 = vcvt.f32.s32 %v217
    %v220 = vshll.u32 %v219, 16
    %v221 = vadd.s32 %v220, %v218
    %v222 = vsel %vm78, %v77, 0
    %v223 = vand.u32 %v222, 65535
    %v224 = vshrl.u32 %v222, 16
    %v225 = vcvt.s32.f32 %v223
    %v226 = vcvt.s32.f32 %v224
    %227 = vadd.xlane.f32.xlu0 %v225
    %v228 = vpop.xlane.xlu0 %227
    %229 = vadd.xlane.f32.xlu0 %v226
    %v230 = vpop.xlane.xlu0 %229
    %v231 = vcvt.f32.s32 %v228
    %v232 = vcvt.f32.s32 %v230
    %v233 = vshll.u32 %v232, 16
    %v234 = vadd.s32 %v233, %v231
    %vm235 = vcmp.eq.s32.totalorder %v91, %v26
    %vm236 = vcmp.eq.s32.totalorder %v104, %v26
    %vm237 = vcmp.eq.s32.totalorder %v117, %v26
    %vm238 = vcmp.eq.s32.totalorder %v130, %v26
    %vm239 = vcmp.eq.s32.totalorder %v143, %v26
    %vm240 = vcmp.eq.s32.totalorder %v156, %v26
    %vm241 = vcmp.eq.s32.totalorder %v169, %v26
    %vm242 = vcmp.eq.s32.totalorder %v182, %v26
    %vm243 = vcmp.eq.s32.totalorder %v195, %v26
    %vm244 = vcmp.eq.s32.totalorder %v208, %v26
    %vm245 = vcmp.eq.s32.totalorder %v221, %v26
    %vm246 = vcmp.eq.s32.totalorder %v234, %v26
    %v247 = vsel %vm235, 1, 0
    %v248 = vsel %vm236, 1, 0
    %v249 = vsel %vm237, 1, 0
    %v250 = vsel %vm238, 1, 0
    %v251 = vsel %vm239, 1, 0
    %v252 = vsel %vm240, 1, 0
    %v253 = vsel %vm241, 1, 0
    %v254 = vsel %vm242, 1, 0
    %v255 = vsel %vm243, 1, 0
    %v256 = vsel %vm244, 1, 0
    %v257 = vsel %vm245, 1, 0
    %v258 = vsel %vm246, 1, 0
    %v259 = vadd.s32 %v247, %v251
    %v260 = vadd.s32 %v248, %v252
    %v261 = vadd.s32 %v249, %v253
    %v262 = vadd.s32 %v250, %v254
    %v263 = vadd.s32 %v259, %v255
    %v264 = vadd.s32 %v260, %v256
    %v265 = vadd.s32 %v261, %v257
    %v266 = vadd.s32 %v262, %v258
    %v267 = vadd.s32 %v263, %v264
    %v268 = vadd.s32 %v265, %v266
    %v269 = vadd.s32 %v267, %v268
    %v270 = vrot.slane %v269, 4
    %v271 = vadd.s32 %v269, %v270
    %v272 = vrot.slane %v271, 2
    %v273 = vadd.s32 %v271, %v272
    %v274 = vrot.slane %v273, 1
    %v275 = vadd.s32 %v273, %v274
    %vm276 = vcmp.eq.s32.totalorder %v42, 16
    %vm277 = vcmp.eq.s32.totalorder %v43, 16
    %vm278 = vcmp.eq.s32.totalorder %v44, 16
    %vm279 = vcmp.eq.s32.totalorder %v45, 16
    %vm280 = vcmp.eq.s32.totalorder %v46, 16
    %vm281 = vcmp.eq.s32.totalorder %v47, 16
    %vm282 = vcmp.eq.s32.totalorder %v48, 16
    %vm283 = vcmp.eq.s32.totalorder %v49, 16
    %vm284 = vcmp.eq.s32.totalorder %v50, 16
    %vm285 = vcmp.eq.s32.totalorder %v51, 16
    %vm286 = vcmp.eq.s32.totalorder %v52, 16
    %vm287 = vcmp.eq.s32.totalorder %v53, 16
    %v288 = vsel %vm276, 1, 0
    %v289 = vsel %vm277, 1, 0
    %v290 = vsel %vm278, 1, 0
    %v291 = vsel %vm279, 1, 0
    %v292 = vsel %vm280, 1, 0
    %v293 = vsel %vm281, 1, 0
    %v294 = vsel %vm282, 1, 0
    %v295 = vsel %vm283, 1, 0
    %v296 = vsel %vm284, 1, 0
    %v297 = vsel %vm285, 1, 0
    %v298 = vsel %vm286, 1, 0
    %v299 = vsel %vm287, 1, 0
    %v300 = vadd.s32 %v288, %v292
    %v301 = vadd.s32 %v289, %v293
    %v302 = vadd.s32 %v290, %v294
    %v303 = vadd.s32 %v291, %v295
    %v304 = vadd.s32 %v300, %v296
    %v305 = vadd.s32 %v301, %v297
    %v306 = vadd.s32 %v302, %v298
    %v307 = vadd.s32 %v303, %v299
    %v308 = vadd.s32 %v304, %v305
    %v309 = vadd.s32 %v306, %v307
    %v310 = vadd.s32 %v308, %v309
    %v311 = vand.u32 %v310, 65535
    %v312 = vshrl.u32 %v310, 16
    %v313 = vcvt.s32.f32 %v311
    %v314 = vcvt.s32.f32 %v312
    %315 = vadd.xlane.f32.xlu0 %v313
    %v316 = vpop.xlane.xlu0 %315
    %317 = vadd.xlane.f32.xlu0 %v314
    %v318 = vpop.xlane.xlu0 %317
    %v319 = vcvt.f32.s32 %v316
    %v320 = vcvt.f32.s32 %v318
    %v321 = vshll.u32 %v320, 16
    %v322 = vadd.s32 %v321, %v319
    %v323 = vrot.slane %v322, 4
    %v324 = vadd.s32 %v322, %v323
    %v325 = vrot.slane %v324, 2
    %v326 = vadd.s32 %v324, %v325
    %v327 = vrot.slane %v326, 1
    %v328 = vadd.s32 %v326, %v327
    %s329 = vtos %v328
    %vm330 = vcmp.eq.s32.totalorder %v26, 0
    %v331 = vstv %s329
    %v332 = vsel %vm330, %v331, 0
    %vm333 = vcmp.eq.s32.totalorder %v42, 17
    %vm334 = vcmp.eq.s32.totalorder %v43, 17
    %vm335 = vcmp.eq.s32.totalorder %v44, 17
    %vm336 = vcmp.eq.s32.totalorder %v45, 17
    %vm337 = vcmp.eq.s32.totalorder %v46, 17
    %vm338 = vcmp.eq.s32.totalorder %v47, 17
    %vm339 = vcmp.eq.s32.totalorder %v48, 17
    %vm340 = vcmp.eq.s32.totalorder %v49, 17
    %vm341 = vcmp.eq.s32.totalorder %v50, 17
    %vm342 = vcmp.eq.s32.totalorder %v51, 17
    %vm343 = vcmp.eq.s32.totalorder %v52, 17
    %vm344 = vcmp.eq.s32.totalorder %v53, 17
    %v345 = vsel %vm333, 1, 0
    %v346 = vsel %vm334, 1, 0
    %v347 = vsel %vm335, 1, 0
    %v348 = vsel %vm336, 1, 0
    %v349 = vsel %vm337, 1, 0
    %v350 = vsel %vm338, 1, 0
    %v351 = vsel %vm339, 1, 0
    %v352 = vsel %vm340, 1, 0
    %v353 = vsel %vm341, 1, 0
    %v354 = vsel %vm342, 1, 0
    %v355 = vsel %vm343, 1, 0
    %v356 = vsel %vm344, 1, 0
    %v357 = vadd.s32 %v345, %v349
    %v358 = vadd.s32 %v346, %v350
    %v359 = vadd.s32 %v347, %v351
    %v360 = vadd.s32 %v348, %v352
    %v361 = vadd.s32 %v357, %v353
    %v362 = vadd.s32 %v358, %v354
    %v363 = vadd.s32 %v359, %v355
    %v364 = vadd.s32 %v360, %v356
    %v365 = vadd.s32 %v361, %v362
    %v366 = vadd.s32 %v363, %v364
    %v367 = vadd.s32 %v365, %v366
    %v368 = vand.u32 %v367, 65535
    %v369 = vshrl.u32 %v367, 16
    %v370 = vcvt.s32.f32 %v368
    %v371 = vcvt.s32.f32 %v369
    %372 = vadd.xlane.f32.xlu0 %v370
    %v373 = vpop.xlane.xlu0 %372
    %374 = vadd.xlane.f32.xlu0 %v371
    %v375 = vpop.xlane.xlu0 %374
    %v376 = vcvt.f32.s32 %v373
    %v377 = vcvt.f32.s32 %v375
    %v378 = vshll.u32 %v377, 16
    %v379 = vadd.s32 %v378, %v376
    %v380 = vrot.slane %v379, 4
    %v381 = vadd.s32 %v379, %v380
    %v382 = vrot.slane %v381, 2
    %v383 = vadd.s32 %v381, %v382
    %v384 = vrot.slane %v383, 1
    %v385 = vadd.s32 %v383, %v384
    %s386 = vtos %v385
    %vm387 = vcmp.eq.s32.totalorder %v26, 1
    %v388 = vstv %s386
    %v389 = vsel %vm387, %v388, %v332
    %vm390 = vcmp.eq.s32.totalorder %v42, 18
    %vm391 = vcmp.eq.s32.totalorder %v43, 18
    %vm392 = vcmp.eq.s32.totalorder %v44, 18
    %vm393 = vcmp.eq.s32.totalorder %v45, 18
    %vm394 = vcmp.eq.s32.totalorder %v46, 18
    %vm395 = vcmp.eq.s32.totalorder %v47, 18
    %vm396 = vcmp.eq.s32.totalorder %v48, 18
    %vm397 = vcmp.eq.s32.totalorder %v49, 18
    %vm398 = vcmp.eq.s32.totalorder %v50, 18
    %vm399 = vcmp.eq.s32.totalorder %v51, 18
    %vm400 = vcmp.eq.s32.totalorder %v52, 18
    %vm401 = vcmp.eq.s32.totalorder %v53, 18
    %v402 = vsel %vm390, 1, 0
    %v403 = vsel %vm391, 1, 0
    %v404 = vsel %vm392, 1, 0
    %v405 = vsel %vm393, 1, 0
    %v406 = vsel %vm394, 1, 0
    %v407 = vsel %vm395, 1, 0
    %v408 = vsel %vm396, 1, 0
    %v409 = vsel %vm397, 1, 0
    %v410 = vsel %vm398, 1, 0
    %v411 = vsel %vm399, 1, 0
    %v412 = vsel %vm400, 1, 0
    %v413 = vsel %vm401, 1, 0
    %v414 = vadd.s32 %v402, %v406
    %v415 = vadd.s32 %v403, %v407
    %v416 = vadd.s32 %v404, %v408
    %v417 = vadd.s32 %v405, %v409
    %v418 = vadd.s32 %v414, %v410
    %v419 = vadd.s32 %v415, %v411
    %v420 = vadd.s32 %v416, %v412
    %v421 = vadd.s32 %v417, %v413
    %v422 = vadd.s32 %v418, %v419
    %v423 = vadd.s32 %v420, %v421
    %v424 = vadd.s32 %v422, %v423
    %v425 = vand.u32 %v424, 65535
    %v426 = vshrl.u32 %v424, 16
    %v427 = vcvt.s32.f32 %v425
    %v428 = vcvt.s32.f32 %v426
    %429 = vadd.xlane.f32.xlu0 %v427
    %v430 = vpop.xlane.xlu0 %429
    %431 = vadd.xlane.f32.xlu0 %v428
    %v432 = vpop.xlane.xlu0 %431
    %v433 = vcvt.f32.s32 %v430
    %v434 = vcvt.f32.s32 %v432
    %v435 = vshll.u32 %v434, 16
    %v436 = vadd.s32 %v435, %v433
    %v437 = vrot.slane %v436, 4
    %v438 = vadd.s32 %v436, %v437
    %v439 = vrot.slane %v438, 2
    %v440 = vadd.s32 %v438, %v439
    %v441 = vrot.slane %v440, 1
    %v442 = vadd.s32 %v440, %v441
    %s443 = vtos %v442
    %vm444 = vcmp.eq.s32.totalorder %v26, 2
    %v445 = vstv %s443
    %v446 = vsel %vm444, %v445, %v389
    %vm447 = vcmp.eq.s32.totalorder %v42, 19
    %vm448 = vcmp.eq.s32.totalorder %v43, 19
    %vm449 = vcmp.eq.s32.totalorder %v44, 19
    %vm450 = vcmp.eq.s32.totalorder %v45, 19
    %vm451 = vcmp.eq.s32.totalorder %v46, 19
    %vm452 = vcmp.eq.s32.totalorder %v47, 19
    %vm453 = vcmp.eq.s32.totalorder %v48, 19
    %vm454 = vcmp.eq.s32.totalorder %v49, 19
    %vm455 = vcmp.eq.s32.totalorder %v50, 19
    %vm456 = vcmp.eq.s32.totalorder %v51, 19
    %vm457 = vcmp.eq.s32.totalorder %v52, 19
    %vm458 = vcmp.eq.s32.totalorder %v53, 19
    %v459 = vsel %vm447, 1, 0
    %v460 = vsel %vm448, 1, 0
    %v461 = vsel %vm449, 1, 0
    %v462 = vsel %vm450, 1, 0
    %v463 = vsel %vm451, 1, 0
    %v464 = vsel %vm452, 1, 0
    %v465 = vsel %vm453, 1, 0
    %v466 = vsel %vm454, 1, 0
    %v467 = vsel %vm455, 1, 0
    %v468 = vsel %vm456, 1, 0
    %v469 = vsel %vm457, 1, 0
    %v470 = vsel %vm458, 1, 0
    %v471 = vadd.s32 %v459, %v463
    %v472 = vadd.s32 %v460, %v464
    %v473 = vadd.s32 %v461, %v465
    %v474 = vadd.s32 %v462, %v466
    %v475 = vadd.s32 %v471, %v467
    %v476 = vadd.s32 %v472, %v468
    %v477 = vadd.s32 %v473, %v469
    %v478 = vadd.s32 %v474, %v470
    %v479 = vadd.s32 %v475, %v476
    %v480 = vadd.s32 %v477, %v478
    %v481 = vadd.s32 %v479, %v480
    %v482 = vand.u32 %v481, 65535
    %v483 = vshrl.u32 %v481, 16
    %v484 = vcvt.s32.f32 %v482
    %v485 = vcvt.s32.f32 %v483
    %486 = vadd.xlane.f32.xlu0 %v484
    %v487 = vpop.xlane.xlu0 %486
    %488 = vadd.xlane.f32.xlu0 %v485
    %v489 = vpop.xlane.xlu0 %488
    %v490 = vcvt.f32.s32 %v487
    %v491 = vcvt.f32.s32 %v489
    %v492 = vshll.u32 %v491, 16
    %v493 = vadd.s32 %v492, %v490
    %v494 = vrot.slane %v493, 4
    %v495 = vadd.s32 %v493, %v494
    %v496 = vrot.slane %v495, 2
    %v497 = vadd.s32 %v495, %v496
    %v498 = vrot.slane %v497, 1
    %v499 = vadd.s32 %v497, %v498
    %s500 = vtos %v499
    %vm501 = vcmp.eq.s32.totalorder %v26, 3
    %v502 = vstv %s500
    %v503 = vsel %vm501, %v502, %v446
    %vm504 = vcmp.eq.s32.totalorder %v42, 20
    %vm505 = vcmp.eq.s32.totalorder %v43, 20
    %vm506 = vcmp.eq.s32.totalorder %v44, 20
    %vm507 = vcmp.eq.s32.totalorder %v45, 20
    %vm508 = vcmp.eq.s32.totalorder %v46, 20
    %vm509 = vcmp.eq.s32.totalorder %v47, 20
    %vm510 = vcmp.eq.s32.totalorder %v48, 20
    %vm511 = vcmp.eq.s32.totalorder %v49, 20
    %vm512 = vcmp.eq.s32.totalorder %v50, 20
    %vm513 = vcmp.eq.s32.totalorder %v51, 20
    %vm514 = vcmp.eq.s32.totalorder %v52, 20
    %vm515 = vcmp.eq.s32.totalorder %v53, 20
    %v516 = vsel %vm504, 1, 0
    %v517 = vsel %vm505, 1, 0
    %v518 = vsel %vm506, 1, 0
    %v519 = vsel %vm507, 1, 0
    %v520 = vsel %vm508, 1, 0
    %v521 = vsel %vm509, 1, 0
    %v522 = vsel %vm510, 1, 0
    %v523 = vsel %vm511, 1, 0
    %v524 = vsel %vm512, 1, 0
    %v525 = vsel %vm513, 1, 0
    %v526 = vsel %vm514, 1, 0
    %v527 = vsel %vm515, 1, 0
    %v528 = vadd.s32 %v516, %v520
    %v529 = vadd.s32 %v517, %v521
    %v530 = vadd.s32 %v518, %v522
    %v531 = vadd.s32 %v519, %v523
    %v532 = vadd.s32 %v528, %v524
    %v533 = vadd.s32 %v529, %v525
    %v534 = vadd.s32 %v530, %v526
    %v535 = vadd.s32 %v531, %v527
    %v536 = vadd.s32 %v532, %v533
    %v537 = vadd.s32 %v534, %v535
    %v538 = vadd.s32 %v536, %v537
    %v539 = vand.u32 %v538, 65535
    %v540 = vshrl.u32 %v538, 16
    %v541 = vcvt.s32.f32 %v539
    %v542 = vcvt.s32.f32 %v540
    %543 = vadd.xlane.f32.xlu0 %v541
    %v544 = vpop.xlane.xlu0 %543
    %545 = vadd.xlane.f32.xlu0 %v542
    %v546 = vpop.xlane.xlu0 %545
    %v547 = vcvt.f32.s32 %v544
    %v548 = vcvt.f32.s32 %v546
    %v549 = vshll.u32 %v548, 16
    %v550 = vadd.s32 %v549, %v547
    %v551 = vrot.slane %v550, 4
    %v552 = vadd.s32 %v550, %v551
    %v553 = vrot.slane %v552, 2
    %v554 = vadd.s32 %v552, %v553
    %v555 = vrot.slane %v554, 1
    %v556 = vadd.s32 %v554, %v555
    %s557 = vtos %v556
    %vm558 = vcmp.eq.s32.totalorder %v26, 4
    %v559 = vstv %s557
    %v560 = vsel %vm558, %v559, %v503
    %vm561 = vcmp.ge.s32.totalorder %v42, 8
    %vm562 = vcmp.ge.s32.totalorder %v43, 8
    %vm563 = vcmp.ge.s32.totalorder %v44, 8
    %vm564 = vcmp.ge.s32.totalorder %v45, 8
    %vm565 = vcmp.ge.s32.totalorder %v46, 8
    %vm566 = vcmp.ge.s32.totalorder %v47, 8
    %vm567 = vcmp.ge.s32.totalorder %v48, 8
    %vm568 = vcmp.ge.s32.totalorder %v49, 8
    %vm569 = vcmp.ge.s32.totalorder %v50, 8
    %vm570 = vcmp.ge.s32.totalorder %v51, 8
    %vm571 = vcmp.ge.s32.totalorder %v52, 8
    %vm572 = vcmp.ge.s32.totalorder %v53, 8
    %v573 = vand.u32 %v42, 7
    %v574 = vand.u32 %v43, 7
    %v575 = vand.u32 %v44, 7
    %v576 = vand.u32 %v45, 7
    %v577 = vand.u32 %v46, 7
    %v578 = vand.u32 %v47, 7
    %v579 = vand.u32 %v48, 7
    %v580 = vand.u32 %v49, 7
    %v581 = vand.u32 %v50, 7
    %v582 = vand.u32 %v51, 7
    %v583 = vand.u32 %v52, 7
    %v584 = vand.u32 %v53, 7
    %vm585 = vcmp.eq.s32.totalorder %v573, 4
    %vm586 = vcmp.eq.s32.totalorder %v574, 4
    %vm587 = vcmp.eq.s32.totalorder %v575, 4
    %vm588 = vcmp.eq.s32.totalorder %v576, 4
    %vm589 = vcmp.eq.s32.totalorder %v577, 4
    %vm590 = vcmp.eq.s32.totalorder %v578, 4
    %vm591 = vcmp.eq.s32.totalorder %v579, 4
    %vm592 = vcmp.eq.s32.totalorder %v580, 4
    %vm593 = vcmp.eq.s32.totalorder %v581, 4
    %vm594 = vcmp.eq.s32.totalorder %v582, 4
    %vm595 = vcmp.eq.s32.totalorder %v583, 4
    %vm596 = vcmp.eq.s32.totalorder %v584, 4
    %v597 = vsel %vm585, 1, %v573
    %v598 = vsel %vm586, 1, %v574
    %v599 = vsel %vm587, 1, %v575
    %v600 = vsel %vm588, 1, %v576
    %v601 = vsel %vm589, 1, %v577
    %v602 = vsel %vm590, 1, %v578
    %v603 = vsel %vm591, 1, %v579
    %v604 = vsel %vm592, 1, %v580
    %v605 = vsel %vm593, 1, %v581
    %v606 = vsel %vm594, 1, %v582
    %v607 = vsel %vm595, 1, %v583
    %v608 = vsel %vm596, 1, %v584
    %v609 = vsel %vm561, %v597, 0
    %v610 = vsel %vm562, %v598, 0
    %v611 = vsel %vm563, %v599, 0
    %v612 = vsel %vm564, %v600, 0
    %v613 = vsel %vm565, %v601, 0
    %v614 = vsel %vm566, %v602, 0
    %v615 = vsel %vm567, %v603, 0
    %v616 = vsel %vm568, %v604, 0
    %v617 = vsel %vm569, %v605, 0
    %v618 = vsel %vm570, %v606, 0
    %v619 = vsel %vm571, %v607, 0
    %v620 = vsel %vm572, %v608, 0
    %v621 = vcvt.s32.f32 %v609
    %v622 = vcvt.s32.f32 %v610
    %v623 = vcvt.s32.f32 %v611
    %v624 = vcvt.s32.f32 %v612
    %v625 = vcvt.s32.f32 %v613
    %v626 = vcvt.s32.f32 %v614
    %v627 = vcvt.s32.f32 %v615
    %v628 = vcvt.s32.f32 %v616
    %v629 = vcvt.s32.f32 %v617
    %v630 = vcvt.s32.f32 %v618
    %v631 = vcvt.s32.f32 %v619
    %v632 = vcvt.s32.f32 %v620
    %v633 = vpack.c.bf16 %v622, %v621
    %v634 = vpack.c.bf16 %v624, %v623
    %v635 = vpack.c.bf16 %v626, %v625
    %v636 = vpack.c.bf16 %v628, %v627
    %v637 = vpack.c.bf16 %v630, %v629
    %v638 = vpack.c.bf16 %v632, %v631
    %v639 = vld [vmem:[%s2] sm:$0xf]
    %v640 = vld [vmem:[%s2 + $0x4] sm:$0xf]
    %v641 = vld [vmem:[%s2 + $0x8] sm:$0xf]
    %v642 = vld [vmem:[%s2 + $0xc] sm:$0xf]
    %v643 = vld [vmem:[%s2 + $0x10] sm:$0xf]
    %v644 = vld [vmem:[%s2 + $0x14] sm:$0xf]
    %v645 = vld [vmem:[%s2 + $0x18] sm:$0xf]
    %v646 = vld [vmem:[%s2 + $0x1c] sm:$0xf]
    %v647 = vld [vmem:[%s2 + $0x20] sm:$0xf]
    %v648 = vld [vmem:[%s2 + $0x24] sm:$0xf]
    %v649 = vld [vmem:[%s2 + $0x28] sm:$0xf]
    %v650 = vld [vmem:[%s2 + $0x2c] sm:$0xf]
    %v651 = vld [vmem:[%s2 + $0x30] sm:$0xf]
    %v652 = vld [vmem:[%s2 + $0x34] sm:$0xf]
    %v653 = vld [vmem:[%s2 + $0x38] sm:$0xf]
    %v654 = vld [vmem:[%s2 + $0x3c] sm:$0xf]
    %v671 = vunpack.c.l.b16 %v639
    %v672 = vunpack.c.l.b16 %v640
    %v673 = vunpack.c.l.b16 %v641
    %v674 = vunpack.c.l.b16 %v642
    %v675 = vunpack.c.l.b16 %v643
    %v676 = vunpack.c.l.b16 %v644
    %v677 = vunpack.c.l.b16 %v645
    %v678 = vunpack.c.l.b16 %v646
    %v679 = vunpack.c.l.b16 %v647
    %v680 = vunpack.c.l.b16 %v648
    %v681 = vunpack.c.l.b16 %v649
    %v682 = vunpack.c.l.b16 %v650
    %v683 = vunpack.c.l.b16 %v651
    %v684 = vunpack.c.l.b16 %v652
    %v685 = vunpack.c.l.b16 %v653
    %v686 = vunpack.c.l.b16 %v654
    %v687 = vpack.c.b16 %v672, %v671
    %v688 = vpack.c.b16 %v674, %v673
    %v689 = vpack.c.b16 %v676, %v675
    %v690 = vpack.c.b16 %v678, %v677
    %v691 = vpack.c.b16 %v680, %v679
    %v692 = vpack.c.b16 %v682, %v681
    %v693 = vpack.c.b16 %v684, %v683
    %v694 = vpack.c.b16 %v686, %v685
    %703 = vmatprep.subr.bf16.mxu0 0
    %704 = vmatpush1.bf16.msra.mxu0 %v687
    %705 = vmatprep.subr.bf16.mxu0 0
    %706 = vmatpush1.bf16.msra.mxu0 %v688
    %707 = vmatprep.subr.bf16.mxu0 0
    %708 = vmatpush1.bf16.msra.mxu0 %v689
    %709 = vmatprep.subr.bf16.mxu0 0
    %710 = vmatpush1.bf16.msra.mxu0 %v690
    %711 = vmatprep.subr.bf16.mxu0 0
    %712 = vmatpush1.bf16.msra.mxu0 %v691
    %713 = vmatprep.subr.bf16.mxu0 0
    %714 = vmatpush1.bf16.msra.mxu0 %v692
    %715 = vmatprep.subr.bf16.mxu0 0
    %716 = vmatpush1.bf16.msra.mxu0 %v693
    %717 = vmatprep.subr.bf16.mxu0 0
    %718 = vmatpush1.bf16.msra.mxu0 %v694
    %719 = vmatprep.subr.bf16.mxu0 0
    %720 = vmatpush1.bf16.msra.mxu0 0
    %721 = vmatprep.subr.bf16.mxu0 0
    %722 = vmatpush1.bf16.msra.mxu0 0
    %723 = vmatprep.subr.bf16.mxu0 0
    %724 = vmatpush1.bf16.msra.mxu0 0
    %725 = vmatprep.subr.bf16.mxu0 0
    %726 = vmatpush1.bf16.msra.mxu0 0
    %727 = vmatprep.subr.bf16.mxu0 0
    %728 = vmatpush1.bf16.msra.mxu0 0
    %729 = vmatprep.subr.bf16.mxu0 0
    %730 = vmatpush1.bf16.msra.mxu0 0
    %731 = vmatprep.subr.bf16.mxu0 0
    %732 = vmatpush1.bf16.msra.mxu0 0
    %733 = vmatprep.subr.bf16.mxu0 0
    %734 = vmatpush1.bf16.msra.mxu0 0
    %735 = vmatprep.mubr.bf16.mxu0 0
    %736 = vmatmul.mubr.bf16.gmra.mrb[0].mxu0 %v633
    %v737 = vpop.f32.mrb[0].mxu0
    %v738 = vadd.f32 0.5, %v737
    %v739 = vpop.f32.mrb[0].mxu0
    %v740 = vpop.f32.mrb[0].mxu0
    %v741 = vadd.f32 0.5, %v740
    %v742 = vpop.f32.mrb[0].mxu0
    %743 = vmatprep.mubr.bf16.mxu0 0
    %744 = vmatmul.mubr.bf16.gmra.mrb[0].mxu0 %v634
    %v745 = vpop.f32.mrb[0].mxu0
    %v746 = vadd.f32 0.5, %v745
    %v747 = vpop.f32.mrb[0].mxu0
    %v748 = vpop.f32.mrb[0].mxu0
    %v749 = vadd.f32 0.5, %v748
    %v750 = vpop.f32.mrb[0].mxu0
    %751 = vmatprep.mubr.bf16.mxu0 0
    %752 = vmatmul.mubr.bf16.gmra.mrb[0].mxu0 %v635
    %v753 = vpop.f32.mrb[0].mxu0
    %v754 = vadd.f32 0.5, %v753
    %v755 = vpop.f32.mrb[0].mxu0
    %v756 = vpop.f32.mrb[0].mxu0
    %v757 = vadd.f32 0.5, %v756
    %v758 = vpop.f32.mrb[0].mxu0
    %759 = vmatprep.mubr.bf16.mxu0 0
    %760 = vmatmul.mubr.bf16.gmra.mrb[0].mxu0 %v636
    %v761 = vpop.f32.mrb[0].mxu0
    %v762 = vadd.f32 0.5, %v761
    %v763 = vpop.f32.mrb[0].mxu0
    %v764 = vpop.f32.mrb[0].mxu0
    %v765 = vadd.f32 0.5, %v764
    %v766 = vpop.f32.mrb[0].mxu0
    %767 = vmatprep.mubr.bf16.mxu0 0
    %768 = vmatmul.mubr.bf16.gmra.mrb[0].mxu0 %v637
    %v769 = vpop.f32.mrb[0].mxu0
    %v770 = vadd.f32 0.5, %v769
    %v771 = vpop.f32.mrb[0].mxu0
    %v772 = vpop.f32.mrb[0].mxu0
    %v773 = vadd.f32 0.5, %v772
    %v774 = vpop.f32.mrb[0].mxu0
    %775 = vmatprep.mubr.bf16.mxu0 0
    %776 = vmatmul.mubr.bf16.gmra.mrb[0].mxu0 %v638
    %v777 = vpop.f32.mrb[0].mxu0
    %v778 = vadd.f32 0.5, %v777
    %v779 = vpop.f32.mrb[0].mxu0
    %v780 = vpop.f32.mrb[0].mxu0
    %v781 = vadd.f32 0.5, %v780
    %v782 = vpop.f32.mrb[0].mxu0
    %783 = vdwg.mxu0
    %v784 = vcvt.f32.s32.to.zero.pseudo %v738
    %v785 = vcvt.f32.s32.to.zero.pseudo %v741
    %v786 = vcvt.f32.s32.to.zero.pseudo %v746
    %v787 = vcvt.f32.s32.to.zero.pseudo %v749
    %v788 = vcvt.f32.s32.to.zero.pseudo %v754
    %v789 = vcvt.f32.s32.to.zero.pseudo %v757
    %v790 = vcvt.f32.s32.to.zero.pseudo %v762
    %v791 = vcvt.f32.s32.to.zero.pseudo %v765
    %v792 = vcvt.f32.s32.to.zero.pseudo %v770
    %v793 = vcvt.f32.s32.to.zero.pseudo %v773
    %v794 = vcvt.f32.s32.to.zero.pseudo %v778
    %v795 = vcvt.f32.s32.to.zero.pseudo %v781
    %796 = vset.pattern.permute.xlu0 0
    %797 = vperm.xlu0 %796, %v27
    %v798 = vpop.permute.xlu0 %797
    %799 = vset.pattern.permute.xlu0 0
    %800 = vperm.xlu0 %799, %v28
    %v801 = vpop.permute.xlu0 %800
    %802 = vset.pattern.permute.xlu0 0
    %803 = vperm.xlu0 %802, %v29
    %v804 = vpop.permute.xlu0 %803
    %805 = vset.pattern.permute.xlu0 0
    %806 = vperm.xlu0 %805, %v30
    %v807 = vpop.permute.xlu0 %806
    %808 = vset.pattern.permute.xlu0 0
    %809 = vperm.xlu0 %808, %v31
    %v810 = vpop.permute.xlu0 %809
    %811 = vset.pattern.permute.xlu0 0
    %812 = vperm.xlu0 %811, %v32
    %v813 = vpop.permute.xlu0 %812
    %814 = vset.pattern.permute.xlu0 0
    %815 = vperm.xlu0 %814, %v33
    %v816 = vpop.permute.xlu0 %815
    %817 = vset.pattern.permute.xlu0 0
    %818 = vperm.xlu0 %817, %v34
    %v819 = vpop.permute.xlu0 %818
    %820 = vset.pattern.permute.xlu0 0
    %821 = vperm.xlu0 %820, %v35
    %v822 = vpop.permute.xlu0 %821
    %823 = vset.pattern.permute.xlu0 0
    %824 = vperm.xlu0 %823, %v36
    %v825 = vpop.permute.xlu0 %824
    %826 = vset.pattern.permute.xlu0 0
    %827 = vperm.xlu0 %826, %v37
    %v828 = vpop.permute.xlu0 %827
    %829 = vset.pattern.permute.xlu0 0
    %830 = vperm.xlu0 %829, %v38
    %v831 = vpop.permute.xlu0 %830
    %vm832 = vcmp.eq.s32.totalorder %v798, %v26
    %vm833 = vcmp.eq.s32.totalorder %v801, %v26
    %vm834 = vcmp.eq.s32.totalorder %v804, %v26
    %vm835 = vcmp.eq.s32.totalorder %v807, %v26
    %vm836 = vcmp.eq.s32.totalorder %v810, %v26
    %vm837 = vcmp.eq.s32.totalorder %v813, %v26
    %vm838 = vcmp.eq.s32.totalorder %v816, %v26
    %vm839 = vcmp.eq.s32.totalorder %v819, %v26
    %vm840 = vcmp.eq.s32.totalorder %v822, %v26
    %vm841 = vcmp.eq.s32.totalorder %v825, %v26
    %vm842 = vcmp.eq.s32.totalorder %v828, %v26
    %vm843 = vcmp.eq.s32.totalorder %v831, %v26
    %v844 = vsel %vm832, 1, 0
    %v845 = vsel %vm833, 1, 0
    %v846 = vsel %vm834, 1, 0
    %v847 = vsel %vm835, 1, 0
    %v848 = vsel %vm836, 1, 0
    %v849 = vsel %vm837, 1, 0
    %v850 = vsel %vm838, 1, 0
    %v851 = vsel %vm839, 1, 0
    %v852 = vsel %vm840, 1, 0
    %v853 = vsel %vm841, 1, 0
    %v854 = vsel %vm842, 1, 0
    %v855 = vsel %vm843, 1, 0
    %v856 = vadd.s32 %v844, %v848
    %v857 = vadd.s32 %v845, %v849
    %v858 = vadd.s32 %v846, %v850
    %v859 = vadd.s32 %v847, %v851
    %v860 = vadd.s32 %v856, %v852
    %v861 = vadd.s32 %v857, %v853
    %v862 = vadd.s32 %v858, %v854
    %v863 = vadd.s32 %v859, %v855
    %v864 = vadd.s32 %v860, %v861
    %v865 = vadd.s32 %v862, %v863
    %v866 = vadd.s32 %v864, %v865
    %v867 = vrot.slane %v866, 4
    %v868 = vadd.s32 %v866, %v867
    %v869 = vrot.slane %v868, 2
    %v870 = vadd.s32 %v868, %v869
    %v871 = vrot.slane %v870, 1
    %v872 = vadd.s32 %v870, %v871
    %873 = vset.pattern.permute.xlu0 0
    %874 = vperm.xlu0 %873, %v784
    %v875 = vpop.permute.xlu0 %874
    %876 = vset.pattern.permute.xlu0 0
    %877 = vperm.xlu0 %876, %v785
    %v878 = vpop.permute.xlu0 %877
    %879 = vset.pattern.permute.xlu0 0
    %880 = vperm.xlu0 %879, %v786
    %v881 = vpop.permute.xlu0 %880
    %882 = vset.pattern.permute.xlu0 0
    %883 = vperm.xlu0 %882, %v787
    %v884 = vpop.permute.xlu0 %883
    %885 = vset.pattern.permute.xlu0 0
    %886 = vperm.xlu0 %885, %v788
    %v887 = vpop.permute.xlu0 %886
    %888 = vset.pattern.permute.xlu0 0
    %889 = vperm.xlu0 %888, %v789
    %v890 = vpop.permute.xlu0 %889
    %891 = vset.pattern.permute.xlu0 0
    %892 = vperm.xlu0 %891, %v790
    %v893 = vpop.permute.xlu0 %892
    %894 = vset.pattern.permute.xlu0 0
    %895 = vperm.xlu0 %894, %v791
    %v896 = vpop.permute.xlu0 %895
    %897 = vset.pattern.permute.xlu0 0
    %898 = vperm.xlu0 %897, %v792
    %v899 = vpop.permute.xlu0 %898
    %900 = vset.pattern.permute.xlu0 0
    %901 = vperm.xlu0 %900, %v793
    %v902 = vpop.permute.xlu0 %901
    %903 = vset.pattern.permute.xlu0 0
    %904 = vperm.xlu0 %903, %v794
    %v905 = vpop.permute.xlu0 %904
    %906 = vset.pattern.permute.xlu0 0
    %907 = vperm.xlu0 %906, %v795
    %v908 = vpop.permute.xlu0 %907
    %vm909 = vcmp.eq.s32.totalorder %v875, %v26
    %vm910 = vcmp.eq.s32.totalorder %v878, %v26
    %vm911 = vcmp.eq.s32.totalorder %v881, %v26
    %vm912 = vcmp.eq.s32.totalorder %v884, %v26
    %vm913 = vcmp.eq.s32.totalorder %v887, %v26
    %vm914 = vcmp.eq.s32.totalorder %v890, %v26
    %vm915 = vcmp.eq.s32.totalorder %v893, %v26
    %vm916 = vcmp.eq.s32.totalorder %v896, %v26
    %vm917 = vcmp.eq.s32.totalorder %v899, %v26
    %vm918 = vcmp.eq.s32.totalorder %v902, %v26
    %vm919 = vcmp.eq.s32.totalorder %v905, %v26
    %vm920 = vcmp.eq.s32.totalorder %v908, %v26
    %921 = vset.pattern.permute.xlu0 0
    %922 = vperm.xlu0 %921, %v66
    %v923 = vpop.permute.xlu0 %922
    %924 = vset.pattern.permute.xlu0 0
    %925 = vperm.xlu0 %924, %v67
    %v926 = vpop.permute.xlu0 %925
    %927 = vset.pattern.permute.xlu0 0
    %928 = vperm.xlu0 %927, %v68
    %v929 = vpop.permute.xlu0 %928
    %930 = vset.pattern.permute.xlu0 0
    %931 = vperm.xlu0 %930, %v69
    %v932 = vpop.permute.xlu0 %931
    %933 = vset.pattern.permute.xlu0 0
    %934 = vperm.xlu0 %933, %v70
    %v935 = vpop.permute.xlu0 %934
    %936 = vset.pattern.permute.xlu0 0
    %937 = vperm.xlu0 %936, %v71
    %v938 = vpop.permute.xlu0 %937
    %939 = vset.pattern.permute.xlu0 0
    %940 = vperm.xlu0 %939, %v72
    %v941 = vpop.permute.xlu0 %940
    %942 = vset.pattern.permute.xlu0 0
    %943 = vperm.xlu0 %942, %v73
    %v944 = vpop.permute.xlu0 %943
    %945 = vset.pattern.permute.xlu0 0
    %946 = vperm.xlu0 %945, %v74
    %v947 = vpop.permute.xlu0 %946
    %948 = vset.pattern.permute.xlu0 0
    %949 = vperm.xlu0 %948, %v75
    %v950 = vpop.permute.xlu0 %949
    %951 = vset.pattern.permute.xlu0 0
    %952 = vperm.xlu0 %951, %v76
    %v953 = vpop.permute.xlu0 %952
    %954 = vset.pattern.permute.xlu0 0
    %955 = vperm.xlu0 %954, %v77
    %v956 = vpop.permute.xlu0 %955
    %vm957 = vcmp.eq.s32.totalorder %v923, 1
    %vm958 = vcmp.eq.s32.totalorder %v926, 1
    %vm959 = vcmp.eq.s32.totalorder %v929, 1
    %vm960 = vcmp.eq.s32.totalorder %v932, 1
    %vm961 = vcmp.eq.s32.totalorder %v935, 1
    %vm962 = vcmp.eq.s32.totalorder %v938, 1
    %vm963 = vcmp.eq.s32.totalorder %v941, 1
    %vm964 = vcmp.eq.s32.totalorder %v944, 1
    %vm965 = vcmp.eq.s32.totalorder %v947, 1
    %vm966 = vcmp.eq.s32.totalorder %v950, 1
    %vm967 = vcmp.eq.s32.totalorder %v953, 1
    %vm968 = vcmp.eq.s32.totalorder %v956, 1
    %vm969 = vmand %vm909, %vm957
    %vm970 = vmand %vm910, %vm958
    %vm971 = vmand %vm911, %vm959
    %vm972 = vmand %vm912, %vm960
    %vm973 = vmand %vm913, %vm961
    %vm974 = vmand %vm914, %vm962
    %vm975 = vmand %vm915, %vm963
    %vm976 = vmand %vm916, %vm964
    %vm977 = vmand %vm917, %vm965
    %vm978 = vmand %vm918, %vm966
    %vm979 = vmand %vm919, %vm967
    %vm980 = vmand %vm920, %vm968
    %v981 = vsel %vm969, 1, 0
    %v982 = vsel %vm970, 1, 0
    %v983 = vsel %vm971, 1, 0
    %v984 = vsel %vm972, 1, 0
    %v985 = vsel %vm973, 1, 0
    %v986 = vsel %vm974, 1, 0
    %v987 = vsel %vm975, 1, 0
    %v988 = vsel %vm976, 1, 0
    %v989 = vsel %vm977, 1, 0
    %v990 = vsel %vm978, 1, 0
    %v991 = vsel %vm979, 1, 0
    %v992 = vsel %vm980, 1, 0
    %v993 = vadd.s32 %v981, %v985
    %v994 = vadd.s32 %v982, %v986
    %v995 = vadd.s32 %v983, %v987
    %v996 = vadd.s32 %v984, %v988
    %v997 = vadd.s32 %v993, %v989
    %v998 = vadd.s32 %v994, %v990
    %v999 = vadd.s32 %v995, %v991
    %v1000 = vadd.s32 %v996, %v992
    %v1001 = vadd.s32 %v997, %v998
    %v1002 = vadd.s32 %v999, %v1000
    %v1003 = vadd.s32 %v1001, %v1002
    %v1004 = vrot.slane %v1003, 4
    %v1005 = vadd.s32 %v1003, %v1004
    %v1006 = vrot.slane %v1005, 2
    %v1007 = vadd.s32 %v1005, %v1006
    %v1008 = vrot.slane %v1007, 1
    %v1009 = vadd.s32 %v1007, %v1008
    %1010 = vset.pattern.permute.xlu0 1
    %1011 = vperm.xlu0 %1010, %v27
    %v1012 = vpop.permute.xlu0 %1011
    %1013 = vset.pattern.permute.xlu0 1
    %1014 = vperm.xlu0 %1013, %v28
    %v1015 = vpop.permute.xlu0 %1014
    %1016 = vset.pattern.permute.xlu0 1
    %1017 = vperm.xlu0 %1016, %v29
    %v1018 = vpop.permute.xlu0 %1017
    %1019 = vset.pattern.permute.xlu0 1
    %1020 = vperm.xlu0 %1019, %v30
    %v1021 = vpop.permute.xlu0 %1020
    %1022 = vset.pattern.permute.xlu0 1
    %1023 = vperm.xlu0 %1022, %v31
    %v1024 = vpop.permute.xlu0 %1023
    %1025 = vset.pattern.permute.xlu0 1
    %1026 = vperm.xlu0 %1025, %v32
    %v1027 = vpop.permute.xlu0 %1026
    %1028 = vset.pattern.permute.xlu0 1
    %1029 = vperm.xlu0 %1028, %v33
    %v1030 = vpop.permute.xlu0 %1029
    %1031 = vset.pattern.permute.xlu0 1
    %1032 = vperm.xlu0 %1031, %v34
    %v1033 = vpop.permute.xlu0 %1032
    %1034 = vset.pattern.permute.xlu0 1
    %1035 = vperm.xlu0 %1034, %v35
    %v1036 = vpop.permute.xlu0 %1035
    %1037 = vset.pattern.permute.xlu0 1
    %1038 = vperm.xlu0 %1037, %v36
    %v1039 = vpop.permute.xlu0 %1038
    %1040 = vset.pattern.permute.xlu0 1
    %1041 = vperm.xlu0 %1040, %v37
    %v1042 = vpop.permute.xlu0 %1041
    %1043 = vset.pattern.permute.xlu0 1
    %1044 = vperm.xlu0 %1043, %v38
    %v1045 = vpop.permute.xlu0 %1044
    %vm1046 = vcmp.eq.s32.totalorder %v1012, %v26
    %vm1047 = vcmp.eq.s32.totalorder %v1015, %v26
    %vm1048 = vcmp.eq.s32.totalorder %v1018, %v26
    %vm1049 = vcmp.eq.s32.totalorder %v1021, %v26
    %vm1050 = vcmp.eq.s32.totalorder %v1024, %v26
    %vm1051 = vcmp.eq.s32.totalorder %v1027, %v26
    %vm1052 = vcmp.eq.s32.totalorder %v1030, %v26
    %vm1053 = vcmp.eq.s32.totalorder %v1033, %v26
    %vm1054 = vcmp.eq.s32.totalorder %v1036, %v26
    %vm1055 = vcmp.eq.s32.totalorder %v1039, %v26
    %vm1056 = vcmp.eq.s32.totalorder %v1042, %v26
    %vm1057 = vcmp.eq.s32.totalorder %v1045, %v26
    %v1058 = vsel %vm1046, 1, 0
    %v1059 = vsel %vm1047, 1, 0
    %v1060 = vsel %vm1048, 1, 0
    %v1061 = vsel %vm1049, 1, 0
    %v1062 = vsel %vm1050, 1, 0
    %v1063 = vsel %vm1051, 1, 0
    %v1064 = vsel %vm1052, 1, 0
    %v1065 = vsel %vm1053, 1, 0
    %v1066 = vsel %vm1054, 1, 0
    %v1067 = vsel %vm1055, 1, 0
    %v1068 = vsel %vm1056, 1, 0
    %v1069 = vsel %vm1057, 1, 0
    %v1070 = vadd.s32 %v1058, %v1062
    %v1071 = vadd.s32 %v1059, %v1063
    %v1072 = vadd.s32 %v1060, %v1064
    %v1073 = vadd.s32 %v1061, %v1065
    %v1074 = vadd.s32 %v1070, %v1066
    %v1075 = vadd.s32 %v1071, %v1067
    %v1076 = vadd.s32 %v1072, %v1068
    %v1077 = vadd.s32 %v1073, %v1069
    %v1078 = vadd.s32 %v1074, %v1075
    %v1079 = vadd.s32 %v1076, %v1077
    %v1080 = vadd.s32 %v1078, %v1079
    %v1081 = vrot.slane %v1080, 4
    %v1082 = vadd.s32 %v1080, %v1081
    %v1083 = vrot.slane %v1082, 2
    %v1084 = vadd.s32 %v1082, %v1083
    %v1085 = vrot.slane %v1084, 1
    %v1086 = vadd.s32 %v1084, %v1085
    %v1087 = vadd.s32 %v872, %v1086
    %1088 = vset.pattern.permute.xlu0 1
    %1089 = vperm.xlu0 %1088, %v784
    %v1090 = vpop.permute.xlu0 %1089
    %1091 = vset.pattern.permute.xlu0 1
    %1092 = vperm.xlu0 %1091, %v785
    %v1093 = vpop.permute.xlu0 %1092
    %1094 = vset.pattern.permute.xlu0 1
    %1095 = vperm.xlu0 %1094, %v786
    %v1096 = vpop.permute.xlu0 %1095
    %1097 = vset.pattern.permute.xlu0 1
    %1098 = vperm.xlu0 %1097, %v787
    %v1099 = vpop.permute.xlu0 %1098
    %1100 = vset.pattern.permute.xlu0 1
    %1101 = vperm.xlu0 %1100, %v788
    %v1102 = vpop.permute.xlu0 %1101
    %1103 = vset.pattern.permute.xlu0 1
    %1104 = vperm.xlu0 %1103, %v789
    %v1105 = vpop.permute.xlu0 %1104
    %1106 = vset.pattern.permute.xlu0 1
    %1107 = vperm.xlu0 %1106, %v790
    %v1108 = vpop.permute.xlu0 %1107
    %1109 = vset.pattern.permute.xlu0 1
    %1110 = vperm.xlu0 %1109, %v791
    %v1111 = vpop.permute.xlu0 %1110
    %1112 = vset.pattern.permute.xlu0 1
    %1113 = vperm.xlu0 %1112, %v792
    %v1114 = vpop.permute.xlu0 %1113
    %1115 = vset.pattern.permute.xlu0 1
    %1116 = vperm.xlu0 %1115, %v793
    %v1117 = vpop.permute.xlu0 %1116
    %1118 = vset.pattern.permute.xlu0 1
    %1119 = vperm.xlu0 %1118, %v794
    %v1120 = vpop.permute.xlu0 %1119
    %1121 = vset.pattern.permute.xlu0 1
    %1122 = vperm.xlu0 %1121, %v795
    %v1123 = vpop.permute.xlu0 %1122
    %vm1124 = vcmp.eq.s32.totalorder %v1090, %v26
    %vm1125 = vcmp.eq.s32.totalorder %v1093, %v26
    %vm1126 = vcmp.eq.s32.totalorder %v1096, %v26
    %vm1127 = vcmp.eq.s32.totalorder %v1099, %v26
    %vm1128 = vcmp.eq.s32.totalorder %v1102, %v26
    %vm1129 = vcmp.eq.s32.totalorder %v1105, %v26
    %vm1130 = vcmp.eq.s32.totalorder %v1108, %v26
    %vm1131 = vcmp.eq.s32.totalorder %v1111, %v26
    %vm1132 = vcmp.eq.s32.totalorder %v1114, %v26
    %vm1133 = vcmp.eq.s32.totalorder %v1117, %v26
    %vm1134 = vcmp.eq.s32.totalorder %v1120, %v26
    %vm1135 = vcmp.eq.s32.totalorder %v1123, %v26
    %1136 = vset.pattern.permute.xlu0 1
    %1137 = vperm.xlu0 %1136, %v66
    %v1138 = vpop.permute.xlu0 %1137
    %1139 = vset.pattern.permute.xlu0 1
    %1140 = vperm.xlu0 %1139, %v67
    %v1141 = vpop.permute.xlu0 %1140
    %1142 = vset.pattern.permute.xlu0 1
    %1143 = vperm.xlu0 %1142, %v68
    %v1144 = vpop.permute.xlu0 %1143
    %1145 = vset.pattern.permute.xlu0 1
    %1146 = vperm.xlu0 %1145, %v69
    %v1147 = vpop.permute.xlu0 %1146
    %1148 = vset.pattern.permute.xlu0 1
    %1149 = vperm.xlu0 %1148, %v70
    %v1150 = vpop.permute.xlu0 %1149
    %1151 = vset.pattern.permute.xlu0 1
    %1152 = vperm.xlu0 %1151, %v71
    %v1153 = vpop.permute.xlu0 %1152
    %1154 = vset.pattern.permute.xlu0 1
    %1155 = vperm.xlu0 %1154, %v72
    %v1156 = vpop.permute.xlu0 %1155
    %1157 = vset.pattern.permute.xlu0 1
    %1158 = vperm.xlu0 %1157, %v73
    %v1159 = vpop.permute.xlu0 %1158
    %1160 = vset.pattern.permute.xlu0 1
    %1161 = vperm.xlu0 %1160, %v74
    %v1162 = vpop.permute.xlu0 %1161
    %1163 = vset.pattern.permute.xlu0 1
    %1164 = vperm.xlu0 %1163, %v75
    %v1165 = vpop.permute.xlu0 %1164
    %1166 = vset.pattern.permute.xlu0 1
    %1167 = vperm.xlu0 %1166, %v76
    %v1168 = vpop.permute.xlu0 %1167
    %1169 = vset.pattern.permute.xlu0 1
    %1170 = vperm.xlu0 %1169, %v77
    %v1171 = vpop.permute.xlu0 %1170
    %vm1172 = vcmp.eq.s32.totalorder %v1138, 1
    %vm1173 = vcmp.eq.s32.totalorder %v1141, 1
    %vm1174 = vcmp.eq.s32.totalorder %v1144, 1
    %vm1175 = vcmp.eq.s32.totalorder %v1147, 1
    %vm1176 = vcmp.eq.s32.totalorder %v1150, 1
    %vm1177 = vcmp.eq.s32.totalorder %v1153, 1
    %vm1178 = vcmp.eq.s32.totalorder %v1156, 1
    %vm1179 = vcmp.eq.s32.totalorder %v1159, 1
    %vm1180 = vcmp.eq.s32.totalorder %v1162, 1
    %vm1181 = vcmp.eq.s32.totalorder %v1165, 1
    %vm1182 = vcmp.eq.s32.totalorder %v1168, 1
    %vm1183 = vcmp.eq.s32.totalorder %v1171, 1
    %vm1184 = vmand %vm1124, %vm1172
    %vm1185 = vmand %vm1125, %vm1173
    %vm1186 = vmand %vm1126, %vm1174
    %vm1187 = vmand %vm1127, %vm1175
    %vm1188 = vmand %vm1128, %vm1176
    %vm1189 = vmand %vm1129, %vm1177
    %vm1190 = vmand %vm1130, %vm1178
    %vm1191 = vmand %vm1131, %vm1179
    %vm1192 = vmand %vm1132, %vm1180
    %vm1193 = vmand %vm1133, %vm1181
    %vm1194 = vmand %vm1134, %vm1182
    %vm1195 = vmand %vm1135, %vm1183
    %v1196 = vsel %vm1184, 1, 0
    %v1197 = vsel %vm1185, 1, 0
    %v1198 = vsel %vm1186, 1, 0
    %v1199 = vsel %vm1187, 1, 0
    %v1200 = vsel %vm1188, 1, 0
    %v1201 = vsel %vm1189, 1, 0
    %v1202 = vsel %vm1190, 1, 0
    %v1203 = vsel %vm1191, 1, 0
    %v1204 = vsel %vm1192, 1, 0
    %v1205 = vsel %vm1193, 1, 0
    %v1206 = vsel %vm1194, 1, 0
    %v1207 = vsel %vm1195, 1, 0
    %v1208 = vadd.s32 %v1196, %v1200
    %v1209 = vadd.s32 %v1197, %v1201
    %v1210 = vadd.s32 %v1198, %v1202
    %v1211 = vadd.s32 %v1199, %v1203
    %v1212 = vadd.s32 %v1208, %v1204
    %v1213 = vadd.s32 %v1209, %v1205
    %v1214 = vadd.s32 %v1210, %v1206
    %v1215 = vadd.s32 %v1211, %v1207
    %v1216 = vadd.s32 %v1212, %v1213
    %v1217 = vadd.s32 %v1214, %v1215
    %v1218 = vadd.s32 %v1216, %v1217
    %v1219 = vrot.slane %v1218, 4
    %v1220 = vadd.s32 %v1218, %v1219
    %v1221 = vrot.slane %v1220, 2
    %v1222 = vadd.s32 %v1220, %v1221
    %v1223 = vrot.slane %v1222, 1
    %v1224 = vadd.s32 %v1222, %v1223
    %v1225 = vadd.s32 %v1009, %v1224
    %1226 = vset.pattern.permute.xlu0 2
    %1227 = vperm.xlu0 %1226, %v27
    %v1228 = vpop.permute.xlu0 %1227
    %1229 = vset.pattern.permute.xlu0 2
    %1230 = vperm.xlu0 %1229, %v28
    %v1231 = vpop.permute.xlu0 %1230
    %1232 = vset.pattern.permute.xlu0 2
    %1233 = vperm.xlu0 %1232, %v29
    %v1234 = vpop.permute.xlu0 %1233
    %1235 = vset.pattern.permute.xlu0 2
    %1236 = vperm.xlu0 %1235, %v30
    %v1237 = vpop.permute.xlu0 %1236
    %1238 = vset.pattern.permute.xlu0 2
    %1239 = vperm.xlu0 %1238, %v31
    %v1240 = vpop.permute.xlu0 %1239
    %1241 = vset.pattern.permute.xlu0 2
    %1242 = vperm.xlu0 %1241, %v32
    %v1243 = vpop.permute.xlu0 %1242
    %1244 = vset.pattern.permute.xlu0 2
    %1245 = vperm.xlu0 %1244, %v33
    %v1246 = vpop.permute.xlu0 %1245
    %1247 = vset.pattern.permute.xlu0 2
    %1248 = vperm.xlu0 %1247, %v34
    %v1249 = vpop.permute.xlu0 %1248
    %1250 = vset.pattern.permute.xlu0 2
    %1251 = vperm.xlu0 %1250, %v35
    %v1252 = vpop.permute.xlu0 %1251
    %1253 = vset.pattern.permute.xlu0 2
    %1254 = vperm.xlu0 %1253, %v36
    %v1255 = vpop.permute.xlu0 %1254
    %1256 = vset.pattern.permute.xlu0 2
    %1257 = vperm.xlu0 %1256, %v37
    %v1258 = vpop.permute.xlu0 %1257
    %1259 = vset.pattern.permute.xlu0 2
    %1260 = vperm.xlu0 %1259, %v38
    %v1261 = vpop.permute.xlu0 %1260
    %vm1262 = vcmp.eq.s32.totalorder %v1228, %v26
    %vm1263 = vcmp.eq.s32.totalorder %v1231, %v26
    %vm1264 = vcmp.eq.s32.totalorder %v1234, %v26
    %vm1265 = vcmp.eq.s32.totalorder %v1237, %v26
    %vm1266 = vcmp.eq.s32.totalorder %v1240, %v26
    %vm1267 = vcmp.eq.s32.totalorder %v1243, %v26
    %vm1268 = vcmp.eq.s32.totalorder %v1246, %v26
    %vm1269 = vcmp.eq.s32.totalorder %v1249, %v26
    %vm1270 = vcmp.eq.s32.totalorder %v1252, %v26
    %vm1271 = vcmp.eq.s32.totalorder %v1255, %v26
    %vm1272 = vcmp.eq.s32.totalorder %v1258, %v26
    %vm1273 = vcmp.eq.s32.totalorder %v1261, %v26
    %v1274 = vsel %vm1262, 1, 0
    %v1275 = vsel %vm1263, 1, 0
    %v1276 = vsel %vm1264, 1, 0
    %v1277 = vsel %vm1265, 1, 0
    %v1278 = vsel %vm1266, 1, 0
    %v1279 = vsel %vm1267, 1, 0
    %v1280 = vsel %vm1268, 1, 0
    %v1281 = vsel %vm1269, 1, 0
    %v1282 = vsel %vm1270, 1, 0
    %v1283 = vsel %vm1271, 1, 0
    %v1284 = vsel %vm1272, 1, 0
    %v1285 = vsel %vm1273, 1, 0
    %v1286 = vadd.s32 %v1274, %v1278
    %v1287 = vadd.s32 %v1275, %v1279
    %v1288 = vadd.s32 %v1276, %v1280
    %v1289 = vadd.s32 %v1277, %v1281
    %v1290 = vadd.s32 %v1286, %v1282
    %v1291 = vadd.s32 %v1287, %v1283
    %v1292 = vadd.s32 %v1288, %v1284
    %v1293 = vadd.s32 %v1289, %v1285
    %v1294 = vadd.s32 %v1290, %v1291
    %v1295 = vadd.s32 %v1292, %v1293
    %v1296 = vadd.s32 %v1294, %v1295
    %v1297 = vrot.slane %v1296, 4
    %v1298 = vadd.s32 %v1296, %v1297
    %v1299 = vrot.slane %v1298, 2
    %v1300 = vadd.s32 %v1298, %v1299
    %v1301 = vrot.slane %v1300, 1
    %v1302 = vadd.s32 %v1300, %v1301
    %v1303 = vadd.s32 %v1087, %v1302
    %1304 = vset.pattern.permute.xlu0 2
    %1305 = vperm.xlu0 %1304, %v784
    %v1306 = vpop.permute.xlu0 %1305
    %1307 = vset.pattern.permute.xlu0 2
    %1308 = vperm.xlu0 %1307, %v785
    %v1309 = vpop.permute.xlu0 %1308
    %1310 = vset.pattern.permute.xlu0 2
    %1311 = vperm.xlu0 %1310, %v786
    %v1312 = vpop.permute.xlu0 %1311
    %1313 = vset.pattern.permute.xlu0 2
    %1314 = vperm.xlu0 %1313, %v787
    %v1315 = vpop.permute.xlu0 %1314
    %1316 = vset.pattern.permute.xlu0 2
    %1317 = vperm.xlu0 %1316, %v788
    %v1318 = vpop.permute.xlu0 %1317
    %1319 = vset.pattern.permute.xlu0 2
    %1320 = vperm.xlu0 %1319, %v789
    %v1321 = vpop.permute.xlu0 %1320
    %1322 = vset.pattern.permute.xlu0 2
    %1323 = vperm.xlu0 %1322, %v790
    %v1324 = vpop.permute.xlu0 %1323
    %1325 = vset.pattern.permute.xlu0 2
    %1326 = vperm.xlu0 %1325, %v791
    %v1327 = vpop.permute.xlu0 %1326
    %1328 = vset.pattern.permute.xlu0 2
    %1329 = vperm.xlu0 %1328, %v792
    %v1330 = vpop.permute.xlu0 %1329
    %1331 = vset.pattern.permute.xlu0 2
    %1332 = vperm.xlu0 %1331, %v793
    %v1333 = vpop.permute.xlu0 %1332
    %1334 = vset.pattern.permute.xlu0 2
    %1335 = vperm.xlu0 %1334, %v794
    %v1336 = vpop.permute.xlu0 %1335
    %1337 = vset.pattern.permute.xlu0 2
    %1338 = vperm.xlu0 %1337, %v795
    %v1339 = vpop.permute.xlu0 %1338
    %vm1340 = vcmp.eq.s32.totalorder %v1306, %v26
    %vm1341 = vcmp.eq.s32.totalorder %v1309, %v26
    %vm1342 = vcmp.eq.s32.totalorder %v1312, %v26
    %vm1343 = vcmp.eq.s32.totalorder %v1315, %v26
    %vm1344 = vcmp.eq.s32.totalorder %v1318, %v26
    %vm1345 = vcmp.eq.s32.totalorder %v1321, %v26
    %vm1346 = vcmp.eq.s32.totalorder %v1324, %v26
    %vm1347 = vcmp.eq.s32.totalorder %v1327, %v26
    %vm1348 = vcmp.eq.s32.totalorder %v1330, %v26
    %vm1349 = vcmp.eq.s32.totalorder %v1333, %v26
    %vm1350 = vcmp.eq.s32.totalorder %v1336, %v26
    %vm1351 = vcmp.eq.s32.totalorder %v1339, %v26
    %1352 = vset.pattern.permute.xlu0 2
    %1353 = vperm.xlu0 %1352, %v66
    %v1354 = vpop.permute.xlu0 %1353
    %1355 = vset.pattern.permute.xlu0 2
    %1356 = vperm.xlu0 %1355, %v67
    %v1357 = vpop.permute.xlu0 %1356
    %1358 = vset.pattern.permute.xlu0 2
    %1359 = vperm.xlu0 %1358, %v68
    %v1360 = vpop.permute.xlu0 %1359
    %1361 = vset.pattern.permute.xlu0 2
    %1362 = vperm.xlu0 %1361, %v69
    %v1363 = vpop.permute.xlu0 %1362
    %1364 = vset.pattern.permute.xlu0 2
    %1365 = vperm.xlu0 %1364, %v70
    %v1366 = vpop.permute.xlu0 %1365
    %1367 = vset.pattern.permute.xlu0 2
    %1368 = vperm.xlu0 %1367, %v71
    %v1369 = vpop.permute.xlu0 %1368
    %1370 = vset.pattern.permute.xlu0 2
    %1371 = vperm.xlu0 %1370, %v72
    %v1372 = vpop.permute.xlu0 %1371
    %1373 = vset.pattern.permute.xlu0 2
    %1374 = vperm.xlu0 %1373, %v73
    %v1375 = vpop.permute.xlu0 %1374
    %1376 = vset.pattern.permute.xlu0 2
    %1377 = vperm.xlu0 %1376, %v74
    %v1378 = vpop.permute.xlu0 %1377
    %1379 = vset.pattern.permute.xlu0 2
    %1380 = vperm.xlu0 %1379, %v75
    %v1381 = vpop.permute.xlu0 %1380
    %1382 = vset.pattern.permute.xlu0 2
    %1383 = vperm.xlu0 %1382, %v76
    %v1384 = vpop.permute.xlu0 %1383
    %1385 = vset.pattern.permute.xlu0 2
    %1386 = vperm.xlu0 %1385, %v77
    %v1387 = vpop.permute.xlu0 %1386
    %vm1388 = vcmp.eq.s32.totalorder %v1354, 1
    %vm1389 = vcmp.eq.s32.totalorder %v1357, 1
    %vm1390 = vcmp.eq.s32.totalorder %v1360, 1
    %vm1391 = vcmp.eq.s32.totalorder %v1363, 1
    %vm1392 = vcmp.eq.s32.totalorder %v1366, 1
    %vm1393 = vcmp.eq.s32.totalorder %v1369, 1
    %vm1394 = vcmp.eq.s32.totalorder %v1372, 1
    %vm1395 = vcmp.eq.s32.totalorder %v1375, 1
    %vm1396 = vcmp.eq.s32.totalorder %v1378, 1
    %vm1397 = vcmp.eq.s32.totalorder %v1381, 1
    %vm1398 = vcmp.eq.s32.totalorder %v1384, 1
    %vm1399 = vcmp.eq.s32.totalorder %v1387, 1
    %vm1400 = vmand %vm1340, %vm1388
    %vm1401 = vmand %vm1341, %vm1389
    %vm1402 = vmand %vm1342, %vm1390
    %vm1403 = vmand %vm1343, %vm1391
    %vm1404 = vmand %vm1344, %vm1392
    %vm1405 = vmand %vm1345, %vm1393
    %vm1406 = vmand %vm1346, %vm1394
    %vm1407 = vmand %vm1347, %vm1395
    %vm1408 = vmand %vm1348, %vm1396
    %vm1409 = vmand %vm1349, %vm1397
    %vm1410 = vmand %vm1350, %vm1398
    %vm1411 = vmand %vm1351, %vm1399
    %v1412 = vsel %vm1400, 1, 0
    %v1413 = vsel %vm1401, 1, 0
    %v1414 = vsel %vm1402, 1, 0
    %v1415 = vsel %vm1403, 1, 0
    %v1416 = vsel %vm1404, 1, 0
    %v1417 = vsel %vm1405, 1, 0
    %v1418 = vsel %vm1406, 1, 0
    %v1419 = vsel %vm1407, 1, 0
    %v1420 = vsel %vm1408, 1, 0
    %v1421 = vsel %vm1409, 1, 0
    %v1422 = vsel %vm1410, 1, 0
    %v1423 = vsel %vm1411, 1, 0
    %v1424 = vadd.s32 %v1412, %v1416
    %v1425 = vadd.s32 %v1413, %v1417
    %v1426 = vadd.s32 %v1414, %v1418
    %v1427 = vadd.s32 %v1415, %v1419
    %v1428 = vadd.s32 %v1424, %v1420
    %v1429 = vadd.s32 %v1425, %v1421
    %v1430 = vadd.s32 %v1426, %v1422
    %v1431 = vadd.s32 %v1427, %v1423
    %v1432 = vadd.s32 %v1428, %v1429
    %v1433 = vadd.s32 %v1430, %v1431
    %v1434 = vadd.s32 %v1432, %v1433
    %v1435 = vrot.slane %v1434, 4
    %v1436 = vadd.s32 %v1434, %v1435
    %v1437 = vrot.slane %v1436, 2
    %v1438 = vadd.s32 %v1436, %v1437
    %v1439 = vrot.slane %v1438, 1
    %v1440 = vadd.s32 %v1438, %v1439
    %v1441 = vadd.s32 %v1225, %v1440
    %1442 = vset.pattern.permute.xlu0 3
    %1443 = vperm.xlu0 %1442, %v27
    %v1444 = vpop.permute.xlu0 %1443
    %1445 = vset.pattern.permute.xlu0 3
    %1446 = vperm.xlu0 %1445, %v28
    %v1447 = vpop.permute.xlu0 %1446
    %1448 = vset.pattern.permute.xlu0 3
    %1449 = vperm.xlu0 %1448, %v29
    %v1450 = vpop.permute.xlu0 %1449
    %1451 = vset.pattern.permute.xlu0 3
    %1452 = vperm.xlu0 %1451, %v30
    %v1453 = vpop.permute.xlu0 %1452
    %1454 = vset.pattern.permute.xlu0 3
    %1455 = vperm.xlu0 %1454, %v31
    %v1456 = vpop.permute.xlu0 %1455
    %1457 = vset.pattern.permute.xlu0 3
    %1458 = vperm.xlu0 %1457, %v32
    %v1459 = vpop.permute.xlu0 %1458
    %1460 = vset.pattern.permute.xlu0 3
    %1461 = vperm.xlu0 %1460, %v33
    %v1462 = vpop.permute.xlu0 %1461
    %1463 = vset.pattern.permute.xlu0 3
    %1464 = vperm.xlu0 %1463, %v34
    %v1465 = vpop.permute.xlu0 %1464
    %1466 = vset.pattern.permute.xlu0 3
    %1467 = vperm.xlu0 %1466, %v35
    %v1468 = vpop.permute.xlu0 %1467
    %1469 = vset.pattern.permute.xlu0 3
    %1470 = vperm.xlu0 %1469, %v36
    %v1471 = vpop.permute.xlu0 %1470
    %1472 = vset.pattern.permute.xlu0 3
    %1473 = vperm.xlu0 %1472, %v37
    %v1474 = vpop.permute.xlu0 %1473
    %1475 = vset.pattern.permute.xlu0 3
    %1476 = vperm.xlu0 %1475, %v38
    %v1477 = vpop.permute.xlu0 %1476
    %vm1478 = vcmp.eq.s32.totalorder %v1444, %v26
    %vm1479 = vcmp.eq.s32.totalorder %v1447, %v26
    %vm1480 = vcmp.eq.s32.totalorder %v1450, %v26
    %vm1481 = vcmp.eq.s32.totalorder %v1453, %v26
    %vm1482 = vcmp.eq.s32.totalorder %v1456, %v26
    %vm1483 = vcmp.eq.s32.totalorder %v1459, %v26
    %vm1484 = vcmp.eq.s32.totalorder %v1462, %v26
    %vm1485 = vcmp.eq.s32.totalorder %v1465, %v26
    %vm1486 = vcmp.eq.s32.totalorder %v1468, %v26
    %vm1487 = vcmp.eq.s32.totalorder %v1471, %v26
    %vm1488 = vcmp.eq.s32.totalorder %v1474, %v26
    %vm1489 = vcmp.eq.s32.totalorder %v1477, %v26
    %v1490 = vsel %vm1478, 1, 0
    %v1491 = vsel %vm1479, 1, 0
    %v1492 = vsel %vm1480, 1, 0
    %v1493 = vsel %vm1481, 1, 0
    %v1494 = vsel %vm1482, 1, 0
    %v1495 = vsel %vm1483, 1, 0
    %v1496 = vsel %vm1484, 1, 0
    %v1497 = vsel %vm1485, 1, 0
    %v1498 = vsel %vm1486, 1, 0
    %v1499 = vsel %vm1487, 1, 0
    %v1500 = vsel %vm1488, 1, 0
    %v1501 = vsel %vm1489, 1, 0
    %v1502 = vadd.s32 %v1490, %v1494
    %v1503 = vadd.s32 %v1491, %v1495
    %v1504 = vadd.s32 %v1492, %v1496
    %v1505 = vadd.s32 %v1493, %v1497
    %v1506 = vadd.s32 %v1502, %v1498
    %v1507 = vadd.s32 %v1503, %v1499
    %v1508 = vadd.s32 %v1504, %v1500
    %v1509 = vadd.s32 %v1505, %v1501
    %v1510 = vadd.s32 %v1506, %v1507
    %v1511 = vadd.s32 %v1508, %v1509
    %v1512 = vadd.s32 %v1510, %v1511
    %v1513 = vrot.slane %v1512, 4
    %v1514 = vadd.s32 %v1512, %v1513
    %v1515 = vrot.slane %v1514, 2
    %v1516 = vadd.s32 %v1514, %v1515
    %v1517 = vrot.slane %v1516, 1
    %v1518 = vadd.s32 %v1516, %v1517
    %v1519 = vadd.s32 %v1303, %v1518
    %1520 = vset.pattern.permute.xlu0 3
    %1521 = vperm.xlu0 %1520, %v784
    %v1522 = vpop.permute.xlu0 %1521
    %1523 = vset.pattern.permute.xlu0 3
    %1524 = vperm.xlu0 %1523, %v785
    %v1525 = vpop.permute.xlu0 %1524
    %1526 = vset.pattern.permute.xlu0 3
    %1527 = vperm.xlu0 %1526, %v786
    %v1528 = vpop.permute.xlu0 %1527
    %1529 = vset.pattern.permute.xlu0 3
    %1530 = vperm.xlu0 %1529, %v787
    %v1531 = vpop.permute.xlu0 %1530
    %1532 = vset.pattern.permute.xlu0 3
    %1533 = vperm.xlu0 %1532, %v788
    %v1534 = vpop.permute.xlu0 %1533
    %1535 = vset.pattern.permute.xlu0 3
    %1536 = vperm.xlu0 %1535, %v789
    %v1537 = vpop.permute.xlu0 %1536
    %1538 = vset.pattern.permute.xlu0 3
    %1539 = vperm.xlu0 %1538, %v790
    %v1540 = vpop.permute.xlu0 %1539
    %1541 = vset.pattern.permute.xlu0 3
    %1542 = vperm.xlu0 %1541, %v791
    %v1543 = vpop.permute.xlu0 %1542
    %1544 = vset.pattern.permute.xlu0 3
    %1545 = vperm.xlu0 %1544, %v792
    %v1546 = vpop.permute.xlu0 %1545
    %1547 = vset.pattern.permute.xlu0 3
    %1548 = vperm.xlu0 %1547, %v793
    %v1549 = vpop.permute.xlu0 %1548
    %1550 = vset.pattern.permute.xlu0 3
    %1551 = vperm.xlu0 %1550, %v794
    %v1552 = vpop.permute.xlu0 %1551
    %1553 = vset.pattern.permute.xlu0 3
    %1554 = vperm.xlu0 %1553, %v795
    %v1555 = vpop.permute.xlu0 %1554
    %vm1556 = vcmp.eq.s32.totalorder %v1522, %v26
    %vm1557 = vcmp.eq.s32.totalorder %v1525, %v26
    %vm1558 = vcmp.eq.s32.totalorder %v1528, %v26
    %vm1559 = vcmp.eq.s32.totalorder %v1531, %v26
    %vm1560 = vcmp.eq.s32.totalorder %v1534, %v26
    %vm1561 = vcmp.eq.s32.totalorder %v1537, %v26
    %vm1562 = vcmp.eq.s32.totalorder %v1540, %v26
    %vm1563 = vcmp.eq.s32.totalorder %v1543, %v26
    %vm1564 = vcmp.eq.s32.totalorder %v1546, %v26
    %vm1565 = vcmp.eq.s32.totalorder %v1549, %v26
    %vm1566 = vcmp.eq.s32.totalorder %v1552, %v26
    %vm1567 = vcmp.eq.s32.totalorder %v1555, %v26
    %1568 = vset.pattern.permute.xlu0 3
    %1569 = vperm.xlu0 %1568, %v66
    %v1570 = vpop.permute.xlu0 %1569
    %1571 = vset.pattern.permute.xlu0 3
    %1572 = vperm.xlu0 %1571, %v67
    %v1573 = vpop.permute.xlu0 %1572
    %1574 = vset.pattern.permute.xlu0 3
    %1575 = vperm.xlu0 %1574, %v68
    %v1576 = vpop.permute.xlu0 %1575
    %1577 = vset.pattern.permute.xlu0 3
    %1578 = vperm.xlu0 %1577, %v69
    %v1579 = vpop.permute.xlu0 %1578
    %1580 = vset.pattern.permute.xlu0 3
    %1581 = vperm.xlu0 %1580, %v70
    %v1582 = vpop.permute.xlu0 %1581
    %1583 = vset.pattern.permute.xlu0 3
    %1584 = vperm.xlu0 %1583, %v71
    %v1585 = vpop.permute.xlu0 %1584
    %1586 = vset.pattern.permute.xlu0 3
    %1587 = vperm.xlu0 %1586, %v72
    %v1588 = vpop.permute.xlu0 %1587
    %1589 = vset.pattern.permute.xlu0 3
    %1590 = vperm.xlu0 %1589, %v73
    %v1591 = vpop.permute.xlu0 %1590
    %1592 = vset.pattern.permute.xlu0 3
    %1593 = vperm.xlu0 %1592, %v74
    %v1594 = vpop.permute.xlu0 %1593
    %1595 = vset.pattern.permute.xlu0 3
    %1596 = vperm.xlu0 %1595, %v75
    %v1597 = vpop.permute.xlu0 %1596
    %1598 = vset.pattern.permute.xlu0 3
    %1599 = vperm.xlu0 %1598, %v76
    %v1600 = vpop.permute.xlu0 %1599
    %1601 = vset.pattern.permute.xlu0 3
    %1602 = vperm.xlu0 %1601, %v77
    %v1603 = vpop.permute.xlu0 %1602
    %vm1604 = vcmp.eq.s32.totalorder %v1570, 1
    %vm1605 = vcmp.eq.s32.totalorder %v1573, 1
    %vm1606 = vcmp.eq.s32.totalorder %v1576, 1
    %vm1607 = vcmp.eq.s32.totalorder %v1579, 1
    %vm1608 = vcmp.eq.s32.totalorder %v1582, 1
    %vm1609 = vcmp.eq.s32.totalorder %v1585, 1
    %vm1610 = vcmp.eq.s32.totalorder %v1588, 1
    %vm1611 = vcmp.eq.s32.totalorder %v1591, 1
    %vm1612 = vcmp.eq.s32.totalorder %v1594, 1
    %vm1613 = vcmp.eq.s32.totalorder %v1597, 1
    %vm1614 = vcmp.eq.s32.totalorder %v1600, 1
    %vm1615 = vcmp.eq.s32.totalorder %v1603, 1
    %vm1616 = vmand %vm1556, %vm1604
    %vm1617 = vmand %vm1557, %vm1605
    %vm1618 = vmand %vm1558, %vm1606
    %vm1619 = vmand %vm1559, %vm1607
    %vm1620 = vmand %vm1560, %vm1608
    %vm1621 = vmand %vm1561, %vm1609
    %vm1622 = vmand %vm1562, %vm1610
    %vm1623 = vmand %vm1563, %vm1611
    %vm1624 = vmand %vm1564, %vm1612
    %vm1625 = vmand %vm1565, %vm1613
    %vm1626 = vmand %vm1566, %vm1614
    %vm1627 = vmand %vm1567, %vm1615
    %v1628 = vsel %vm1616, 1, 0
    %v1629 = vsel %vm1617, 1, 0
    %v1630 = vsel %vm1618, 1, 0
    %v1631 = vsel %vm1619, 1, 0
    %v1632 = vsel %vm1620, 1, 0
    %v1633 = vsel %vm1621, 1, 0
    %v1634 = vsel %vm1622, 1, 0
    %v1635 = vsel %vm1623, 1, 0
    %v1636 = vsel %vm1624, 1, 0
    %v1637 = vsel %vm1625, 1, 0
    %v1638 = vsel %vm1626, 1, 0
    %v1639 = vsel %vm1627, 1, 0
    %v1640 = vadd.s32 %v1628, %v1632
    %v1641 = vadd.s32 %v1629, %v1633
    %v1642 = vadd.s32 %v1630, %v1634
    %v1643 = vadd.s32 %v1631, %v1635
    %v1644 = vadd.s32 %v1640, %v1636
    %v1645 = vadd.s32 %v1641, %v1637
    %v1646 = vadd.s32 %v1642, %v1638
    %v1647 = vadd.s32 %v1643, %v1639
    %v1648 = vadd.s32 %v1644, %v1645
    %v1649 = vadd.s32 %v1646, %v1647
    %v1650 = vadd.s32 %v1648, %v1649
    %v1651 = vrot.slane %v1650, 4
    %v1652 = vadd.s32 %v1650, %v1651
    %v1653 = vrot.slane %v1652, 2
    %v1654 = vadd.s32 %v1652, %v1653
    %v1655 = vrot.slane %v1654, 1
    %v1656 = vadd.s32 %v1654, %v1655
    %v1657 = vadd.s32 %v1441, %v1656
    %1658 = vset.pattern.permute.xlu0 4
    %1659 = vperm.xlu0 %1658, %v27
    %v1660 = vpop.permute.xlu0 %1659
    %1661 = vset.pattern.permute.xlu0 4
    %1662 = vperm.xlu0 %1661, %v28
    %v1663 = vpop.permute.xlu0 %1662
    %1664 = vset.pattern.permute.xlu0 4
    %1665 = vperm.xlu0 %1664, %v29
    %v1666 = vpop.permute.xlu0 %1665
    %1667 = vset.pattern.permute.xlu0 4
    %1668 = vperm.xlu0 %1667, %v30
    %v1669 = vpop.permute.xlu0 %1668
    %1670 = vset.pattern.permute.xlu0 4
    %1671 = vperm.xlu0 %1670, %v31
    %v1672 = vpop.permute.xlu0 %1671
    %1673 = vset.pattern.permute.xlu0 4
    %1674 = vperm.xlu0 %1673, %v32
    %v1675 = vpop.permute.xlu0 %1674
    %1676 = vset.pattern.permute.xlu0 4
    %1677 = vperm.xlu0 %1676, %v33
    %v1678 = vpop.permute.xlu0 %1677
    %1679 = vset.pattern.permute.xlu0 4
    %1680 = vperm.xlu0 %1679, %v34
    %v1681 = vpop.permute.xlu0 %1680
    %1682 = vset.pattern.permute.xlu0 4
    %1683 = vperm.xlu0 %1682, %v35
    %v1684 = vpop.permute.xlu0 %1683
    %1685 = vset.pattern.permute.xlu0 4
    %1686 = vperm.xlu0 %1685, %v36
    %v1687 = vpop.permute.xlu0 %1686
    %1688 = vset.pattern.permute.xlu0 4
    %1689 = vperm.xlu0 %1688, %v37
    %v1690 = vpop.permute.xlu0 %1689
    %1691 = vset.pattern.permute.xlu0 4
    %1692 = vperm.xlu0 %1691, %v38
    %v1693 = vpop.permute.xlu0 %1692
    %vm1694 = vcmp.eq.s32.totalorder %v1660, %v26
    %vm1695 = vcmp.eq.s32.totalorder %v1663, %v26
    %vm1696 = vcmp.eq.s32.totalorder %v1666, %v26
    %vm1697 = vcmp.eq.s32.totalorder %v1669, %v26
    %vm1698 = vcmp.eq.s32.totalorder %v1672, %v26
    %vm1699 = vcmp.eq.s32.totalorder %v1675, %v26
    %vm1700 = vcmp.eq.s32.totalorder %v1678, %v26
    %vm1701 = vcmp.eq.s32.totalorder %v1681, %v26
    %vm1702 = vcmp.eq.s32.totalorder %v1684, %v26
    %vm1703 = vcmp.eq.s32.totalorder %v1687, %v26
    %vm1704 = vcmp.eq.s32.totalorder %v1690, %v26
    %vm1705 = vcmp.eq.s32.totalorder %v1693, %v26
    %v1706 = vsel %vm1694, 1, 0
    %v1707 = vsel %vm1695, 1, 0
    %v1708 = vsel %vm1696, 1, 0
    %v1709 = vsel %vm1697, 1, 0
    %v1710 = vsel %vm1698, 1, 0
    %v1711 = vsel %vm1699, 1, 0
    %v1712 = vsel %vm1700, 1, 0
    %v1713 = vsel %vm1701, 1, 0
    %v1714 = vsel %vm1702, 1, 0
    %v1715 = vsel %vm1703, 1, 0
    %v1716 = vsel %vm1704, 1, 0
    %v1717 = vsel %vm1705, 1, 0
    %v1718 = vadd.s32 %v1706, %v1710
    %v1719 = vadd.s32 %v1707, %v1711
    %v1720 = vadd.s32 %v1708, %v1712
    %v1721 = vadd.s32 %v1709, %v1713
    %v1722 = vadd.s32 %v1718, %v1714
    %v1723 = vadd.s32 %v1719, %v1715
    %v1724 = vadd.s32 %v1720, %v1716
    %v1725 = vadd.s32 %v1721, %v1717
    %v1726 = vadd.s32 %v1722, %v1723
    %v1727 = vadd.s32 %v1724, %v1725
    %v1728 = vadd.s32 %v1726, %v1727
    %v1729 = vrot.slane %v1728, 4
    %v1730 = vadd.s32 %v1728, %v1729
    %v1731 = vrot.slane %v1730, 2
    %v1732 = vadd.s32 %v1730, %v1731
    %v1733 = vrot.slane %v1732, 1
    %v1734 = vadd.s32 %v1732, %v1733
    %v1735 = vadd.s32 %v1519, %v1734
    %1736 = vset.pattern.permute.xlu0 4
    %1737 = vperm.xlu0 %1736, %v784
    %v1738 = vpop.permute.xlu0 %1737
    %1739 = vset.pattern.permute.xlu0 4
    %1740 = vperm.xlu0 %1739, %v785
    %v1741 = vpop.permute.xlu0 %1740
    %1742 = vset.pattern.permute.xlu0 4
    %1743 = vperm.xlu0 %1742, %v786
    %v1744 = vpop.permute.xlu0 %1743
    %1745 = vset.pattern.permute.xlu0 4
    %1746 = vperm.xlu0 %1745, %v787
    %v1747 = vpop.permute.xlu0 %1746
    %1748 = vset.pattern.permute.xlu0 4
    %1749 = vperm.xlu0 %1748, %v788
    %v1750 = vpop.permute.xlu0 %1749
    %1751 = vset.pattern.permute.xlu0 4
    %1752 = vperm.xlu0 %1751, %v789
    %v1753 = vpop.permute.xlu0 %1752
    %1754 = vset.pattern.permute.xlu0 4
    %1755 = vperm.xlu0 %1754, %v790
    %v1756 = vpop.permute.xlu0 %1755
    %1757 = vset.pattern.permute.xlu0 4
    %1758 = vperm.xlu0 %1757, %v791
    %v1759 = vpop.permute.xlu0 %1758
    %1760 = vset.pattern.permute.xlu0 4
    %1761 = vperm.xlu0 %1760, %v792
    %v1762 = vpop.permute.xlu0 %1761
    %1763 = vset.pattern.permute.xlu0 4
    %1764 = vperm.xlu0 %1763, %v793
    %v1765 = vpop.permute.xlu0 %1764
    %1766 = vset.pattern.permute.xlu0 4
    %1767 = vperm.xlu0 %1766, %v794
    %v1768 = vpop.permute.xlu0 %1767
    %1769 = vset.pattern.permute.xlu0 4
    %1770 = vperm.xlu0 %1769, %v795
    %v1771 = vpop.permute.xlu0 %1770
    %vm1772 = vcmp.eq.s32.totalorder %v1738, %v26
    %vm1773 = vcmp.eq.s32.totalorder %v1741, %v26
    %vm1774 = vcmp.eq.s32.totalorder %v1744, %v26
    %vm1775 = vcmp.eq.s32.totalorder %v1747, %v26
    %vm1776 = vcmp.eq.s32.totalorder %v1750, %v26
    %vm1777 = vcmp.eq.s32.totalorder %v1753, %v26
    %vm1778 = vcmp.eq.s32.totalorder %v1756, %v26
    %vm1779 = vcmp.eq.s32.totalorder %v1759, %v26
    %vm1780 = vcmp.eq.s32.totalorder %v1762, %v26
    %vm1781 = vcmp.eq.s32.totalorder %v1765, %v26
    %vm1782 = vcmp.eq.s32.totalorder %v1768, %v26
    %vm1783 = vcmp.eq.s32.totalorder %v1771, %v26
    %1784 = vset.pattern.permute.xlu0 4
    %1785 = vperm.xlu0 %1784, %v66
    %v1786 = vpop.permute.xlu0 %1785
    %1787 = vset.pattern.permute.xlu0 4
    %1788 = vperm.xlu0 %1787, %v67
    %v1789 = vpop.permute.xlu0 %1788
    %1790 = vset.pattern.permute.xlu0 4
    %1791 = vperm.xlu0 %1790, %v68
    %v1792 = vpop.permute.xlu0 %1791
    %1793 = vset.pattern.permute.xlu0 4
    %1794 = vperm.xlu0 %1793, %v69
    %v1795 = vpop.permute.xlu0 %1794
    %1796 = vset.pattern.permute.xlu0 4
    %1797 = vperm.xlu0 %1796, %v70
    %v1798 = vpop.permute.xlu0 %1797
    %1799 = vset.pattern.permute.xlu0 4
    %1800 = vperm.xlu0 %1799, %v71
    %v1801 = vpop.permute.xlu0 %1800
    %1802 = vset.pattern.permute.xlu0 4
    %1803 = vperm.xlu0 %1802, %v72
    %v1804 = vpop.permute.xlu0 %1803
    %1805 = vset.pattern.permute.xlu0 4
    %1806 = vperm.xlu0 %1805, %v73
    %v1807 = vpop.permute.xlu0 %1806
    %1808 = vset.pattern.permute.xlu0 4
    %1809 = vperm.xlu0 %1808, %v74
    %v1810 = vpop.permute.xlu0 %1809
    %1811 = vset.pattern.permute.xlu0 4
    %1812 = vperm.xlu0 %1811, %v75
    %v1813 = vpop.permute.xlu0 %1812
    %1814 = vset.pattern.permute.xlu0 4
    %1815 = vperm.xlu0 %1814, %v76
    %v1816 = vpop.permute.xlu0 %1815
    %1817 = vset.pattern.permute.xlu0 4
    %1818 = vperm.xlu0 %1817, %v77
    %v1819 = vpop.permute.xlu0 %1818
    %vm1820 = vcmp.eq.s32.totalorder %v1786, 1
    %vm1821 = vcmp.eq.s32.totalorder %v1789, 1
    %vm1822 = vcmp.eq.s32.totalorder %v1792, 1
    %vm1823 = vcmp.eq.s32.totalorder %v1795, 1
    %vm1824 = vcmp.eq.s32.totalorder %v1798, 1
    %vm1825 = vcmp.eq.s32.totalorder %v1801, 1
    %vm1826 = vcmp.eq.s32.totalorder %v1804, 1
    %vm1827 = vcmp.eq.s32.totalorder %v1807, 1
    %vm1828 = vcmp.eq.s32.totalorder %v1810, 1
    %vm1829 = vcmp.eq.s32.totalorder %v1813, 1
    %vm1830 = vcmp.eq.s32.totalorder %v1816, 1
    %vm1831 = vcmp.eq.s32.totalorder %v1819, 1
    %vm1832 = vmand %vm1772, %vm1820
    %vm1833 = vmand %vm1773, %vm1821
    %vm1834 = vmand %vm1774, %vm1822
    %vm1835 = vmand %vm1775, %vm1823
    %vm1836 = vmand %vm1776, %vm1824
    %vm1837 = vmand %vm1777, %vm1825
    %vm1838 = vmand %vm1778, %vm1826
    %vm1839 = vmand %vm1779, %vm1827
    %vm1840 = vmand %vm1780, %vm1828
    %vm1841 = vmand %vm1781, %vm1829
    %vm1842 = vmand %vm1782, %vm1830
    %vm1843 = vmand %vm1783, %vm1831
    %v1844 = vsel %vm1832, 1, 0
    %v1845 = vsel %vm1833, 1, 0
    %v1846 = vsel %vm1834, 1, 0
    %v1847 = vsel %vm1835, 1, 0
    %v1848 = vsel %vm1836, 1, 0
    %v1849 = vsel %vm1837, 1, 0
    %v1850 = vsel %vm1838, 1, 0
    %v1851 = vsel %vm1839, 1, 0
    %v1852 = vsel %vm1840, 1, 0
    %v1853 = vsel %vm1841, 1, 0
    %v1854 = vsel %vm1842, 1, 0
    %v1855 = vsel %vm1843, 1, 0
    %v1856 = vadd.s32 %v1844, %v1848
    %v1857 = vadd.s32 %v1845, %v1849
    %v1858 = vadd.s32 %v1846, %v1850
    %v1859 = vadd.s32 %v1847, %v1851
    %v1860 = vadd.s32 %v1856, %v1852
    %v1861 = vadd.s32 %v1857, %v1853
    %v1862 = vadd.s32 %v1858, %v1854
    %v1863 = vadd.s32 %v1859, %v1855
    %v1864 = vadd.s32 %v1860, %v1861
    %v1865 = vadd.s32 %v1862, %v1863
    %v1866 = vadd.s32 %v1864, %v1865
    %v1867 = vrot.slane %v1866, 4
    %v1868 = vadd.s32 %v1866, %v1867
    %v1869 = vrot.slane %v1868, 2
    %v1870 = vadd.s32 %v1868, %v1869
    %v1871 = vrot.slane %v1870, 1
    %v1872 = vadd.s32 %v1870, %v1871
    %v1873 = vadd.s32 %v1657, %v1872
    %1874 = vset.pattern.permute.xlu0 5
    %1875 = vperm.xlu0 %1874, %v27
    %v1876 = vpop.permute.xlu0 %1875
    %1877 = vset.pattern.permute.xlu0 5
    %1878 = vperm.xlu0 %1877, %v28
    %v1879 = vpop.permute.xlu0 %1878
    %1880 = vset.pattern.permute.xlu0 5
    %1881 = vperm.xlu0 %1880, %v29
    %v1882 = vpop.permute.xlu0 %1881
    %1883 = vset.pattern.permute.xlu0 5
    %1884 = vperm.xlu0 %1883, %v30
    %v1885 = vpop.permute.xlu0 %1884
    %1886 = vset.pattern.permute.xlu0 5
    %1887 = vperm.xlu0 %1886, %v31
    %v1888 = vpop.permute.xlu0 %1887
    %1889 = vset.pattern.permute.xlu0 5
    %1890 = vperm.xlu0 %1889, %v32
    %v1891 = vpop.permute.xlu0 %1890
    %1892 = vset.pattern.permute.xlu0 5
    %1893 = vperm.xlu0 %1892, %v33
    %v1894 = vpop.permute.xlu0 %1893
    %1895 = vset.pattern.permute.xlu0 5
    %1896 = vperm.xlu0 %1895, %v34
    %v1897 = vpop.permute.xlu0 %1896
    %1898 = vset.pattern.permute.xlu0 5
    %1899 = vperm.xlu0 %1898, %v35
    %v1900 = vpop.permute.xlu0 %1899
    %1901 = vset.pattern.permute.xlu0 5
    %1902 = vperm.xlu0 %1901, %v36
    %v1903 = vpop.permute.xlu0 %1902
    %1904 = vset.pattern.permute.xlu0 5
    %1905 = vperm.xlu0 %1904, %v37
    %v1906 = vpop.permute.xlu0 %1905
    %1907 = vset.pattern.permute.xlu0 5
    %1908 = vperm.xlu0 %1907, %v38
    %v1909 = vpop.permute.xlu0 %1908
    %vm1910 = vcmp.eq.s32.totalorder %v1876, %v26
    %vm1911 = vcmp.eq.s32.totalorder %v1879, %v26
    %vm1912 = vcmp.eq.s32.totalorder %v1882, %v26
    %vm1913 = vcmp.eq.s32.totalorder %v1885, %v26
    %vm1914 = vcmp.eq.s32.totalorder %v1888, %v26
    %vm1915 = vcmp.eq.s32.totalorder %v1891, %v26
    %vm1916 = vcmp.eq.s32.totalorder %v1894, %v26
    %vm1917 = vcmp.eq.s32.totalorder %v1897, %v26
    %vm1918 = vcmp.eq.s32.totalorder %v1900, %v26
    %vm1919 = vcmp.eq.s32.totalorder %v1903, %v26
    %vm1920 = vcmp.eq.s32.totalorder %v1906, %v26
    %vm1921 = vcmp.eq.s32.totalorder %v1909, %v26
    %v1922 = vsel %vm1910, 1, 0
    %v1923 = vsel %vm1911, 1, 0
    %v1924 = vsel %vm1912, 1, 0
    %v1925 = vsel %vm1913, 1, 0
    %v1926 = vsel %vm1914, 1, 0
    %v1927 = vsel %vm1915, 1, 0
    %v1928 = vsel %vm1916, 1, 0
    %v1929 = vsel %vm1917, 1, 0
    %v1930 = vsel %vm1918, 1, 0
    %v1931 = vsel %vm1919, 1, 0
    %v1932 = vsel %vm1920, 1, 0
    %v1933 = vsel %vm1921, 1, 0
    %v1934 = vadd.s32 %v1922, %v1926
    %v1935 = vadd.s32 %v1923, %v1927
    %v1936 = vadd.s32 %v1924, %v1928
    %v1937 = vadd.s32 %v1925, %v1929
    %v1938 = vadd.s32 %v1934, %v1930
    %v1939 = vadd.s32 %v1935, %v1931
    %v1940 = vadd.s32 %v1936, %v1932
    %v1941 = vadd.s32 %v1937, %v1933
    %v1942 = vadd.s32 %v1938, %v1939
    %v1943 = vadd.s32 %v1940, %v1941
    %v1944 = vadd.s32 %v1942, %v1943
    %v1945 = vrot.slane %v1944, 4
    %v1946 = vadd.s32 %v1944, %v1945
    %v1947 = vrot.slane %v1946, 2
    %v1948 = vadd.s32 %v1946, %v1947
    %v1949 = vrot.slane %v1948, 1
    %v1950 = vadd.s32 %v1948, %v1949
    %v1951 = vadd.s32 %v1735, %v1950
    %1952 = vset.pattern.permute.xlu0 5
    %1953 = vperm.xlu0 %1952, %v784
    %v1954 = vpop.permute.xlu0 %1953
    %1955 = vset.pattern.permute.xlu0 5
    %1956 = vperm.xlu0 %1955, %v785
    %v1957 = vpop.permute.xlu0 %1956
    %1958 = vset.pattern.permute.xlu0 5
    %1959 = vperm.xlu0 %1958, %v786
    %v1960 = vpop.permute.xlu0 %1959
    %1961 = vset.pattern.permute.xlu0 5
    %1962 = vperm.xlu0 %1961, %v787
    %v1963 = vpop.permute.xlu0 %1962
    %1964 = vset.pattern.permute.xlu0 5
    %1965 = vperm.xlu0 %1964, %v788
    %v1966 = vpop.permute.xlu0 %1965
    %1967 = vset.pattern.permute.xlu0 5
    %1968 = vperm.xlu0 %1967, %v789
    %v1969 = vpop.permute.xlu0 %1968
    %1970 = vset.pattern.permute.xlu0 5
    %1971 = vperm.xlu0 %1970, %v790
    %v1972 = vpop.permute.xlu0 %1971
    %1973 = vset.pattern.permute.xlu0 5
    %1974 = vperm.xlu0 %1973, %v791
    %v1975 = vpop.permute.xlu0 %1974
    %1976 = vset.pattern.permute.xlu0 5
    %1977 = vperm.xlu0 %1976, %v792
    %v1978 = vpop.permute.xlu0 %1977
    %1979 = vset.pattern.permute.xlu0 5
    %1980 = vperm.xlu0 %1979, %v793
    %v1981 = vpop.permute.xlu0 %1980
    %1982 = vset.pattern.permute.xlu0 5
    %1983 = vperm.xlu0 %1982, %v794
    %v1984 = vpop.permute.xlu0 %1983
    %1985 = vset.pattern.permute.xlu0 5
    %1986 = vperm.xlu0 %1985, %v795
    %v1987 = vpop.permute.xlu0 %1986
    %vm1988 = vcmp.eq.s32.totalorder %v1954, %v26
    %vm1989 = vcmp.eq.s32.totalorder %v1957, %v26
    %vm1990 = vcmp.eq.s32.totalorder %v1960, %v26
    %vm1991 = vcmp.eq.s32.totalorder %v1963, %v26
    %vm1992 = vcmp.eq.s32.totalorder %v1966, %v26
    %vm1993 = vcmp.eq.s32.totalorder %v1969, %v26
    %vm1994 = vcmp.eq.s32.totalorder %v1972, %v26
    %vm1995 = vcmp.eq.s32.totalorder %v1975, %v26
    %vm1996 = vcmp.eq.s32.totalorder %v1978, %v26
    %vm1997 = vcmp.eq.s32.totalorder %v1981, %v26
    %vm1998 = vcmp.eq.s32.totalorder %v1984, %v26
    %vm1999 = vcmp.eq.s32.totalorder %v1987, %v26
    %2000 = vset.pattern.permute.xlu0 5
    %2001 = vperm.xlu0 %2000, %v66
    %v2002 = vpop.permute.xlu0 %2001
    %2003 = vset.pattern.permute.xlu0 5
    %2004 = vperm.xlu0 %2003, %v67
    %v2005 = vpop.permute.xlu0 %2004
    %2006 = vset.pattern.permute.xlu0 5
    %2007 = vperm.xlu0 %2006, %v68
    %v2008 = vpop.permute.xlu0 %2007
    %2009 = vset.pattern.permute.xlu0 5
    %2010 = vperm.xlu0 %2009, %v69
    %v2011 = vpop.permute.xlu0 %2010
    %2012 = vset.pattern.permute.xlu0 5
    %2013 = vperm.xlu0 %2012, %v70
    %v2014 = vpop.permute.xlu0 %2013
    %2015 = vset.pattern.permute.xlu0 5
    %2016 = vperm.xlu0 %2015, %v71
    %v2017 = vpop.permute.xlu0 %2016
    %2018 = vset.pattern.permute.xlu0 5
    %2019 = vperm.xlu0 %2018, %v72
    %v2020 = vpop.permute.xlu0 %2019
    %2021 = vset.pattern.permute.xlu0 5
    %2022 = vperm.xlu0 %2021, %v73
    %v2023 = vpop.permute.xlu0 %2022
    %2024 = vset.pattern.permute.xlu0 5
    %2025 = vperm.xlu0 %2024, %v74
    %v2026 = vpop.permute.xlu0 %2025
    %2027 = vset.pattern.permute.xlu0 5
    %2028 = vperm.xlu0 %2027, %v75
    %v2029 = vpop.permute.xlu0 %2028
    %2030 = vset.pattern.permute.xlu0 5
    %2031 = vperm.xlu0 %2030, %v76
    %v2032 = vpop.permute.xlu0 %2031
    %2033 = vset.pattern.permute.xlu0 5
    %2034 = vperm.xlu0 %2033, %v77
    %v2035 = vpop.permute.xlu0 %2034
    %vm2036 = vcmp.eq.s32.totalorder %v2002, 1
    %vm2037 = vcmp.eq.s32.totalorder %v2005, 1
    %vm2038 = vcmp.eq.s32.totalorder %v2008, 1
    %vm2039 = vcmp.eq.s32.totalorder %v2011, 1
    %vm2040 = vcmp.eq.s32.totalorder %v2014, 1
    %vm2041 = vcmp.eq.s32.totalorder %v2017, 1
    %vm2042 = vcmp.eq.s32.totalorder %v2020, 1
    %vm2043 = vcmp.eq.s32.totalorder %v2023, 1
    %vm2044 = vcmp.eq.s32.totalorder %v2026, 1
    %vm2045 = vcmp.eq.s32.totalorder %v2029, 1
    %vm2046 = vcmp.eq.s32.totalorder %v2032, 1
    %vm2047 = vcmp.eq.s32.totalorder %v2035, 1
    %vm2048 = vmand %vm1988, %vm2036
    %vm2049 = vmand %vm1989, %vm2037
    %vm2050 = vmand %vm1990, %vm2038
    %vm2051 = vmand %vm1991, %vm2039
    %vm2052 = vmand %vm1992, %vm2040
    %vm2053 = vmand %vm1993, %vm2041
    %vm2054 = vmand %vm1994, %vm2042
    %vm2055 = vmand %vm1995, %vm2043
    %vm2056 = vmand %vm1996, %vm2044
    %vm2057 = vmand %vm1997, %vm2045
    %vm2058 = vmand %vm1998, %vm2046
    %vm2059 = vmand %vm1999, %vm2047
    %v2060 = vsel %vm2048, 1, 0
    %v2061 = vsel %vm2049, 1, 0
    %v2062 = vsel %vm2050, 1, 0
    %v2063 = vsel %vm2051, 1, 0
    %v2064 = vsel %vm2052, 1, 0
    %v2065 = vsel %vm2053, 1, 0
    %v2066 = vsel %vm2054, 1, 0
    %v2067 = vsel %vm2055, 1, 0
    %v2068 = vsel %vm2056, 1, 0
    %v2069 = vsel %vm2057, 1, 0
    %v2070 = vsel %vm2058, 1, 0
    %v2071 = vsel %vm2059, 1, 0
    %v2072 = vadd.s32 %v2060, %v2064
    %v2073 = vadd.s32 %v2061, %v2065
    %v2074 = vadd.s32 %v2062, %v2066
    %v2075 = vadd.s32 %v2063, %v2067
    %v2076 = vadd.s32 %v2072, %v2068
    %v2077 = vadd.s32 %v2073, %v2069
    %v2078 = vadd.s32 %v2074, %v2070
    %v2079 = vadd.s32 %v2075, %v2071
    %v2080 = vadd.s32 %v2076, %v2077
    %v2081 = vadd.s32 %v2078, %v2079
    %v2082 = vadd.s32 %v2080, %v2081
    %v2083 = vrot.slane %v2082, 4
    %v2084 = vadd.s32 %v2082, %v2083
    %v2085 = vrot.slane %v2084, 2
    %v2086 = vadd.s32 %v2084, %v2085
    %v2087 = vrot.slane %v2086, 1
    %v2088 = vadd.s32 %v2086, %v2087
    %v2089 = vadd.s32 %v1873, %v2088
    %2090 = vset.pattern.permute.xlu0 6
    %2091 = vperm.xlu0 %2090, %v27
    %v2092 = vpop.permute.xlu0 %2091
    %2093 = vset.pattern.permute.xlu0 6
    %2094 = vperm.xlu0 %2093, %v28
    %v2095 = vpop.permute.xlu0 %2094
    %2096 = vset.pattern.permute.xlu0 6
    %2097 = vperm.xlu0 %2096, %v29
    %v2098 = vpop.permute.xlu0 %2097
    %2099 = vset.pattern.permute.xlu0 6
    %2100 = vperm.xlu0 %2099, %v30
    %v2101 = vpop.permute.xlu0 %2100
    %2102 = vset.pattern.permute.xlu0 6
    %2103 = vperm.xlu0 %2102, %v31
    %v2104 = vpop.permute.xlu0 %2103
    %2105 = vset.pattern.permute.xlu0 6
    %2106 = vperm.xlu0 %2105, %v32
    %v2107 = vpop.permute.xlu0 %2106
    %2108 = vset.pattern.permute.xlu0 6
    %2109 = vperm.xlu0 %2108, %v33
    %v2110 = vpop.permute.xlu0 %2109
    %2111 = vset.pattern.permute.xlu0 6
    %2112 = vperm.xlu0 %2111, %v34
    %v2113 = vpop.permute.xlu0 %2112
    %2114 = vset.pattern.permute.xlu0 6
    %2115 = vperm.xlu0 %2114, %v35
    %v2116 = vpop.permute.xlu0 %2115
    %2117 = vset.pattern.permute.xlu0 6
    %2118 = vperm.xlu0 %2117, %v36
    %v2119 = vpop.permute.xlu0 %2118
    %2120 = vset.pattern.permute.xlu0 6
    %2121 = vperm.xlu0 %2120, %v37
    %v2122 = vpop.permute.xlu0 %2121
    %2123 = vset.pattern.permute.xlu0 6
    %2124 = vperm.xlu0 %2123, %v38
    %v2125 = vpop.permute.xlu0 %2124
    %vm2126 = vcmp.eq.s32.totalorder %v2092, %v26
    %vm2127 = vcmp.eq.s32.totalorder %v2095, %v26
    %vm2128 = vcmp.eq.s32.totalorder %v2098, %v26
    %vm2129 = vcmp.eq.s32.totalorder %v2101, %v26
    %vm2130 = vcmp.eq.s32.totalorder %v2104, %v26
    %vm2131 = vcmp.eq.s32.totalorder %v2107, %v26
    %vm2132 = vcmp.eq.s32.totalorder %v2110, %v26
    %vm2133 = vcmp.eq.s32.totalorder %v2113, %v26
    %vm2134 = vcmp.eq.s32.totalorder %v2116, %v26
    %vm2135 = vcmp.eq.s32.totalorder %v2119, %v26
    %vm2136 = vcmp.eq.s32.totalorder %v2122, %v26
    %vm2137 = vcmp.eq.s32.totalorder %v2125, %v26
    %v2138 = vsel %vm2126, 1, 0
    %v2139 = vsel %vm2127, 1, 0
    %v2140 = vsel %vm2128, 1, 0
    %v2141 = vsel %vm2129, 1, 0
    %v2142 = vsel %vm2130, 1, 0
    %v2143 = vsel %vm2131, 1, 0
    %v2144 = vsel %vm2132, 1, 0
    %v2145 = vsel %vm2133, 1, 0
    %v2146 = vsel %vm2134, 1, 0
    %v2147 = vsel %vm2135, 1, 0
    %v2148 = vsel %vm2136, 1, 0
    %v2149 = vsel %vm2137, 1, 0
    %v2150 = vadd.s32 %v2138, %v2142
    %v2151 = vadd.s32 %v2139, %v2143
    %v2152 = vadd.s32 %v2140, %v2144
    %v2153 = vadd.s32 %v2141, %v2145
    %v2154 = vadd.s32 %v2150, %v2146
    %v2155 = vadd.s32 %v2151, %v2147
    %v2156 = vadd.s32 %v2152, %v2148
    %v2157 = vadd.s32 %v2153, %v2149
    %v2158 = vadd.s32 %v2154, %v2155
    %v2159 = vadd.s32 %v2156, %v2157
    %v2160 = vadd.s32 %v2158, %v2159
    %v2161 = vrot.slane %v2160, 4
    %v2162 = vadd.s32 %v2160, %v2161
    %v2163 = vrot.slane %v2162, 2
    %v2164 = vadd.s32 %v2162, %v2163
    %v2165 = vrot.slane %v2164, 1
    %v2166 = vadd.s32 %v2164, %v2165
    %v2167 = vadd.s32 %v1951, %v2166
    %2168 = vset.pattern.permute.xlu0 6
    %2169 = vperm.xlu0 %2168, %v784
    %v2170 = vpop.permute.xlu0 %2169
    %2171 = vset.pattern.permute.xlu0 6
    %2172 = vperm.xlu0 %2171, %v785
    %v2173 = vpop.permute.xlu0 %2172
    %2174 = vset.pattern.permute.xlu0 6
    %2175 = vperm.xlu0 %2174, %v786
    %v2176 = vpop.permute.xlu0 %2175
    %2177 = vset.pattern.permute.xlu0 6
    %2178 = vperm.xlu0 %2177, %v787
    %v2179 = vpop.permute.xlu0 %2178
    %2180 = vset.pattern.permute.xlu0 6
    %2181 = vperm.xlu0 %2180, %v788
    %v2182 = vpop.permute.xlu0 %2181
    %2183 = vset.pattern.permute.xlu0 6
    %2184 = vperm.xlu0 %2183, %v789
    %v2185 = vpop.permute.xlu0 %2184
    %2186 = vset.pattern.permute.xlu0 6
    %2187 = vperm.xlu0 %2186, %v790
    %v2188 = vpop.permute.xlu0 %2187
    %2189 = vset.pattern.permute.xlu0 6
    %2190 = vperm.xlu0 %2189, %v791
    %v2191 = vpop.permute.xlu0 %2190
    %2192 = vset.pattern.permute.xlu0 6
    %2193 = vperm.xlu0 %2192, %v792
    %v2194 = vpop.permute.xlu0 %2193
    %2195 = vset.pattern.permute.xlu0 6
    %2196 = vperm.xlu0 %2195, %v793
    %v2197 = vpop.permute.xlu0 %2196
    %2198 = vset.pattern.permute.xlu0 6
    %2199 = vperm.xlu0 %2198, %v794
    %v2200 = vpop.permute.xlu0 %2199
    %2201 = vset.pattern.permute.xlu0 6
    %2202 = vperm.xlu0 %2201, %v795
    %v2203 = vpop.permute.xlu0 %2202
    %vm2204 = vcmp.eq.s32.totalorder %v2170, %v26
    %vm2205 = vcmp.eq.s32.totalorder %v2173, %v26
    %vm2206 = vcmp.eq.s32.totalorder %v2176, %v26
    %vm2207 = vcmp.eq.s32.totalorder %v2179, %v26
    %vm2208 = vcmp.eq.s32.totalorder %v2182, %v26
    %vm2209 = vcmp.eq.s32.totalorder %v2185, %v26
    %vm2210 = vcmp.eq.s32.totalorder %v2188, %v26
    %vm2211 = vcmp.eq.s32.totalorder %v2191, %v26
    %vm2212 = vcmp.eq.s32.totalorder %v2194, %v26
    %vm2213 = vcmp.eq.s32.totalorder %v2197, %v26
    %vm2214 = vcmp.eq.s32.totalorder %v2200, %v26
    %vm2215 = vcmp.eq.s32.totalorder %v2203, %v26
    %2216 = vset.pattern.permute.xlu0 6
    %2217 = vperm.xlu0 %2216, %v66
    %v2218 = vpop.permute.xlu0 %2217
    %2219 = vset.pattern.permute.xlu0 6
    %2220 = vperm.xlu0 %2219, %v67
    %v2221 = vpop.permute.xlu0 %2220
    %2222 = vset.pattern.permute.xlu0 6
    %2223 = vperm.xlu0 %2222, %v68
    %v2224 = vpop.permute.xlu0 %2223
    %2225 = vset.pattern.permute.xlu0 6
    %2226 = vperm.xlu0 %2225, %v69
    %v2227 = vpop.permute.xlu0 %2226
    %2228 = vset.pattern.permute.xlu0 6
    %2229 = vperm.xlu0 %2228, %v70
    %v2230 = vpop.permute.xlu0 %2229
    %2231 = vset.pattern.permute.xlu0 6
    %2232 = vperm.xlu0 %2231, %v71
    %v2233 = vpop.permute.xlu0 %2232
    %2234 = vset.pattern.permute.xlu0 6
    %2235 = vperm.xlu0 %2234, %v72
    %v2236 = vpop.permute.xlu0 %2235
    %2237 = vset.pattern.permute.xlu0 6
    %2238 = vperm.xlu0 %2237, %v73
    %v2239 = vpop.permute.xlu0 %2238
    %2240 = vset.pattern.permute.xlu0 6
    %2241 = vperm.xlu0 %2240, %v74
    %v2242 = vpop.permute.xlu0 %2241
    %2243 = vset.pattern.permute.xlu0 6
    %2244 = vperm.xlu0 %2243, %v75
    %v2245 = vpop.permute.xlu0 %2244
    %2246 = vset.pattern.permute.xlu0 6
    %2247 = vperm.xlu0 %2246, %v76
    %v2248 = vpop.permute.xlu0 %2247
    %2249 = vset.pattern.permute.xlu0 6
    %2250 = vperm.xlu0 %2249, %v77
    %v2251 = vpop.permute.xlu0 %2250
    %vm2252 = vcmp.eq.s32.totalorder %v2218, 1
    %vm2253 = vcmp.eq.s32.totalorder %v2221, 1
    %vm2254 = vcmp.eq.s32.totalorder %v2224, 1
    %vm2255 = vcmp.eq.s32.totalorder %v2227, 1
    %vm2256 = vcmp.eq.s32.totalorder %v2230, 1
    %vm2257 = vcmp.eq.s32.totalorder %v2233, 1
    %vm2258 = vcmp.eq.s32.totalorder %v2236, 1
    %vm2259 = vcmp.eq.s32.totalorder %v2239, 1
    %vm2260 = vcmp.eq.s32.totalorder %v2242, 1
    %vm2261 = vcmp.eq.s32.totalorder %v2245, 1
    %vm2262 = vcmp.eq.s32.totalorder %v2248, 1
    %vm2263 = vcmp.eq.s32.totalorder %v2251, 1
    %vm2264 = vmand %vm2204, %vm2252
    %vm2265 = vmand %vm2205, %vm2253
    %vm2266 = vmand %vm2206, %vm2254
    %vm2267 = vmand %vm2207, %vm2255
    %vm2268 = vmand %vm2208, %vm2256
    %vm2269 = vmand %vm2209, %vm2257
    %vm2270 = vmand %vm2210, %vm2258
    %vm2271 = vmand %vm2211, %vm2259
    %vm2272 = vmand %vm2212, %vm2260
    %vm2273 = vmand %vm2213, %vm2261
    %vm2274 = vmand %vm2214, %vm2262
    %vm2275 = vmand %vm2215, %vm2263
    %v2276 = vsel %vm2264, 1, 0
    %v2277 = vsel %vm2265, 1, 0
    %v2278 = vsel %vm2266, 1, 0
    %v2279 = vsel %vm2267, 1, 0
    %v2280 = vsel %vm2268, 1, 0
    %v2281 = vsel %vm2269, 1, 0
    %v2282 = vsel %vm2270, 1, 0
    %v2283 = vsel %vm2271, 1, 0
    %v2284 = vsel %vm2272, 1, 0
    %v2285 = vsel %vm2273, 1, 0
    %v2286 = vsel %vm2274, 1, 0
    %v2287 = vsel %vm2275, 1, 0
    %v2288 = vadd.s32 %v2276, %v2280
    %v2289 = vadd.s32 %v2277, %v2281
    %v2290 = vadd.s32 %v2278, %v2282
    %v2291 = vadd.s32 %v2279, %v2283
    %v2292 = vadd.s32 %v2288, %v2284
    %v2293 = vadd.s32 %v2289, %v2285
    %v2294 = vadd.s32 %v2290, %v2286
    %v2295 = vadd.s32 %v2291, %v2287
    %v2296 = vadd.s32 %v2292, %v2293
    %v2297 = vadd.s32 %v2294, %v2295
    %v2298 = vadd.s32 %v2296, %v2297
    %v2299 = vrot.slane %v2298, 4
    %v2300 = vadd.s32 %v2298, %v2299
    %v2301 = vrot.slane %v2300, 2
    %v2302 = vadd.s32 %v2300, %v2301
    %v2303 = vrot.slane %v2302, 1
    %v2304 = vadd.s32 %v2302, %v2303
    %v2305 = vadd.s32 %v2089, %v2304
    %2306 = vset.pattern.permute.xlu0 7
    %2307 = vperm.xlu0 %2306, %v27
    %v2308 = vpop.permute.xlu0 %2307
    %2309 = vset.pattern.permute.xlu0 7
    %2310 = vperm.xlu0 %2309, %v28
    %v2311 = vpop.permute.xlu0 %2310
    %2312 = vset.pattern.permute.xlu0 7
    %2313 = vperm.xlu0 %2312, %v29
    %v2314 = vpop.permute.xlu0 %2313
    %2315 = vset.pattern.permute.xlu0 7
    %2316 = vperm.xlu0 %2315, %v30
    %v2317 = vpop.permute.xlu0 %2316
    %2318 = vset.pattern.permute.xlu0 7
    %2319 = vperm.xlu0 %2318, %v31
    %v2320 = vpop.permute.xlu0 %2319
    %2321 = vset.pattern.permute.xlu0 7
    %2322 = vperm.xlu0 %2321, %v32
    %v2323 = vpop.permute.xlu0 %2322
    %2324 = vset.pattern.permute.xlu0 7
    %2325 = vperm.xlu0 %2324, %v33
    %v2326 = vpop.permute.xlu0 %2325
    %2327 = vset.pattern.permute.xlu0 7
    %2328 = vperm.xlu0 %2327, %v34
    %v2329 = vpop.permute.xlu0 %2328
    %2330 = vset.pattern.permute.xlu0 7
    %2331 = vperm.xlu0 %2330, %v35
    %v2332 = vpop.permute.xlu0 %2331
    %2333 = vset.pattern.permute.xlu0 7
    %2334 = vperm.xlu0 %2333, %v36
    %v2335 = vpop.permute.xlu0 %2334
    %2336 = vset.pattern.permute.xlu0 7
    %2337 = vperm.xlu0 %2336, %v37
    %v2338 = vpop.permute.xlu0 %2337
    %2339 = vset.pattern.permute.xlu0 7
    %2340 = vperm.xlu0 %2339, %v38
    %v2341 = vpop.permute.xlu0 %2340
    %vm2342 = vcmp.eq.s32.totalorder %v2308, %v26
    %vm2343 = vcmp.eq.s32.totalorder %v2311, %v26
    %vm2344 = vcmp.eq.s32.totalorder %v2314, %v26
    %vm2345 = vcmp.eq.s32.totalorder %v2317, %v26
    %vm2346 = vcmp.eq.s32.totalorder %v2320, %v26
    %vm2347 = vcmp.eq.s32.totalorder %v2323, %v26
    %vm2348 = vcmp.eq.s32.totalorder %v2326, %v26
    %vm2349 = vcmp.eq.s32.totalorder %v2329, %v26
    %vm2350 = vcmp.eq.s32.totalorder %v2332, %v26
    %vm2351 = vcmp.eq.s32.totalorder %v2335, %v26
    %vm2352 = vcmp.eq.s32.totalorder %v2338, %v26
    %vm2353 = vcmp.eq.s32.totalorder %v2341, %v26
    %v2354 = vsel %vm2342, 1, 0
    %v2355 = vsel %vm2343, 1, 0
    %v2356 = vsel %vm2344, 1, 0
    %v2357 = vsel %vm2345, 1, 0
    %v2358 = vsel %vm2346, 1, 0
    %v2359 = vsel %vm2347, 1, 0
    %v2360 = vsel %vm2348, 1, 0
    %v2361 = vsel %vm2349, 1, 0
    %v2362 = vsel %vm2350, 1, 0
    %v2363 = vsel %vm2351, 1, 0
    %v2364 = vsel %vm2352, 1, 0
    %v2365 = vsel %vm2353, 1, 0
    %v2366 = vadd.s32 %v2354, %v2358
    %v2367 = vadd.s32 %v2355, %v2359
    %v2368 = vadd.s32 %v2356, %v2360
    %v2369 = vadd.s32 %v2357, %v2361
    %v2370 = vadd.s32 %v2366, %v2362
    %v2371 = vadd.s32 %v2367, %v2363
    %v2372 = vadd.s32 %v2368, %v2364
    %v2373 = vadd.s32 %v2369, %v2365
    %v2374 = vadd.s32 %v2370, %v2371
    %v2375 = vadd.s32 %v2372, %v2373
    %v2376 = vadd.s32 %v2374, %v2375
    %v2377 = vrot.slane %v2376, 4
    %v2378 = vadd.s32 %v2376, %v2377
    %v2379 = vrot.slane %v2378, 2
    %v2380 = vadd.s32 %v2378, %v2379
    %v2381 = vrot.slane %v2380, 1
    %v2382 = vadd.s32 %v2380, %v2381
    %v2383 = vadd.s32 %v2167, %v2382
    %2384 = vset.pattern.permute.xlu0 7
    %2385 = vperm.xlu0 %2384, %v784
    %v2386 = vpop.permute.xlu0 %2385
    %2387 = vset.pattern.permute.xlu0 7
    %2388 = vperm.xlu0 %2387, %v785
    %v2389 = vpop.permute.xlu0 %2388
    %2390 = vset.pattern.permute.xlu0 7
    %2391 = vperm.xlu0 %2390, %v786
    %v2392 = vpop.permute.xlu0 %2391
    %2393 = vset.pattern.permute.xlu0 7
    %2394 = vperm.xlu0 %2393, %v787
    %v2395 = vpop.permute.xlu0 %2394
    %2396 = vset.pattern.permute.xlu0 7
    %2397 = vperm.xlu0 %2396, %v788
    %v2398 = vpop.permute.xlu0 %2397
    %2399 = vset.pattern.permute.xlu0 7
    %2400 = vperm.xlu0 %2399, %v789
    %v2401 = vpop.permute.xlu0 %2400
    %2402 = vset.pattern.permute.xlu0 7
    %2403 = vperm.xlu0 %2402, %v790
    %v2404 = vpop.permute.xlu0 %2403
    %2405 = vset.pattern.permute.xlu0 7
    %2406 = vperm.xlu0 %2405, %v791
    %v2407 = vpop.permute.xlu0 %2406
    %2408 = vset.pattern.permute.xlu0 7
    %2409 = vperm.xlu0 %2408, %v792
    %v2410 = vpop.permute.xlu0 %2409
    %2411 = vset.pattern.permute.xlu0 7
    %2412 = vperm.xlu0 %2411, %v793
    %v2413 = vpop.permute.xlu0 %2412
    %2414 = vset.pattern.permute.xlu0 7
    %2415 = vperm.xlu0 %2414, %v794
    %v2416 = vpop.permute.xlu0 %2415
    %2417 = vset.pattern.permute.xlu0 7
    %2418 = vperm.xlu0 %2417, %v795
    %v2419 = vpop.permute.xlu0 %2418
    %vm2420 = vcmp.eq.s32.totalorder %v2386, %v26
    %vm2421 = vcmp.eq.s32.totalorder %v2389, %v26
    %vm2422 = vcmp.eq.s32.totalorder %v2392, %v26
    %vm2423 = vcmp.eq.s32.totalorder %v2395, %v26
    %vm2424 = vcmp.eq.s32.totalorder %v2398, %v26
    %vm2425 = vcmp.eq.s32.totalorder %v2401, %v26
    %vm2426 = vcmp.eq.s32.totalorder %v2404, %v26
    %vm2427 = vcmp.eq.s32.totalorder %v2407, %v26
    %vm2428 = vcmp.eq.s32.totalorder %v2410, %v26
    %vm2429 = vcmp.eq.s32.totalorder %v2413, %v26
    %vm2430 = vcmp.eq.s32.totalorder %v2416, %v26
    %vm2431 = vcmp.eq.s32.totalorder %v2419, %v26
    %2432 = vset.pattern.permute.xlu0 7
    %2433 = vperm.xlu0 %2432, %v66
    %v2434 = vpop.permute.xlu0 %2433
    %2435 = vset.pattern.permute.xlu0 7
    %2436 = vperm.xlu0 %2435, %v67
    %v2437 = vpop.permute.xlu0 %2436
    %2438 = vset.pattern.permute.xlu0 7
    %2439 = vperm.xlu0 %2438, %v68
    %v2440 = vpop.permute.xlu0 %2439
    %2441 = vset.pattern.permute.xlu0 7
    %2442 = vperm.xlu0 %2441, %v69
    %v2443 = vpop.permute.xlu0 %2442
    %2444 = vset.pattern.permute.xlu0 7
    %2445 = vperm.xlu0 %2444, %v70
    %v2446 = vpop.permute.xlu0 %2445
    %2447 = vset.pattern.permute.xlu0 7
    %2448 = vperm.xlu0 %2447, %v71
    %v2449 = vpop.permute.xlu0 %2448
    %2450 = vset.pattern.permute.xlu0 7
    %2451 = vperm.xlu0 %2450, %v72
    %v2452 = vpop.permute.xlu0 %2451
    %2453 = vset.pattern.permute.xlu0 7
    %2454 = vperm.xlu0 %2453, %v73
    %v2455 = vpop.permute.xlu0 %2454
    %2456 = vset.pattern.permute.xlu0 7
    %2457 = vperm.xlu0 %2456, %v74
    %v2458 = vpop.permute.xlu0 %2457
    %2459 = vset.pattern.permute.xlu0 7
    %2460 = vperm.xlu0 %2459, %v75
    %v2461 = vpop.permute.xlu0 %2460
    %2462 = vset.pattern.permute.xlu0 7
    %2463 = vperm.xlu0 %2462, %v76
    %v2464 = vpop.permute.xlu0 %2463
    %2465 = vset.pattern.permute.xlu0 7
    %2466 = vperm.xlu0 %2465, %v77
    %v2467 = vpop.permute.xlu0 %2466
    %vm2468 = vcmp.eq.s32.totalorder %v2434, 1
    %vm2469 = vcmp.eq.s32.totalorder %v2437, 1
    %vm2470 = vcmp.eq.s32.totalorder %v2440, 1
    %vm2471 = vcmp.eq.s32.totalorder %v2443, 1
    %vm2472 = vcmp.eq.s32.totalorder %v2446, 1
    %vm2473 = vcmp.eq.s32.totalorder %v2449, 1
    %vm2474 = vcmp.eq.s32.totalorder %v2452, 1
    %vm2475 = vcmp.eq.s32.totalorder %v2455, 1
    %vm2476 = vcmp.eq.s32.totalorder %v2458, 1
    %vm2477 = vcmp.eq.s32.totalorder %v2461, 1
    %vm2478 = vcmp.eq.s32.totalorder %v2464, 1
    %vm2479 = vcmp.eq.s32.totalorder %v2467, 1
    %vm2480 = vmand %vm2420, %vm2468
    %vm2481 = vmand %vm2421, %vm2469
    %vm2482 = vmand %vm2422, %vm2470
    %vm2483 = vmand %vm2423, %vm2471
    %vm2484 = vmand %vm2424, %vm2472
    %vm2485 = vmand %vm2425, %vm2473
    %vm2486 = vmand %vm2426, %vm2474
    %vm2487 = vmand %vm2427, %vm2475
    %vm2488 = vmand %vm2428, %vm2476
    %vm2489 = vmand %vm2429, %vm2477
    %vm2490 = vmand %vm2430, %vm2478
    %vm2491 = vmand %vm2431, %vm2479
    %v2492 = vsel %vm2480, 1, 0
    %v2493 = vsel %vm2481, 1, 0
    %v2494 = vsel %vm2482, 1, 0
    %v2495 = vsel %vm2483, 1, 0
    %v2496 = vsel %vm2484, 1, 0
    %v2497 = vsel %vm2485, 1, 0
    %v2498 = vsel %vm2486, 1, 0
    %v2499 = vsel %vm2487, 1, 0
    %v2500 = vsel %vm2488, 1, 0
    %v2501 = vsel %vm2489, 1, 0
    %v2502 = vsel %vm2490, 1, 0
    %v2503 = vsel %vm2491, 1, 0
    %v2504 = vadd.s32 %v2492, %v2496
    %v2505 = vadd.s32 %v2493, %v2497
    %v2506 = vadd.s32 %v2494, %v2498
    %v2507 = vadd.s32 %v2495, %v2499
    %v2508 = vadd.s32 %v2504, %v2500
    %v2509 = vadd.s32 %v2505, %v2501
    %v2510 = vadd.s32 %v2506, %v2502
    %v2511 = vadd.s32 %v2507, %v2503
    %v2512 = vadd.s32 %v2508, %v2509
    %v2513 = vadd.s32 %v2510, %v2511
    %v2514 = vadd.s32 %v2512, %v2513
    %v2515 = vrot.slane %v2514, 4
    %v2516 = vadd.s32 %v2514, %v2515
    %v2517 = vrot.slane %v2516, 2
    %v2518 = vadd.s32 %v2516, %v2517
    %v2519 = vrot.slane %v2518, 1
    %v2520 = vadd.s32 %v2518, %v2519
    %v2521 = vadd.s32 %v2305, %v2520
    %2522 = vset.pattern.permute.xlu0 8
    %2523 = vperm.xlu0 %2522, %v27
    %v2524 = vpop.permute.xlu0 %2523
    %2525 = vset.pattern.permute.xlu0 8
    %2526 = vperm.xlu0 %2525, %v28
    %v2527 = vpop.permute.xlu0 %2526
    %2528 = vset.pattern.permute.xlu0 8
    %2529 = vperm.xlu0 %2528, %v29
    %v2530 = vpop.permute.xlu0 %2529
    %2531 = vset.pattern.permute.xlu0 8
    %2532 = vperm.xlu0 %2531, %v30
    %v2533 = vpop.permute.xlu0 %2532
    %2534 = vset.pattern.permute.xlu0 8
    %2535 = vperm.xlu0 %2534, %v31
    %v2536 = vpop.permute.xlu0 %2535
    %2537 = vset.pattern.permute.xlu0 8
    %2538 = vperm.xlu0 %2537, %v32
    %v2539 = vpop.permute.xlu0 %2538
    %2540 = vset.pattern.permute.xlu0 8
    %2541 = vperm.xlu0 %2540, %v33
    %v2542 = vpop.permute.xlu0 %2541
    %2543 = vset.pattern.permute.xlu0 8
    %2544 = vperm.xlu0 %2543, %v34
    %v2545 = vpop.permute.xlu0 %2544
    %2546 = vset.pattern.permute.xlu0 8
    %2547 = vperm.xlu0 %2546, %v35
    %v2548 = vpop.permute.xlu0 %2547
    %2549 = vset.pattern.permute.xlu0 8
    %2550 = vperm.xlu0 %2549, %v36
    %v2551 = vpop.permute.xlu0 %2550
    %2552 = vset.pattern.permute.xlu0 8
    %2553 = vperm.xlu0 %2552, %v37
    %v2554 = vpop.permute.xlu0 %2553
    %2555 = vset.pattern.permute.xlu0 8
    %2556 = vperm.xlu0 %2555, %v38
    %v2557 = vpop.permute.xlu0 %2556
    %vm2558 = vcmp.eq.s32.totalorder %v2524, %v26
    %vm2559 = vcmp.eq.s32.totalorder %v2527, %v26
    %vm2560 = vcmp.eq.s32.totalorder %v2530, %v26
    %vm2561 = vcmp.eq.s32.totalorder %v2533, %v26
    %vm2562 = vcmp.eq.s32.totalorder %v2536, %v26
    %vm2563 = vcmp.eq.s32.totalorder %v2539, %v26
    %vm2564 = vcmp.eq.s32.totalorder %v2542, %v26
    %vm2565 = vcmp.eq.s32.totalorder %v2545, %v26
    %vm2566 = vcmp.eq.s32.totalorder %v2548, %v26
    %vm2567 = vcmp.eq.s32.totalorder %v2551, %v26
    %vm2568 = vcmp.eq.s32.totalorder %v2554, %v26
    %vm2569 = vcmp.eq.s32.totalorder %v2557, %v26
    %v2570 = vsel %vm2558, 1, 0
    %v2571 = vsel %vm2559, 1, 0
    %v2572 = vsel %vm2560, 1, 0
    %v2573 = vsel %vm2561, 1, 0
    %v2574 = vsel %vm2562, 1, 0
    %v2575 = vsel %vm2563, 1, 0
    %v2576 = vsel %vm2564, 1, 0
    %v2577 = vsel %vm2565, 1, 0
    %v2578 = vsel %vm2566, 1, 0
    %v2579 = vsel %vm2567, 1, 0
    %v2580 = vsel %vm2568, 1, 0
    %v2581 = vsel %vm2569, 1, 0
    %v2582 = vadd.s32 %v2570, %v2574
    %v2583 = vadd.s32 %v2571, %v2575
    %v2584 = vadd.s32 %v2572, %v2576
    %v2585 = vadd.s32 %v2573, %v2577
    %v2586 = vadd.s32 %v2582, %v2578
    %v2587 = vadd.s32 %v2583, %v2579
    %v2588 = vadd.s32 %v2584, %v2580
    %v2589 = vadd.s32 %v2585, %v2581
    %v2590 = vadd.s32 %v2586, %v2587
    %v2591 = vadd.s32 %v2588, %v2589
    %v2592 = vadd.s32 %v2590, %v2591
    %v2593 = vrot.slane %v2592, 4
    %v2594 = vadd.s32 %v2592, %v2593
    %v2595 = vrot.slane %v2594, 2
    %v2596 = vadd.s32 %v2594, %v2595
    %v2597 = vrot.slane %v2596, 1
    %v2598 = vadd.s32 %v2596, %v2597
    %v2599 = vadd.s32 %v2383, %v2598
    %2600 = vset.pattern.permute.xlu0 8
    %2601 = vperm.xlu0 %2600, %v784
    %v2602 = vpop.permute.xlu0 %2601
    %2603 = vset.pattern.permute.xlu0 8
    %2604 = vperm.xlu0 %2603, %v785
    %v2605 = vpop.permute.xlu0 %2604
    %2606 = vset.pattern.permute.xlu0 8
    %2607 = vperm.xlu0 %2606, %v786
    %v2608 = vpop.permute.xlu0 %2607
    %2609 = vset.pattern.permute.xlu0 8
    %2610 = vperm.xlu0 %2609, %v787
    %v2611 = vpop.permute.xlu0 %2610
    %2612 = vset.pattern.permute.xlu0 8
    %2613 = vperm.xlu0 %2612, %v788
    %v2614 = vpop.permute.xlu0 %2613
    %2615 = vset.pattern.permute.xlu0 8
    %2616 = vperm.xlu0 %2615, %v789
    %v2617 = vpop.permute.xlu0 %2616
    %2618 = vset.pattern.permute.xlu0 8
    %2619 = vperm.xlu0 %2618, %v790
    %v2620 = vpop.permute.xlu0 %2619
    %2621 = vset.pattern.permute.xlu0 8
    %2622 = vperm.xlu0 %2621, %v791
    %v2623 = vpop.permute.xlu0 %2622
    %2624 = vset.pattern.permute.xlu0 8
    %2625 = vperm.xlu0 %2624, %v792
    %v2626 = vpop.permute.xlu0 %2625
    %2627 = vset.pattern.permute.xlu0 8
    %2628 = vperm.xlu0 %2627, %v793
    %v2629 = vpop.permute.xlu0 %2628
    %2630 = vset.pattern.permute.xlu0 8
    %2631 = vperm.xlu0 %2630, %v794
    %v2632 = vpop.permute.xlu0 %2631
    %2633 = vset.pattern.permute.xlu0 8
    %2634 = vperm.xlu0 %2633, %v795
    %v2635 = vpop.permute.xlu0 %2634
    %vm2636 = vcmp.eq.s32.totalorder %v2602, %v26
    %vm2637 = vcmp.eq.s32.totalorder %v2605, %v26
    %vm2638 = vcmp.eq.s32.totalorder %v2608, %v26
    %vm2639 = vcmp.eq.s32.totalorder %v2611, %v26
    %vm2640 = vcmp.eq.s32.totalorder %v2614, %v26
    %vm2641 = vcmp.eq.s32.totalorder %v2617, %v26
    %vm2642 = vcmp.eq.s32.totalorder %v2620, %v26
    %vm2643 = vcmp.eq.s32.totalorder %v2623, %v26
    %vm2644 = vcmp.eq.s32.totalorder %v2626, %v26
    %vm2645 = vcmp.eq.s32.totalorder %v2629, %v26
    %vm2646 = vcmp.eq.s32.totalorder %v2632, %v26
    %vm2647 = vcmp.eq.s32.totalorder %v2635, %v26
    %2648 = vset.pattern.permute.xlu0 8
    %2649 = vperm.xlu0 %2648, %v66
    %v2650 = vpop.permute.xlu0 %2649
    %2651 = vset.pattern.permute.xlu0 8
    %2652 = vperm.xlu0 %2651, %v67
    %v2653 = vpop.permute.xlu0 %2652
    %2654 = vset.pattern.permute.xlu0 8
    %2655 = vperm.xlu0 %2654, %v68
    %v2656 = vpop.permute.xlu0 %2655
    %2657 = vset.pattern.permute.xlu0 8
    %2658 = vperm.xlu0 %2657, %v69
    %v2659 = vpop.permute.xlu0 %2658
    %2660 = vset.pattern.permute.xlu0 8
    %2661 = vperm.xlu0 %2660, %v70
    %v2662 = vpop.permute.xlu0 %2661
    %2663 = vset.pattern.permute.xlu0 8
    %2664 = vperm.xlu0 %2663, %v71
    %v2665 = vpop.permute.xlu0 %2664
    %2666 = vset.pattern.permute.xlu0 8
    %2667 = vperm.xlu0 %2666, %v72
    %v2668 = vpop.permute.xlu0 %2667
    %2669 = vset.pattern.permute.xlu0 8
    %2670 = vperm.xlu0 %2669, %v73
    %v2671 = vpop.permute.xlu0 %2670
    %2672 = vset.pattern.permute.xlu0 8
    %2673 = vperm.xlu0 %2672, %v74
    %v2674 = vpop.permute.xlu0 %2673
    %2675 = vset.pattern.permute.xlu0 8
    %2676 = vperm.xlu0 %2675, %v75
    %v2677 = vpop.permute.xlu0 %2676
    %2678 = vset.pattern.permute.xlu0 8
    %2679 = vperm.xlu0 %2678, %v76
    %v2680 = vpop.permute.xlu0 %2679
    %2681 = vset.pattern.permute.xlu0 8
    %2682 = vperm.xlu0 %2681, %v77
    %v2683 = vpop.permute.xlu0 %2682
    %vm2684 = vcmp.eq.s32.totalorder %v2650, 1
    %vm2685 = vcmp.eq.s32.totalorder %v2653, 1
    %vm2686 = vcmp.eq.s32.totalorder %v2656, 1
    %vm2687 = vcmp.eq.s32.totalorder %v2659, 1
    %vm2688 = vcmp.eq.s32.totalorder %v2662, 1
    %vm2689 = vcmp.eq.s32.totalorder %v2665, 1
    %vm2690 = vcmp.eq.s32.totalorder %v2668, 1
    %vm2691 = vcmp.eq.s32.totalorder %v2671, 1
    %vm2692 = vcmp.eq.s32.totalorder %v2674, 1
    %vm2693 = vcmp.eq.s32.totalorder %v2677, 1
    %vm2694 = vcmp.eq.s32.totalorder %v2680, 1
    %vm2695 = vcmp.eq.s32.totalorder %v2683, 1
    %vm2696 = vmand %vm2636, %vm2684
    %vm2697 = vmand %vm2637, %vm2685
    %vm2698 = vmand %vm2638, %vm2686
    %vm2699 = vmand %vm2639, %vm2687
    %vm2700 = vmand %vm2640, %vm2688
    %vm2701 = vmand %vm2641, %vm2689
    %vm2702 = vmand %vm2642, %vm2690
    %vm2703 = vmand %vm2643, %vm2691
    %vm2704 = vmand %vm2644, %vm2692
    %vm2705 = vmand %vm2645, %vm2693
    %vm2706 = vmand %vm2646, %vm2694
    %vm2707 = vmand %vm2647, %vm2695
    %v2708 = vsel %vm2696, 1, 0
    %v2709 = vsel %vm2697, 1, 0
    %v2710 = vsel %vm2698, 1, 0
    %v2711 = vsel %vm2699, 1, 0
    %v2712 = vsel %vm2700, 1, 0
    %v2713 = vsel %vm2701, 1, 0
    %v2714 = vsel %vm2702, 1, 0
    %v2715 = vsel %vm2703, 1, 0
    %v2716 = vsel %vm2704, 1, 0
    %v2717 = vsel %vm2705, 1, 0
    %v2718 = vsel %vm2706, 1, 0
    %v2719 = vsel %vm2707, 1, 0
    %v2720 = vadd.s32 %v2708, %v2712
    %v2721 = vadd.s32 %v2709, %v2713
    %v2722 = vadd.s32 %v2710, %v2714
    %v2723 = vadd.s32 %v2711, %v2715
    %v2724 = vadd.s32 %v2720, %v2716
    %v2725 = vadd.s32 %v2721, %v2717
    %v2726 = vadd.s32 %v2722, %v2718
    %v2727 = vadd.s32 %v2723, %v2719
    %v2728 = vadd.s32 %v2724, %v2725
    %v2729 = vadd.s32 %v2726, %v2727
    %v2730 = vadd.s32 %v2728, %v2729
    %v2731 = vrot.slane %v2730, 4
    %v2732 = vadd.s32 %v2730, %v2731
    %v2733 = vrot.slane %v2732, 2
    %v2734 = vadd.s32 %v2732, %v2733
    %v2735 = vrot.slane %v2734, 1
    %v2736 = vadd.s32 %v2734, %v2735
    %v2737 = vadd.s32 %v2521, %v2736
    %v2738 = vlaneseq
    %v2739 = vshrl.u32 %v2738, 7
    %vm2740 = vcmp.eq.s32.totalorder %v2739, 0
    %v2741 = vsel %vm2740, %v275, 0
    %vm2742 = vcmp.eq.s32.totalorder %v2739, 1
    %v2743 = vsel %vm2742, %v2599, 0
    %v2744 = vadd.s32 %v2741, %v2743
    %vm2745 = vcmp.eq.s32.totalorder %v2739, 2
    %v2746 = vsel %vm2745, %v560, 0
    %v2747 = vadd.s32 %v2744, %v2746
    %vm2748 = vcmp.eq.s32.totalorder %v2739, 3
    %v2749 = vsel %vm2748, %v2737, 0
    %v2750 = vadd.s32 %v2747, %v2749
    %v2751 = vld [vmem:[#allocation2] sm:$0xff]
    %v2752 = vadd.s32 %v2751, %v2750
    %2753 = vst [vmem:[#allocation2] sm:$0xff] %v2752
    // Predicated region
    $region22: #{tpu_custom_call.1} parent=1 // pred_check
      %p2754 = pneg %p19
    $region23: #{tpu_custom_call.1} parent=1 // pred_check_branch
      %2756 = sbr.rel (%p2754) target = $region25
    $region24: #{tpu_custom_call.1} parent=1 // pred_region
      %v2757 = vld [vmem:[#allocation2] sm:$0xff]
      %v2758 = vcvt.s32.f32 %v2757
      %v2759 = vsel %vm330, 24.0, 0.0
      %v2760 = vsub.f32 %v2758, %v2759
      %vm2761 = vcmask 1040384
      %v2762 = vsel %vm2761, %v2760, 0.0
      %2763 = vadd.xlane.f32.xlu0 %v2762
      %v2764 = vpop.xlane.xlu0 %2763
      %v2765 = vrot.slane %v2764, 4
      %v2766 = vadd.f32 %v2764, %v2765
      %v2767 = vrot.slane %v2766, 2
      %v2768 = vadd.f32 %v2766, %v2767
      %v2769 = vrot.slane %v2768, 1
      %v2770 = vadd.f32 %v2768, %v2769
      %s2771 = vtos %v2770
      %v2772 = vstv %s2771
      %vm2773 = vcmp.gt.f32.partialorder %v2772, 0.0
      %v2774 = vsel %vm2773, %v2772, 1.0
      %v2775 = vrcp.pop %v2774
      %v2776 = vmul.f32 %v2760, %v2775
      %v2778 = vrot.slane %v2758, 1
      %v2780 = vsel %vm2761, %v2778, 0.0
      %2781 = vadd.xlane.f32.xlu0 %v2780
      %v2782 = vpop.xlane.xlu0 %2781
      %v2783 = vrot.slane %v2782, 4
      %v2784 = vadd.f32 %v2782, %v2783
      %v2785 = vrot.slane %v2784, 2
      %v2786 = vadd.f32 %v2784, %v2785
      %v2787 = vrot.slane %v2786, 1
      %v2788 = vadd.f32 %v2786, %v2787
      %s2789 = vtos %v2788
      %v2790 = vstv %s2789
      %vm2791 = vcmp.gt.f32.partialorder %v2790, 0.0
      %v2792 = vsel %vm2791, %v2790, 1.0
      %v2793 = vrcp.pop %v2792
      %v2794 = vmul.f32 %v2758, %v2793
      %v2795 = vrot.slane %v2758, 2
      %v2797 = vsel %vm2761, %v2795, 0.0
      %2798 = vadd.xlane.f32.xlu0 %v2797
      %v2799 = vpop.xlane.xlu0 %2798
      %v2800 = vrot.slane %v2799, 4
      %v2801 = vadd.f32 %v2799, %v2800
      %v2802 = vrot.slane %v2801, 2
      %v2803 = vadd.f32 %v2801, %v2802
      %v2804 = vrot.slane %v2803, 1
      %v2805 = vadd.f32 %v2803, %v2804
      %s2806 = vtos %v2805
      %v2807 = vstv %s2806
      %vm2808 = vcmp.gt.f32.partialorder %v2807, 0.0
      %v2809 = vsel %vm2808, %v2807, 1.0
      %v2810 = vrcp.pop %v2809
      %v2811 = vmul.f32 %v2758, %v2810
      %v2812 = vrot.slane %v2758, 3
      %v2814 = vsel %vm2761, %v2812, 0.0
      %2815 = vadd.xlane.f32.xlu0 %v2814
      %v2816 = vpop.xlane.xlu0 %2815
      %v2817 = vrot.slane %v2816, 4
      %v2818 = vadd.f32 %v2816, %v2817
      %v2819 = vrot.slane %v2818, 2
      %v2820 = vadd.f32 %v2818, %v2819
      %v2821 = vrot.slane %v2820, 1
      %v2822 = vadd.f32 %v2820, %v2821
      %s2823 = vtos %v2822
      %v2824 = vstv %s2823
      %vm2825 = vcmp.gt.f32.partialorder %v2824, 0.0
      %v2826 = vsel %vm2825, %v2824, 1.0
      %v2827 = vrcp.pop %v2826
      %v2828 = vmul.f32 %v2758, %v2827
      %v2829 = vld [vmem:[%s3] sm:$0xf]
      %v2830 = vsub.f32 %v2776, %v2829
      %v2831 = vand.u32 2147483647, %v2830
      %v2832 = vsel %vm2761, %v2831, 0.0
      %2833 = vadd.xlane.f32.xlu0 %v2832
      %v2834 = vpop.xlane.xlu0 %2833
      %v2835 = vrot.slane %v2834, 4
      %v2836 = vadd.f32 %v2834, %v2835
      %v2837 = vrot.slane %v2836, 2
      %v2838 = vadd.f32 %v2836, %v2837
      %v2839 = vrot.slane %v2838, 1
      %v2840 = vadd.f32 %v2838, %v2839
      %s2841 = vtos %v2840
      %v2842 = vstv %s2841
      %v2843 = vmul.f32 %v2842, 0.1
      %v2844 = vsub.f32 %v2794, %v2829
      %v2845 = vand.u32 2147483647, %v2844
      %v2847 = vrot.slane %v2845, 1
      %v2849 = vsel %vm2761, %v2847, 0.0
      %2850 = vadd.xlane.f32.xlu0 %v2849
      %v2851 = vpop.xlane.xlu0 %2850
      %v2852 = vrot.slane %v2851, 4
      %v2853 = vadd.f32 %v2851, %v2852
      %v2854 = vrot.slane %v2853, 2
      %v2855 = vadd.f32 %v2853, %v2854
      %v2856 = vrot.slane %v2855, 1
      %v2857 = vadd.f32 %v2855, %v2856
      %s2858 = vtos %v2857
      %v2859 = vstv %s2858
      %v2860 = vmul.f32 %v2859, 0.25
      %v2861 = vsub.f32 %v2811, %v2829
      %v2862 = vand.u32 2147483647, %v2861
      %v2864 = vrot.slane %v2862, 2
      %v2866 = vsel %vm2761, %v2864, 0.0
      %2867 = vadd.xlane.f32.xlu0 %v2866
      %v2868 = vpop.xlane.xlu0 %2867
      %v2869 = vrot.slane %v2868, 4
      %v2870 = vadd.f32 %v2868, %v2869
      %v2871 = vrot.slane %v2870, 2
      %v2872 = vadd.f32 %v2870, %v2871
      %v2873 = vrot.slane %v2872, 1
      %v2874 = vadd.f32 %v2872, %v2873
      %s2875 = vtos %v2874
      %v2876 = vstv %s2875
      %v2877 = vmul.f32 %v2876, 0.2
      %v2878 = vsub.f32 %v2828, %v2829
      %v2879 = vand.u32 2147483647, %v2878
      %v2881 = vrot.slane %v2879, 3
      %v2883 = vsel %vm2761, %v2881, 0.0
      %2884 = vadd.xlane.f32.xlu0 %v2883
      %v2885 = vpop.xlane.xlu0 %2884
      %v2886 = vrot.slane %v2885, 4
      %v2887 = vadd.f32 %v2885, %v2886
      %v2888 = vrot.slane %v2887, 2
      %v2889 = vadd.f32 %v2887, %v2888
      %v2890 = vrot.slane %v2889, 1
      %v2891 = vadd.f32 %v2889, %v2890
      %s2892 = vtos %v2891
      %v2893 = vstv %s2892
      %v2894 = vmul.f32 %v2893, 0.04
      %v2895 = vsel %vm330, %v2843, 0.0
      %v2896 = vsel %vm387, %v2860, %v2895
      %v2897 = vsel %vm444, %v2877, %v2896
      %v2898 = vsel %vm501, %v2894, %v2897
      %v2899 = vlaneseq
      %v2900 = vshrl.u32 %v2899, 7
      %v2901 = vsub.s32 0, %v2900
      %v2902 = vrot.slane %v2776, %v2901
      %v2903 = vsel %vm2740, %v2902, 0.0
      %v2904 = vlaneseq
      %v2905 = vshrl.u32 %v2904, 7
      %v2906 = vsub.s32 1, %v2905
      %v2907 = vrot.slane %v2794, %v2906
      %v2908 = vsel %vm2742, %v2907, 0.0
      %v2909 = vadd.f32 %v2903, %v2908
      %v2910 = vlaneseq
      %v2911 = vshrl.u32 %v2910, 7
      %v2912 = vsub.s32 2, %v2911
      %v2913 = vrot.slane %v2811, %v2912
      %v2914 = vsel %vm2745, %v2913, 0.0
      %v2915 = vadd.f32 %v2909, %v2914
      %v2916 = vlaneseq
      %v2917 = vshrl.u32 %v2916, 7
      %v2918 = vsub.s32 3, %v2917
      %v2919 = vrot.slane %v2828, %v2918
      %v2920 = vsel %vm2748, %v2919, 0.0
      %v2921 = vadd.f32 %v2915, %v2920
      %vm2922 = vcmp.eq.s32.totalorder %v2739, 4
      %v2923 = vsel %vm2922, %v2898, 0.0
      %v2924 = vadd.f32 %v2921, %v2923
      %2925 = vst [vmem:[#allocation3] sm:$0xff] %v2924
    $region25: #{tpu_custom_call.1} parent=1 // pred_fallthru
      _
    // Predicated region
    $region26: #{tpu_custom_call.1} parent=1 // pred_check
      _
    $region27: #{tpu_custom_call.1} parent=1 // pred_check_branch
      %2927 = sbr.rel (0) target = $region29
    $region28: #{tpu_custom_call.1} parent=1 // pred_region
      %s2929 = ssub.s32 128, 128
      %2930 = vsyncadd [#allocation4], %s2929
      %s2932 = sshll.u32 [#allocation3], 4
      %s2933 = int_to_ptr.vmem [resolvable:$true] %s2932
      %2935 = dma.vmem_to_hbm [thread:$0]  %s2933, 128, %s4, [#allocation4]
    $region29: #{tpu_custom_call.1} parent=1 // pred_fallthru
      _
    // Predicated region
    $region30: #{tpu_custom_call.1} parent=1 // pred_check
      _
    $region31: #{tpu_custom_call.1} parent=1 // pred_check_branch
      %2937 = sbr.rel (0) target = $region33
    $region32: #{tpu_custom_call.1} parent=1 // pred_region
      %2938 = dma.done [#allocation4], 128
    $region33: #{tpu_custom_call.1} parent=1 // pred_fallthru
      _
    %2939 = vsyncpa [#allocation4], 1

</llo_original>
